<compile_context>
chip_gen: v6e
topology: v6e:2x2x1
jax: 0.10.0
libtpu: 0.0.40
codegen_flags: <defaults>
</compile_context>

<pallas_src>
import functools

import numpy as np
import jax
import jax.numpy as jnp
from jax.experimental import pallas as pl
from jax.experimental.pallas import tpu as pltpu

EPS = 1e-5
LRELU_SLOPE = 0.02


def _default_vmem_limit():
    # v7x: 64 MiB VMEM / TC, v5e/v6e: 128 MiB -> budget ~3/4, capped at 100 MiB.
    try:
        cap = getattr(pltpu.get_tpu_info(), "vmem_capacity_bytes", None)
        if cap:
            return int(min(cap * 3 // 4, 100 * 1024 * 1024))
    except Exception:
        pass
    return 48 * 1024 * 1024


VMEM_LIMIT = _default_vmem_limit()


# ----------------------------------------------------------------------------
# Slab-layout helpers (XLA glue, only at resolution changes / boundaries)
# ----------------------------------------------------------------------------
def to_slab(x, dtype=jnp.bfloat16):
    """(N,H,W,C) -> (N,(H+3)*(W+2),C) zero-padded slab (top1/bot2/left1/right1)."""
    N, H, W, C = x.shape
    xp = jnp.pad(x, ((0, 0), (1, 2), (1, 1), (0, 0))).astype(dtype)
    return xp.reshape(N, (H + 3) * (W + 2), C)


def from_slab(xs, H, W):
    N, _, C = xs.shape
    Wp = W + 2
    return xs.reshape(N, H + 3, Wp, C)[:, 1:1 + H, 1:1 + W, :]


@functools.lru_cache(maxsize=None)
def _col_mask(H, W):
    """(H*(W+2), 1) f32 mask: 1 on valid image columns, 0 on the pad columns."""
    Wp = W + 2
    m = np.zeros((H, Wp, 1), np.float32)
    m[:, :W, :] = 1.0
    return jnp.asarray(m.reshape(H * Wp, 1))


def _apply_act(y, act):
    if act == "relu":
        return jnp.maximum(y, 0.0)
    if act == "lrelu":
        return jnp.where(y > 0, y, LRELU_SLOPE * y)
    return y


# ----------------------------------------------------------------------------
# Pallas kernels
# ----------------------------------------------------------------------------
@functools.lru_cache(maxsize=None)
def _conv_call(N, Rslab, Cin, Cout, K, Wp, M, act, n_res, emit_stats, out_dtype):
    """'same' KxK stride-1 conv over a slab, slab in -> slab out (bf16/f32).

    Optional fused residual adds (slab inputs) and optional per-sample
    (sum, sumsq) statistics output for a following BatchNorm.
    """
    head = Wp + 1
    tail = Rslab - head - M
    p = K // 2

    def kernel(*refs):
        xp_ref, w_ref, b_ref, m_ref = refs[:4]
        res_refs = refs[4:4 + n_res]
        o_ref = refs[4 + n_res]
        stats_ref = refs[5 + n_res] if emit_stats else None

        # accumulate K*K taps; operands are already bf16 (stored that way)
        acc = None
        for t in range(K * K):
            dh, dw = divmod(t, K)
            off = (dh - p + 1) * Wp + (dw - p + 1)
            d = jnp.dot(xp_ref[0, pl.ds(off, M), :], w_ref[t],
                        preferred_element_type=jnp.float32)
            acc = d if acc is None else acc + d

        y = _apply_act(acc + b_ref[...], act)
        for r in res_refs:
            y = y + r[0, pl.ds(head, M), :].astype(jnp.float32)
        y = y * m_ref[...]                      # zero the slab pad columns

        if emit_stats:
            stats_ref[0, 0:1, :] = jnp.sum(y, axis=0, keepdims=True)
            stats_ref[0, 1:2, :] = jnp.sum(y * y, axis=0, keepdims=True)

        o_ref[0, pl.ds(0, head), :] = jnp.zeros((head, Cout), out_dtype)
        o_ref[0, pl.ds(head, M), :] = y.astype(out_dtype)
        o_ref[0, pl.ds(head + M, tail), :] = jnp.zeros((tail, Cout), out_dtype)

    in_specs = [
        pl.BlockSpec((1, Rslab, Cin), lambda n: (n, 0, 0)),
        pl.BlockSpec((K * K, Cin, Cout), lambda n: (0, 0, 0)),   # resident
        pl.BlockSpec((1, Cout), lambda n: (0, 0)),
        pl.BlockSpec((M, 1), lambda n: (0, 0)),
    ]
    for _ in range(n_res):
        in_specs.append(pl.BlockSpec((1, Rslab, Cout), lambda n: (n, 0, 0)))

    if emit_stats:
        out_shape = (jax.ShapeDtypeStruct((N, Rslab, Cout), out_dtype),
                     jax.ShapeDtypeStruct((N, 2, Cout), jnp.float32))
        out_specs = (pl.BlockSpec((1, Rslab, Cout), lambda n: (n, 0, 0)),
                     pl.BlockSpec((1, 2, Cout), lambda n: (n, 0, 0)))
    else:
        out_shape = jax.ShapeDtypeStruct((N, Rslab, Cout), out_dtype)
        out_specs = pl.BlockSpec((1, Rslab, Cout), lambda n: (n, 0, 0))

    fn = pl.pallas_call(
        kernel,
        out_shape=out_shape,
        grid=(N,),
        in_specs=in_specs,
        out_specs=out_specs,
        compiler_params=pltpu.CompilerParams(
            dimension_semantics=("parallel",),
            vmem_limit_bytes=VMEM_LIMIT),
    )
    return jax.jit(fn)


@functools.lru_cache(maxsize=None)
def _ain_call(N, Rslab, nf, Wp, M, act):
    """Fused `ain` module (one kernel per sample):
       tmp = relu(conv5x5(noise_map_down))          (128-padded contraction)
       gamma|beta = conv3x3(tmp)                    (bf16 slab scratch, 9 taps)
       out = act( instnorm(x) * (1+gamma) + beta )  (masked, slab bf16 out)
    """
    head = Wp + 1
    tail = Rslab - head - M
    W = Wp - 2
    H = M // Wp
    Mv = H * W

    def kernel(nmcol_ref, w1_ref, b1_ref, wgb_ref, bgb_ref, x_ref, m_ref,
               o_ref, tpad_ref):
        mask = m_ref[...]                                        # (M,1) f32

        # 5x5 noise conv + ReLU (single MXU pass, contraction = 128)
        tmp = jnp.dot(nmcol_ref[0], w1_ref[...],
                      preferred_element_type=jnp.float32)
        tmp = jnp.maximum(tmp + b1_ref[...], 0.0) * mask         # (M,nf) f32

        # ONE contiguous store into the slab-coordinate bf16 scratch
        tpad_ref[pl.ds(0, head), :] = jnp.zeros((head, nf), jnp.bfloat16)
        tpad_ref[pl.ds(head, M), :] = tmp.astype(jnp.bfloat16)
        tpad_ref[pl.ds(head + M, tail), :] = jnp.zeros((tail, nf), jnp.bfloat16)

        # fused [gamma|beta] 3x3 conv over the scratch (bf16 operands)
        acc = None
        for t in range(9):
            dh, dw = divmod(t, 3)
            off = dh * Wp + dw
            d = jnp.dot(tpad_ref[pl.ds(off, M), :], wgb_ref[t],
                        preferred_element_type=jnp.float32)
            acc = d if acc is None else acc + d
        gb = acc + bgb_ref[...]
        gamma = gb[:, :nf]
        beta = gb[:, nf:]

        # param_free_norm of x (slab pads are zero -> slab sums == valid sums)
        x_all = x_ref[0].astype(jnp.float32)
        inv = 1.0 / float(Mv)
        mean = jnp.sum(x_all, axis=0, keepdims=True) * inv
        var = jnp.sum(x_all * x_all, axis=0, keepdims=True) * inv - mean * mean
        rstd = jax.lax.rsqrt(jnp.maximum(var, 0.0) + EPS)

        xv = x_ref[0, pl.ds(head, M), :].astype(jnp.float32)
        y = _apply_act((xv - mean) * rstd * (1.0 + gamma) + beta, act) * mask

        o_ref[0, pl.ds(0, head), :] = jnp.zeros((head, nf), jnp.bfloat16)
        o_ref[0, pl.ds(head, M), :] = y.astype(jnp.bfloat16)
        o_ref[0, pl.ds(head + M, tail), :] = jnp.zeros((tail, nf), jnp.bfloat16)

    fn = pl.pallas_call(
        kernel,
        out_shape=jax.ShapeDtypeStruct((N, Rslab, nf), jnp.bfloat16),
        grid=(N,),
        in_specs=[
            pl.BlockSpec((1, M, 128), lambda n: (n, 0, 0)),
            pl.BlockSpec((128, nf), lambda n: (0, 0)),
            pl.BlockSpec((1, nf), lambda n: (0, 0)),
            pl.BlockSpec((9, nf, 2 * nf), lambda n: (0, 0, 0)),
            pl.BlockSpec((1, 2 * nf), lambda n: (0, 0)),
            pl.BlockSpec((1, Rslab, nf), lambda n: (n, 0, 0)),
            pl.BlockSpec((M, 1), lambda n: (0, 0)),
        ],
        out_specs=pl.BlockSpec((1, Rslab, nf), lambda n: (n, 0, 0)),
        scratch_shapes=[pltpu.VMEM((Rslab, nf), jnp.bfloat16)],
        compiler_params=pltpu.CompilerParams(
            dimension_semantics=("parallel",),
            vmem_limit_bytes=VMEM_LIMIT),
    )
    return jax.jit(fn)


@functools.lru_cache(maxsize=None)
def _bn_apply_call(N, Rslab, C, Wp, M):
    """Single-pass BatchNorm(apply)+ReLU over a slab (scale/shift precomputed)."""
    head = Wp + 1
    tail = Rslab - head - M

    def kernel(x_ref, sc_ref, sh_ref, m_ref, o_ref):
        x = x_ref[0, pl.ds(head, M), :].astype(jnp.float32)
        y = jnp.maximum(x * sc_ref[...] + sh_ref[...], 0.0) * m_ref[...]
        o_ref[0, pl.ds(0, head), :] = jnp.zeros((head, C), jnp.bfloat16)
        o_ref[0, pl.ds(head, M), :] = y.astype(jnp.bfloat16)
        o_ref[0, pl.ds(head + M, tail), :] = jnp.zeros((tail, C), jnp.bfloat16)

    fn = pl.pallas_call(
        kernel,
        out_shape=jax.ShapeDtypeStruct((N, Rslab, C), jnp.bfloat16),
        grid=(N,),
        in_specs=[
            pl.BlockSpec((1, Rslab, C), lambda n: (n, 0, 0)),
            pl.BlockSpec((1, C), lambda n: (0, 0)),
            pl.BlockSpec((1, C), lambda n: (0, 0)),
            pl.BlockSpec((M, 1), lambda n: (0, 0)),
        ],
        out_specs=pl.BlockSpec((1, Rslab, C), lambda n: (n, 0, 0)),
        compiler_params=pltpu.CompilerParams(
            dimension_semantics=("parallel",),
            vmem_limit_bytes=VMEM_LIMIT),
    )
    return jax.jit(fn)


# ----------------------------------------------------------------------------
# Op wrappers
# ----------------------------------------------------------------------------
def conv_slab(x_slab, pc, H, W, *, act="none", residuals=(), emit_stats=False,
              out_dtype=jnp.bfloat16):
    N, Rslab, Cin = x_slab.shape
    K = pc["k"]
    Cout = pc["w"].shape[-1]
    Wp = W + 2
    M = H * Wp
    fn = _conv_call(N, Rslab, Cin, Cout, K, Wp, M, act, len(residuals),
                    emit_stats, out_dtype)
    args = [x_slab, pc["w"], pc["b"], _col_mask(H, W)] + list(residuals)
    outs = fn(*args)
    if emit_stats:
        return outs[0], outs[1]
    return outs


def ain_slab(pa, nmcol, x_slab, H, W, *, act):
    N, Rslab, nf = x_slab.shape
    Wp = W + 2
    M = H * Wp
    return _ain_call(N, Rslab, nf, Wp, M, act)(
        nmcol, pa["w1"], pa["b1"], pa["wgb"], pa["bgb"], x_slab, _col_mask(H, W))


def bn_apply_relu(x_slab, scale, shift, H, W):
    N, Rslab, C = x_slab.shape
    Wp = W + 2
    M = H * Wp
    return _bn_apply_call(N, Rslab, C, Wp, M)(x_slab, scale, shift,
                                              _col_mask(H, W))


def avg_pool_slab(x_slab, H, W):
    x = from_slab(x_slab, H, W).astype(jnp.float32)
    N, _, _, C = x.shape
    y = x.reshape(N, H // 2, 2, W // 2, 2, C).mean(axis=(2, 4))
    return to_slab(y)


def _resize_matrix(out_size, in_size):
    m = np.zeros((out_size, in_size), np.float32)
    if out_size == 1:
        m[0, 0] = 1.0
        return m
    for o in range(out_size):
        src = o * (in_size - 1) / (out_size - 1)
        i0 = min(int(np.floor(src)), in_size - 1)
        i1 = min(i0 + 1, in_size - 1)
        w = src - i0
        m[o, i0] += 1.0 - w
        m[o, i1] += w
    return m


def bilinear_resize_align_corners(x, out_h, out_w):
    N, H, W, C = x.shape
    if out_h == H and out_w == W:
        return x
    mh = jnp.asarray(_resize_matrix(out_h, H))
    mw = jnp.asarray(_resize_matrix(out_w, W))
    y = jnp.einsum("oh,nhwc->nowc", mh, x)
    return jnp.einsum("pw,nowc->nopc", mw, y)


def _nm_cols(nm, H, W):
    """5x5 im2col of the 3-channel noise map, built in slab (Wp-stride) row
    coordinates and zero-padded to a 128-wide contraction dim (bf16)."""
    N = nm.shape[0]
    Wp = W + 2
    nmp = jnp.pad(nm, ((0, 0), (2, 2), (2, 4), (0, 0)))
    cols = [nmp[:, dh:dh + H, dw:dw + Wp, :] for dh in range(5) for dw in range(5)]
    col = jnp.concatenate(cols, axis=-1).reshape(N, H * Wp, 75)
    col = jnp.pad(col, ((0, 0), (0, 0), (0, 128 - 75)))
    return col.astype(jnp.bfloat16)


# ----------------------------------------------------------------------------
# Module forwards
# ----------------------------------------------------------------------------
def ain_resblock_forward(p, nmcol, inp_slab, H, W):
    a1 = ain_slab(p["ain1"], nmcol, inp_slab, H, W, act="lrelu")
    c1 = conv_slab(a1, p["conv1"], H, W)
    a2 = ain_slab(p["ain2"], nmcol, c1, H, W, act="lrelu")
    return conv_slab(a2, p["conv2"], H, W, residuals=(inp_slab,))   # +inp fused


def res_up_forward(p, x1_slab, x2_slab, hs, ws, hb, wb):
    # ResBlock path: conv1 emits per-sample BN statistics from its epilogue.
    y1, stats = conv_slab(x2_slab, p["resblock"]["conv1"], hb, wb,
                          emit_stats=True)
    # TODO(synk): train-mode (batch-statistics) BatchNorm only; eval/running
    # stats of the PyTorch reference are not modeled.
    s = jnp.sum(stats, axis=0)                                # (2, C)
    cnt = float(x2_slab.shape[0] * hb * wb)
    mean = s[0] / cnt
    var = jnp.maximum(s[1] / cnt - mean * mean, 0.0)
    scale = p["resblock"]["bn_gamma"] * jax.lax.rsqrt(var + EPS)
    shift = p["resblock"]["bn_beta"] - mean * scale
    y2 = bn_apply_relu(y1, scale.reshape(1, -1), shift.reshape(1, -1), hb, wb)

    # Decoder path: ConvTranspose2d(2,2) == (M,Cin)x(Cin,4Cout) matmul + interleave.
    dec_s = conv_slab(x1_slab, p["tconv"], hs, ws)
    N = x1_slab.shape[0]
    Cout = p["tconv"]["w"].shape[-1] // 4
    dec = from_slab(dec_s, hs, ws).reshape(N, hs, ws, 2, 2, Cout)
    dec = dec.transpose(0, 1, 3, 2, 4, 5).reshape(N, hb, wb, Cout)
    dec_slab = to_slab(dec)

    # conv2 + x2 + dec: both residual adds fused in the conv epilogue.
    return conv_slab(y2, p["resblock"]["conv2"], hb, wb,
                     residuals=(x2_slab, dec_slab))


def aindnet_recon_forward(pp, inp, noise_map):
    N, H0, W0, _ = inp.shape
    H1, W1 = H0 // 2, W0 // 2
    H2, W2 = H1 // 2, W1 // 2

    # Resize + im2col the 3-channel noise map once per pyramid level (shared).
    nmc = {}
    for h, w in ((H0, W0), (H1, W1), (H2, W2)):
        nmc[h] = _nm_cols(bilinear_resize_align_corners(noise_map, h, w), h, w)

    x_slab = to_slab(inp)
    x = conv_slab(x_slab, pp["conv1"], H0, W0, act="relu")
    rb1 = ain_resblock_forward(pp["ain_rb1_1"], nmc[H0], x, H0, W0)
    rb2 = ain_resblock_forward(pp["ain_rb1_2"], nmc[H0], rb1, H0, W0)

    x_down = avg_pool_slab(rb2, H0, W0)
    x2 = conv_slab(x_down, pp["conv2"], H1, W1, act="relu")
    rb21 = ain_resblock_forward(pp["ain_rb2_1"], nmc[H1], x2, H1, W1)
    rb22 = ain_resblock_forward(pp["ain_rb2_2"], nmc[H1], rb21, H1, W1)

    x_down2 = avg_pool_slab(rb22, H1, W1)
    x3 = conv_slab(x_down2, pp["conv3"], H2, W2, act="relu")
    rb3 = x3
    for i in range(1, 6):
        rb3 = ain_resblock_forward(pp[f"ain_rb3_{i}"], nmc[H2], rb3, H2, W2)

    ups1 = res_up_forward(pp["res_up1"], rb3, rb22, H2, W2, H1, W1)
    rb4 = ups1
    for i in range(1, 4):
        rb4 = ain_resblock_forward(pp[f"ain_rb4_{i}"], nmc[H1], rb4, H1, W1)

    ups2 = res_up_forward(pp["res_up2"], rb4, rb2, H1, W1, H0, W0)
    rb51 = ain_resblock_forward(pp["ain_rb5_1"], nmc[H0], ups2, H0, W0)
    # NOTE: the reference computes ain_rb5_2(rb51) but never uses the result;
    # the dead computation is skipped.
    out_slab = conv_slab(rb51, pp["conv_out"], H0, W0, out_dtype=jnp.float32)
    return from_slab(out_slab, H0, W0).astype(jnp.float32)


# ----------------------------------------------------------------------------
# Deterministic parameter initialization (synthetic, PyTorch-like layouts)
# ----------------------------------------------------------------------------
class PInit:
    def __init__(self, seed):
        self.key = jax.random.PRNGKey(seed)

    def take(self, shape, scale=0.05):
        self.key, sub = jax.random.split(self.key)
        return scale * jax.random.normal(sub, shape, jnp.float32)


def conv_p(pi, k, cin, cout):
    return {"w": pi.take((k, k, cin, cout)), "b": pi.take((cout,))}


def ain_p(pi, nf):
    return {"conv1": conv_p(pi, 5, 3, nf),
            "conv_gamma": conv_p(pi, 3, nf, nf),
            "conv_beta": conv_p(pi, 3, nf, nf)}


def ain_rb_p(pi, nf):
    return {"ain1": ain_p(pi, nf), "conv1": conv_p(pi, 3, nf, nf),
            "ain2": ain_p(pi, nf), "conv2": conv_p(pi, 3, nf, nf)}


def resblock_p(pi, in_nc, out_nc):
    return {"conv1": conv_p(pi, 3, in_nc, out_nc),
            "conv2": conv_p(pi, 3, out_nc, in_nc),
            "bn_gamma": jnp.ones((out_nc,), jnp.float32),
            "bn_beta": jnp.zeros((out_nc,), jnp.float32)}


def res_up_p(pi, in_nc, out_nc):
    return {"resblock": resblock_p(pi, in_nc, out_nc),
            "tconv_w": pi.take((out_nc, in_nc, 2, 2)),   # PyTorch ConvTranspose2d layout
            "tconv_b": pi.take((in_nc,))}


def aindnet_recon_params(pi, in_nc, out_nc):
    p = {"conv1": conv_p(pi, 3, in_nc, 64)}
    p["ain_rb1_1"] = ain_rb_p(pi, 64)
    p["ain_rb1_2"] = ain_rb_p(pi, 64)
    p["conv2"] = conv_p(pi, 3, 64, 128)
    p["ain_rb2_1"] = ain_rb_p(pi, 128)
    p["ain_rb2_2"] = ain_rb_p(pi, 128)
    p["conv3"] = conv_p(pi, 3, 128, 256)
    for i in range(1, 6):
        p[f"ain_rb3_{i}"] = ain_rb_p(pi, 256)
    p["res_up1"] = res_up_p(pi, 128, 256)
    for i in range(1, 4):
        p[f"ain_rb4_{i}"] = ain_rb_p(pi, 128)
    p["res_up2"] = res_up_p(pi, 64, 128)
    p["ain_rb5_1"] = ain_rb_p(pi, 64)
    p["ain_rb5_2"] = ain_rb_p(pi, 64)
    p["conv_out"] = conv_p(pi, 3, 64, out_nc)
    return p


# ----- one-time conversion to kernel-friendly layouts (tap-major, bf16) ------
def _prep_conv(c):
    K, _, Cin, Cout = c["w"].shape
    return {"k": K,
            "w": c["w"].reshape(K * K, Cin, Cout).astype(jnp.bfloat16),
            "b": c["b"].reshape(1, Cout).astype(jnp.float32)}


def _prep_ain(a):
    nf = a["conv1"]["w"].shape[-1]
    w1 = a["conv1"]["w"].reshape(75, nf)
    w1 = jnp.pad(w1, ((0, 128 - 75), (0, 0)))                 # 128-deep MXU pass
    wgb = jnp.concatenate([a["conv_gamma"]["w"], a["conv_beta"]["w"]], axis=-1)
    bgb = jnp.concatenate([a["conv_gamma"]["b"], a["conv_beta"]["b"]])
    return {"w1": w1.astype(jnp.bfloat16),
            "b1": a["conv1"]["b"].reshape(1, nf).astype(jnp.float32),
            "wgb": wgb.reshape(9, nf, 2 * nf).astype(jnp.bfloat16),
            "bgb": bgb.reshape(1, 2 * nf).astype(jnp.float32)}


def _prep_ain_rb(a):
    return {"ain1": _prep_ain(a["ain1"]), "conv1": _prep_conv(a["conv1"]),
            "ain2": _prep_ain(a["ain2"]), "conv2": _prep_conv(a["conv2"])}


def _prep_tconv(w, b):
    Cin, Cout = w.shape[0], w.shape[1]
    w4 = jnp.transpose(w, (0, 2, 3, 1)).reshape(1, Cin, 4 * Cout).astype(jnp.bfloat16)
    b4 = jnp.tile(b, 4).reshape(1, 4 * Cout).astype(jnp.float32)
    return {"k": 1, "w": w4, "b": b4}


def _prep_res_up(r):
    return {"resblock": {"conv1": _prep_conv(r["resblock"]["conv1"]),
                         "conv2": _prep_conv(r["resblock"]["conv2"]),
                         "bn_gamma": r["resblock"]["bn_gamma"],
                         "bn_beta": r["resblock"]["bn_beta"]},
            "tconv": _prep_tconv(r["tconv_w"], r["tconv_b"])}


def prepare_params(p):
    pp = {"conv1": _prep_conv(p["conv1"]), "conv2": _prep_conv(p["conv2"]),
          "conv3": _prep_conv(p["conv3"]), "conv_out": _prep_conv(p["conv_out"]),
          "res_up1": _prep_res_up(p["res_up1"]),
          "res_up2": _prep_res_up(p["res_up2"])}
    for k in p:
        if k.startswith("ain_rb"):
            pp[k] = _prep_ain_rb(p[k])
    return pp


# ----------------------------------------------------------------------------
if __name__ == "__main__":
    in_nc, out_nc = 3, 3
    N, H, W = 2, 16, 16

    key = jax.random.PRNGKey(0)
    k1, k2 = jax.random.split(key)
    inp_nchw = jax.random.normal(k1, (N, in_nc, H, W), jnp.float32)
    noise_nchw = jax.random.uniform(k2, (N, 3, H, W), jnp.float32)

    # convert reference NCHW -> kernel NHWC layout
    inp = jnp.transpose(inp_nchw, (0, 2, 3, 1))
    noise_map = jnp.transpose(noise_nchw, (0, 2, 3, 1))

    params = prepare_params(aindnet_recon_params(PInit(42), in_nc, out_nc))

    out = aindnet_recon_forward(params, inp, noise_map)
    out = jax.block_until_ready(out)

    assert out.shape == (N, H, W, out_nc)
    assert bool(jnp.all(jnp.isfinite(out)))
    print("KERNEL_OK")
</pallas_src>

<mosaic_0001>
module attributes {stable_mosaic.version = 11 : i64} {
  func.func @kernel(%arg0: i32, %arg1: memref<1x342x3xbf16, #tpu.memory_space<vmem>>, %arg2: memref<9x3x64xbf16, #tpu.memory_space<vmem>>, %arg3: memref<1x64xf32, #tpu.memory_space<vmem>>, %arg4: memref<288x1xf32, #tpu.memory_space<vmem>>, %arg5: memref<1x342x64xbf16, #tpu.memory_space<vmem>>) attributes {dimension_semantics = [#tpu.dimension_semantics<parallel>], iteration_bounds = array<i64: 2>, scalar_prefetch = 0 : i64, scratch_operands = 0 : i64, tpu.core_type = #tpu.core_type<tc>, window_params = [{transform_indices = @transform_0, window_bounds = array<i64: 1, 342, 3>}, {pipeline_mode = #tpu.pipeline_mode<synchronous>, transform_indices = @transform_1, window_bounds = array<i64: 9, 3, 64>}, {pipeline_mode = #tpu.pipeline_mode<synchronous>, transform_indices = @transform_2, window_bounds = array<i64: 1, 64>}, {pipeline_mode = #tpu.pipeline_mode<synchronous>, transform_indices = @transform_3, window_bounds = array<i64: 288, 1>}, {transform_indices = @transform_4, window_bounds = array<i64: 1, 342, 64>}]} {
    %c0 = arith.constant 0 : index
    %c0_0 = arith.constant 0 : index
    %c0_1 = arith.constant 0 : index
    %0 = vector.load %arg1[%c0, %c0_0, %c0_1] : memref<1x342x3xbf16, #tpu.memory_space<vmem>>, vector<1x288x3xbf16>
    %1 = vector.shape_cast %0 : vector<1x288x3xbf16> to vector<288x3xbf16>
    %c0_2 = arith.constant 0 : index
    %c0_3 = arith.constant 0 : index
    %c0_4 = arith.constant 0 : index
    %2 = vector.load %arg2[%c0_2, %c0_3, %c0_4] : memref<9x3x64xbf16, #tpu.memory_space<vmem>>, vector<1x3x64xbf16>
    %3 = vector.shape_cast %2 : vector<1x3x64xbf16> to vector<3x64xbf16>
    %cst = arith.constant dense<0.000000e+00> : vector<288x64xf32>
    %4 = tpu.matmul %1, %3, %cst {dimension_numbers = #tpu.dot_dimension_numbers<[1], [0], [0], [1], [0, 0, 1, 1], [], []>} : vector<288x3xbf16>, vector<3x64xbf16>, vector<288x64xf32> -> vector<288x64xf32>
    %c0_5 = arith.constant 0 : index
    %c1 = arith.constant 1 : index
    %c0_6 = arith.constant 0 : index
    %5 = vector.load %arg1[%c0_5, %c1, %c0_6] : memref<1x342x3xbf16, #tpu.memory_space<vmem>>, vector<1x288x3xbf16>
    %6 = vector.shape_cast %5 : vector<1x288x3xbf16> to vector<288x3xbf16>
    %c1_7 = arith.constant 1 : index
    %c0_8 = arith.constant 0 : index
    %c0_9 = arith.constant 0 : index
    %7 = vector.load %arg2[%c1_7, %c0_8, %c0_9] : memref<9x3x64xbf16, #tpu.memory_space<vmem>>, vector<1x3x64xbf16>
    %8 = vector.shape_cast %7 : vector<1x3x64xbf16> to vector<3x64xbf16>
    %cst_10 = arith.constant dense<0.000000e+00> : vector<288x64xf32>
    %9 = tpu.matmul %6, %8, %cst_10 {dimension_numbers = #tpu.dot_dimension_numbers<[1], [0], [0], [1], [0, 0, 1, 1], [], []>} : vector<288x3xbf16>, vector<3x64xbf16>, vector<288x64xf32> -> vector<288x64xf32>
    %10 = arith.addf %4, %9 : vector<288x64xf32>
    %c0_11 = arith.constant 0 : index
    %c2 = arith.constant 2 : index
    %c0_12 = arith.constant 0 : index
    %11 = vector.load %arg1[%c0_11, %c2, %c0_12] : memref<1x342x3xbf16, #tpu.memory_space<vmem>>, vector<1x288x3xbf16>
    %12 = vector.shape_cast %11 : vector<1x288x3xbf16> to vector<288x3xbf16>
    %c2_13 = arith.constant 2 : index
    %c0_14 = arith.constant 0 : index
    %c0_15 = arith.constant 0 : index
    %13 = vector.load %arg2[%c2_13, %c0_14, %c0_15] : memref<9x3x64xbf16, #tpu.memory_space<vmem>>, vector<1x3x64xbf16>
    %14 = vector.shape_cast %13 : vector<1x3x64xbf16> to vector<3x64xbf16>
    %cst_16 = arith.constant dense<0.000000e+00> : vector<288x64xf32>
    %15 = tpu.matmul %12, %14, %cst_16 {dimension_numbers = #tpu.dot_dimension_numbers<[1], [0], [0], [1], [0, 0, 1, 1], [], []>} : vector<288x3xbf16>, vector<3x64xbf16>, vector<288x64xf32> -> vector<288x64xf32>
    %16 = arith.addf %10, %15 : vector<288x64xf32>
    %c0_17 = arith.constant 0 : index
    %c18 = arith.constant 18 : index
    %c0_18 = arith.constant 0 : index
    %17 = vector.load %arg1[%c0_17, %c18, %c0_18] : memref<1x342x3xbf16, #tpu.memory_space<vmem>>, vector<1x288x3xbf16>
    %18 = vector.shape_cast %17 : vector<1x288x3xbf16> to vector<288x3xbf16>
    %c3 = arith.constant 3 : index
    %c0_19 = arith.constant 0 : index
    %c0_20 = arith.constant 0 : index
    %19 = vector.load %arg2[%c3, %c0_19, %c0_20] : memref<9x3x64xbf16, #tpu.memory_space<vmem>>, vector<1x3x64xbf16>
    %20 = vector.shape_cast %19 : vector<1x3x64xbf16> to vector<3x64xbf16>
    %cst_21 = arith.constant dense<0.000000e+00> : vector<288x64xf32>
    %21 = tpu.matmul %18, %20, %cst_21 {dimension_numbers = #tpu.dot_dimension_numbers<[1], [0], [0], [1], [0, 0, 1, 1], [], []>} : vector<288x3xbf16>, vector<3x64xbf16>, vector<288x64xf32> -> vector<288x64xf32>
    %22 = arith.addf %16, %21 : vector<288x64xf32>
    %c0_22 = arith.constant 0 : index
    %c19 = arith.constant 19 : index
    %c0_23 = arith.constant 0 : index
    %23 = vector.load %arg1[%c0_22, %c19, %c0_23] : memref<1x342x3xbf16, #tpu.memory_space<vmem>>, vector<1x288x3xbf16>
    %24 = vector.shape_cast %23 : vector<1x288x3xbf16> to vector<288x3xbf16>
    %c4 = arith.constant 4 : index
    %c0_24 = arith.constant 0 : index
    %c0_25 = arith.constant 0 : index
    %25 = vector.load %arg2[%c4, %c0_24, %c0_25] : memref<9x3x64xbf16, #tpu.memory_space<vmem>>, vector<1x3x64xbf16>
    %26 = vector.shape_cast %25 : vector<1x3x64xbf16> to vector<3x64xbf16>
    %cst_26 = arith.constant dense<0.000000e+00> : vector<288x64xf32>
    %27 = tpu.matmul %24, %26, %cst_26 {dimension_numbers = #tpu.dot_dimension_numbers<[1], [0], [0], [1], [0, 0, 1, 1], [], []>} : vector<288x3xbf16>, vector<3x64xbf16>, vector<288x64xf32> -> vector<288x64xf32>
    %28 = arith.addf %22, %27 : vector<288x64xf32>
    %c0_27 = arith.constant 0 : index
    %c20 = arith.constant 20 : index
    %c0_28 = arith.constant 0 : index
    %29 = vector.load %arg1[%c0_27, %c20, %c0_28] : memref<1x342x3xbf16, #tpu.memory_space<vmem>>, vector<1x288x3xbf16>
    %30 = vector.shape_cast %29 : vector<1x288x3xbf16> to vector<288x3xbf16>
    %c5 = arith.constant 5 : index
    %c0_29 = arith.constant 0 : index
    %c0_30 = arith.constant 0 : index
    %31 = vector.load %arg2[%c5, %c0_29, %c0_30] : memref<9x3x64xbf16, #tpu.memory_space<vmem>>, vector<1x3x64xbf16>
    %32 = vector.shape_cast %31 : vector<1x3x64xbf16> to vector<3x64xbf16>
    %cst_31 = arith.constant dense<0.000000e+00> : vector<288x64xf32>
    %33 = tpu.matmul %30, %32, %cst_31 {dimension_numbers = #tpu.dot_dimension_numbers<[1], [0], [0], [1], [0, 0, 1, 1], [], []>} : vector<288x3xbf16>, vector<3x64xbf16>, vector<288x64xf32> -> vector<288x64xf32>
    %34 = arith.addf %28, %33 : vector<288x64xf32>
    %c0_32 = arith.constant 0 : index
    %c36 = arith.constant 36 : index
    %c0_33 = arith.constant 0 : index
    %35 = vector.load %arg1[%c0_32, %c36, %c0_33] : memref<1x342x3xbf16, #tpu.memory_space<vmem>>, vector<1x288x3xbf16>
    %36 = vector.shape_cast %35 : vector<1x288x3xbf16> to vector<288x3xbf16>
    %c6 = arith.constant 6 : index
    %c0_34 = arith.constant 0 : index
    %c0_35 = arith.constant 0 : index
    %37 = vector.load %arg2[%c6, %c0_34, %c0_35] : memref<9x3x64xbf16, #tpu.memory_space<vmem>>, vector<1x3x64xbf16>
    %38 = vector.shape_cast %37 : vector<1x3x64xbf16> to vector<3x64xbf16>
    %cst_36 = arith.constant dense<0.000000e+00> : vector<288x64xf32>
    %39 = tpu.matmul %36, %38, %cst_36 {dimension_numbers = #tpu.dot_dimension_numbers<[1], [0], [0], [1], [0, 0, 1, 1], [], []>} : vector<288x3xbf16>, vector<3x64xbf16>, vector<288x64xf32> -> vector<288x64xf32>
    %40 = arith.addf %34, %39 : vector<288x64xf32>
    %c0_37 = arith.constant 0 : index
    %c37 = arith.constant 37 : index
    %c0_38 = arith.constant 0 : index
    %41 = vector.load %arg1[%c0_37, %c37, %c0_38] : memref<1x342x3xbf16, #tpu.memory_space<vmem>>, vector<1x288x3xbf16>
    %42 = vector.shape_cast %41 : vector<1x288x3xbf16> to vector<288x3xbf16>
    %c7 = arith.constant 7 : index
    %c0_39 = arith.constant 0 : index
    %c0_40 = arith.constant 0 : index
    %43 = vector.load %arg2[%c7, %c0_39, %c0_40] : memref<9x3x64xbf16, #tpu.memory_space<vmem>>, vector<1x3x64xbf16>
    %44 = vector.shape_cast %43 : vector<1x3x64xbf16> to vector<3x64xbf16>
    %cst_41 = arith.constant dense<0.000000e+00> : vector<288x64xf32>
    %45 = tpu.matmul %42, %44, %cst_41 {dimension_numbers = #tpu.dot_dimension_numbers<[1], [0], [0], [1], [0, 0, 1, 1], [], []>} : vector<288x3xbf16>, vector<3x64xbf16>, vector<288x64xf32> -> vector<288x64xf32>
    %46 = arith.addf %40, %45 : vector<288x64xf32>
    %c0_42 = arith.constant 0 : index
    %c38 = arith.constant 38 : index
    %c0_43 = arith.constant 0 : index
    %47 = vector.load %arg1[%c0_42, %c38, %c0_43] : memref<1x342x3xbf16, #tpu.memory_space<vmem>>, vector<1x288x3xbf16>
    %48 = vector.shape_cast %47 : vector<1x288x3xbf16> to vector<288x3xbf16>
    %c8 = arith.constant 8 : index
    %c0_44 = arith.constant 0 : index
    %c0_45 = arith.constant 0 : index
    %49 = vector.load %arg2[%c8, %c0_44, %c0_45] : memref<9x3x64xbf16, #tpu.memory_space<vmem>>, vector<1x3x64xbf16>
    %50 = vector.shape_cast %49 : vector<1x3x64xbf16> to vector<3x64xbf16>
    %cst_46 = arith.constant dense<0.000000e+00> : vector<288x64xf32>
    %51 = tpu.matmul %48, %50, %cst_46 {dimension_numbers = #tpu.dot_dimension_numbers<[1], [0], [0], [1], [0, 0, 1, 1], [], []>} : vector<288x3xbf16>, vector<3x64xbf16>, vector<288x64xf32> -> vector<288x64xf32>
    %52 = arith.addf %46, %51 : vector<288x64xf32>
    %c0_47 = arith.constant 0 : index
    %c0_48 = arith.constant 0 : index
    %53 = vector.load %arg3[%c0_47, %c0_48] : memref<1x64xf32, #tpu.memory_space<vmem>>, vector<1x64xf32>
    %54 = vector.broadcast %53 : vector<1x64xf32> to vector<288x64xf32>
    %55 = arith.addf %52, %54 : vector<288x64xf32>
    %cst_49 = arith.constant 0.000000e+00 : f32
    %56 = vector.broadcast %cst_49 : f32 to vector<288x64xf32>
    %57 = arith.maximumf %55, %56 : vector<288x64xf32>
    %c0_50 = arith.constant 0 : index
    %c0_51 = arith.constant 0 : index
    %58 = vector.load %arg4[%c0_50, %c0_51] : memref<288x1xf32, #tpu.memory_space<vmem>>, vector<288x1xf32>
    %59 = vector.broadcast %58 : vector<288x1xf32> to vector<288x64xf32>
    %60 = arith.mulf %57, %59 : vector<288x64xf32>
    %cst_52 = arith.constant 0.000000e+00 : bf16
    %61 = vector.broadcast %cst_52 : bf16 to vector<19x64xbf16>
    %c0_53 = arith.constant 0 : index
    %c0_54 = arith.constant 0 : index
    %c0_55 = arith.constant 0 : index
    %62 = vector.load %arg5[%c0_53, %c0_54, %c0_55] : memref<1x342x64xbf16, #tpu.memory_space<vmem>>, vector<1x19x64xbf16>
    %63 = vector.shape_cast %62 : vector<1x19x64xbf16> to vector<19x64xbf16>
    %64 = vector.shape_cast %61 : vector<19x64xbf16> to vector<1x19x64xbf16>
    tpu.vector_store %arg5[%c0_53, %c0_54, %c0_55], %64 {strides = array<i32>} : memref<1x342x64xbf16, #tpu.memory_space<vmem>>, vector<1x19x64xbf16>,
    %65 = arith.truncf %60 : vector<288x64xf32> to vector<288x64xbf16>
    %c0_56 = arith.constant 0 : index
    %c19_57 = arith.constant 19 : index
    %c0_58 = arith.constant 0 : index
    %66 = vector.load %arg5[%c0_56, %c19_57, %c0_58] : memref<1x342x64xbf16, #tpu.memory_space<vmem>>, vector<1x288x64xbf16>
    %67 = vector.shape_cast %66 : vector<1x288x64xbf16> to vector<288x64xbf16>
    %68 = vector.shape_cast %65 : vector<288x64xbf16> to vector<1x288x64xbf16>
    tpu.vector_store %arg5[%c0_56, %c19_57, %c0_58], %68 {strides = array<i32>} : memref<1x342x64xbf16, #tpu.memory_space<vmem>>, vector<1x288x64xbf16>,
    %cst_59 = arith.constant 0.000000e+00 : bf16
    %69 = vector.broadcast %cst_59 : bf16 to vector<35x64xbf16>
    %c0_60 = arith.constant 0 : index
    %c307 = arith.constant 307 : index
    %c0_61 = arith.constant 0 : index
    %70 = vector.load %arg5[%c0_60, %c307, %c0_61] : memref<1x342x64xbf16, #tpu.memory_space<vmem>>, vector<1x35x64xbf16>
    %71 = vector.shape_cast %70 : vector<1x35x64xbf16> to vector<35x64xbf16>
    %72 = vector.shape_cast %69 : vector<35x64xbf16> to vector<1x35x64xbf16>
    tpu.vector_store %arg5[%c0_60, %c307, %c0_61], %72 {strides = array<i32>} : memref<1x342x64xbf16, #tpu.memory_space<vmem>>, vector<1x35x64xbf16>,
    return
  }
  func.func @transform_0(%arg0: i32) -> (i32, i32, i32) {
    %c0_i32 = arith.constant 0 : i32
    %c0_i32_0 = arith.constant 0 : i32
    %c0_i32_1 = arith.constant 0 : i32
    return %arg0, %c0_i32, %c0_i32_0 : i32, i32, i32
  }
  func.func @transform_1(%arg0: i32) -> (i32, i32, i32) {
    %c0_i32 = arith.constant 0 : i32
    %c0_i32_0 = arith.constant 0 : i32
    %c0_i32_1 = arith.constant 0 : i32
    %c0_i32_2 = arith.constant 0 : i32
    return %c0_i32, %c0_i32_0, %c0_i32_1 : i32, i32, i32
  }
  func.func @transform_2(%arg0: i32) -> (i32, i32) {
    %c0_i32 = arith.constant 0 : i32
    %c0_i32_0 = arith.constant 0 : i32
    %c0_i32_1 = arith.constant 0 : i32
    return %c0_i32, %c0_i32_0 : i32, i32
  }
  func.func @transform_3(%arg0: i32) -> (i32, i32) {
    %c0_i32 = arith.constant 0 : i32
    %c0_i32_0 = arith.constant 0 : i32
    %c0_i32_1 = arith.constant 0 : i32
    return %c0_i32, %c0_i32_0 : i32, i32
  }
  func.func @transform_4(%arg0: i32) -> (i32, i32, i32) {
    %c0_i32 = arith.constant 0 : i32
    %c0_i32_0 = arith.constant 0 : i32
    %c0_i32_1 = arith.constant 0 : i32
    return %arg0, %c0_i32, %c0_i32_0 : i32, i32, i32
  }
}

</mosaic_0001>

<llo_original>
// kernel: tpu_custom_call.1
$region0: #{tpu_custom_call.1}
  #allocation0 [shape = 'u32[]', space=smem, size = 0x4, offset = 0x4, fixed_abs, tag = 'smem constant byte address 0x4 - core index']
  #allocation1 [shape = 'u32[144,128]{1,0:T(1,128)}', space=vmem, size = 0x12000, scoped, tag = 'internal scratch']
  %s0 = inlined_call_operand.vmem [shape: bf16[2,342,3], index: 0, kind: input, shape index: {}]
  %s1 = inlined_call_operand.vmem [shape: bf16[9,3,64], index: 1, kind: input, shape index: {}]
  %s2 = inlined_call_operand.vmem [shape: f32[1,64], index: 2, kind: input, shape index: {}]
  %s3 = inlined_call_operand.vmem [shape: f32[288,1], index: 3, kind: input, shape index: {}]
  %s4 = inlined_call_operand.vmem [shape: bf16[2,342,64], index: 4, kind: output, shape index: {}]
  %s5 = sld [smem:[#allocation0]]
  $region49: #{tpu_custom_call.1} parent=0
    _
  %s7 = ssub.s32 1, %s5
  %s8 = scalar_select 0, %s7, %s5
  loop: start=0, step=1, limit=4
  $region2: #{tpu_custom_call.1} parent=0 // loop_pre_header
    _
  $region3: #{tpu_custom_call.1} parent=0 // loop_header
    %s10 = sphi 0, %s14
    %p11 = scmp.ge.s32.totalorder %s10, 4
    %s20 = sphi 0, %s22
    %s23 = sphi 0, %s20
    %s24 = sphi 0, %s23
    %s40 = sphi 0, %s24
    %s44 = sphi 0, %s44
    %s46 = sphi 0, %s44
    %s47 = sphi 0, %s46
    %s61 = sphi 0, %s47
    %s65 = sphi 0, %s65
    %s67 = sphi 0, %s65
    %s68 = sphi 0, %s67
    %s82 = sphi 0, %s68
    %s86 = sphi 0, %s86
    %s88 = sphi 0, %s86
    %s89 = sphi 0, %s88
    %s103 = sphi 0, %s89
    %s109 = sphi 0, %s111
    %s112 = sphi 0, %s109
    %s113 = sphi 0, %s112
    %s129 = sphi 0, %s113
  $region4: #{tpu_custom_call.1} parent=0 // loop_header_branch
    %13 = sbr.rel (%p11) target = $region8
  $region5: #{tpu_custom_call.1} parent=0 // loop_body
    %s15 = ssub.s32 %s10, 1
    %s16 = ssub.s32 %s10, 2
    %s17 = sadd.s32 %s10, 1
    %s18 = ssub.s32 %s10, %s17
    %p19 = scmp.eq.s32.totalorder %s18, 0
    %s21 = sadd.s32 %s20, 1
    %s22 = scalar_select %p19, %s20, %s21
    %p25 = pneg %p19
    %p26 = scmp.eq.s32.totalorder %s10, 1
    %p27 = por %p25, %p26
    %p28 = scmp.ne.s32.totalorder %s20, %s23
    %p29 = scmp.eq.s32.totalorder %s10, 0
    %p30 = por %p28, %p29
    %p31 = scmp.ne.s32.totalorder %s20, %s23
    %p32 = scmp.eq.s32.totalorder %s15, 1
    %p33 = por %p31, %p32
    %p34 = scmp.ne.s32.totalorder %s23, %s24
    %p35 = scmp.eq.s32.totalorder %s15, 0
    %p36 = por %p34, %p35
    %p37 = scmp.ne.s32.totalorder %s23, %s24
    %p38 = scmp.eq.s32.totalorder %s16, 1
    %p39 = por %p37, %p38
    %p41 = scmp.ne.s32.totalorder %s24, %s40
    %p42 = scmp.eq.s32.totalorder %s16, 0
    %p43 = por %p41, %p42
    %s45 = sadd.s32 %s44, 1
    %p48 = scmp.eq.s32.totalorder %s10, 1
    %p49 = scmp.ne.s32.totalorder %s44, %s46
    %p50 = scmp.eq.s32.totalorder %s10, 0
    %p51 = por %p49, %p50
    %p52 = scmp.ne.s32.totalorder %s44, %s46
    %p53 = scmp.eq.s32.totalorder %s15, 1
    %p54 = por %p52, %p53
    %p55 = scmp.ne.s32.totalorder %s46, %s47
    %p56 = scmp.eq.s32.totalorder %s15, 0
    %p57 = por %p55, %p56
    %p58 = scmp.ne.s32.totalorder %s46, %s47
    %p59 = scmp.eq.s32.totalorder %s16, 1
    %p60 = por %p58, %p59
    %p62 = scmp.ne.s32.totalorder %s47, %s61
    %p63 = scmp.eq.s32.totalorder %s16, 0
    %p64 = por %p62, %p63
    %s66 = sadd.s32 %s65, 1
    %p69 = scmp.eq.s32.totalorder %s10, 1
    %p70 = scmp.ne.s32.totalorder %s65, %s67
    %p71 = scmp.eq.s32.totalorder %s10, 0
    %p72 = por %p70, %p71
    %p73 = scmp.ne.s32.totalorder %s65, %s67
    %p74 = scmp.eq.s32.totalorder %s15, 1
    %p75 = por %p73, %p74
    %p76 = scmp.ne.s32.totalorder %s67, %s68
    %p77 = scmp.eq.s32.totalorder %s15, 0
    %p78 = por %p76, %p77
    %p79 = scmp.ne.s32.totalorder %s67, %s68
    %p80 = scmp.eq.s32.totalorder %s16, 1
    %p81 = por %p79, %p80
    %p83 = scmp.ne.s32.totalorder %s68, %s82
    %p84 = scmp.eq.s32.totalorder %s16, 0
    %p85 = por %p83, %p84
    %s87 = sadd.s32 %s86, 1
    %p90 = scmp.eq.s32.totalorder %s10, 1
    %p91 = scmp.ne.s32.totalorder %s86, %s88
    %p92 = scmp.eq.s32.totalorder %s10, 0
    %p93 = por %p91, %p92
    %p94 = scmp.ne.s32.totalorder %s86, %s88
    %p95 = scmp.eq.s32.totalorder %s15, 1
    %p96 = por %p94, %p95
    %p97 = scmp.ne.s32.totalorder %s88, %s89
    %p98 = scmp.eq.s32.totalorder %s15, 0
    %p99 = por %p97, %p98
    %p100 = scmp.ne.s32.totalorder %s88, %s89
    %p101 = scmp.eq.s32.totalorder %s16, 1
    %p102 = por %p100, %p101
    %p104 = scmp.ne.s32.totalorder %s89, %s103
    %p105 = scmp.eq.s32.totalorder %s16, 0
    %p106 = por %p104, %p105
    %s107 = ssub.s32 %s10, %s17
    %p108 = scmp.eq.s32.totalorder %s107, 0
    %s110 = sadd.s32 %s109, 1
    %s111 = scalar_select %p108, %s109, %s110
    %p114 = pneg %p108
    %p115 = scmp.eq.s32.totalorder %s10, 1
    %p116 = por %p114, %p115
    %p117 = scmp.ne.s32.totalorder %s109, %s112
    %p118 = scmp.eq.s32.totalorder %s10, 0
    %p119 = por %p117, %p118
    %p120 = scmp.ne.s32.totalorder %s109, %s112
    %p121 = scmp.eq.s32.totalorder %s15, 1
    %p122 = por %p120, %p121
    %p123 = scmp.ne.s32.totalorder %s112, %s113
    %p124 = scmp.eq.s32.totalorder %s15, 0
    %p125 = por %p123, %p124
    %p126 = scmp.ne.s32.totalorder %s112, %s113
    %p127 = scmp.eq.s32.totalorder %s16, 1
    %p128 = por %p126, %p127
    %p130 = scmp.ne.s32.totalorder %s113, %s129
    %p131 = scmp.eq.s32.totalorder %s16, 0
    %p132 = por %p130, %p131
    %p133 = scmp.le.s32.totalorder 1, %s10
    %p134 = scmp.lt.s32.totalorder %s10, 3
    %p135 = pnand %p133, %p134
    %p136 = pneg %p135
    // Predicated region
    $region9: #{tpu_custom_call.1} parent=5 // pred_check
      _
    $region10: #{tpu_custom_call.1} parent=5 // pred_check_branch
      %138 = sbr.rel (%p135) target = $region12
    $region11: #{tpu_custom_call.1} parent=5 // pred_region
      %s139 = ssub.s32 %s10, 1
      // Predicated region
      $region13: #{tpu_custom_call.1} parent=11 // pred_check
        %p140 = pneg %p57
      $region14: #{tpu_custom_call.1} parent=11 // pred_check_branch
        %142 = sbr.rel (%p140) target = $region16
      $region15: #{tpu_custom_call.1} parent=11 // pred_region
        _
      $region16: #{tpu_custom_call.1} parent=11 // pred_fallthru
        _
      // Predicated region
      $region17: #{tpu_custom_call.1} parent=11 // pred_check
        %p143 = pneg %p78
      $region18: #{tpu_custom_call.1} parent=11 // pred_check_branch
        %145 = sbr.rel (%p143) target = $region20
      $region19: #{tpu_custom_call.1} parent=11 // pred_region
        _
      $region20: #{tpu_custom_call.1} parent=11 // pred_fallthru
        _
      // Predicated region
      $region21: #{tpu_custom_call.1} parent=11 // pred_check
        %p146 = pneg %p99
      $region22: #{tpu_custom_call.1} parent=11 // pred_check_branch
        %148 = sbr.rel (%p146) target = $region24
      $region23: #{tpu_custom_call.1} parent=11 // pred_region
        _
      $region24: #{tpu_custom_call.1} parent=11 // pred_fallthru
        _
    $region12: #{tpu_custom_call.1} parent=5 // pred_fallthru
      _
    %p149 = scmp.lt.s32.totalorder %s10, 2
    // Predicated region
    $region25: #{tpu_custom_call.1} parent=5 // pred_check
      %p150 = pneg %p149
    $region26: #{tpu_custom_call.1} parent=5 // pred_check_branch
      %152 = sbr.rel (%p150) target = $region28
    $region27: #{tpu_custom_call.1} parent=5 // pred_region
      // Predicated region
      $region29: #{tpu_custom_call.1} parent=27 // pred_check
        %p153 = pneg %p30
      $region30: #{tpu_custom_call.1} parent=27 // pred_check_branch
        %155 = sbr.rel (%p153) target = $region32
      $region31: #{tpu_custom_call.1} parent=27 // pred_region
        %p156 = scmp.lt.s32.totalorder %s10, 1
        %s157 = scalar_select %p156, %s10, 1
        %s158 = smul.addr %s157, 43
        %s159 = smul.addr %s158, 4
        %s160 = scalar_lea.vmem %s0, %s159
      $region32: #{tpu_custom_call.1} parent=27 // pred_fallthru
        _
    $region28: #{tpu_custom_call.1} parent=5 // pred_fallthru
      _
    %p161 = scmp.le.s32.totalorder 1, %s10
    %p162 = scmp.lt.s32.totalorder %s10, 3
    %p163 = pnand %p161, %p162
    %p164 = pneg %p163
    // Predicated region
    $region33: #{tpu_custom_call.1} parent=5 // pred_check
      _
    $region34: #{tpu_custom_call.1} parent=5 // pred_check_branch
      %166 = sbr.rel (%p163) target = $region36
    $region35: #{tpu_custom_call.1} parent=5 // pred_region
      %s167 = ssub.s32 %s10, 1
      %p168 = scmp.lt.s32.totalorder %s15, 1
      %s169 = scalar_select %p168, %s15, 1
      %s170 = smul.addr %s169, 43
      %s171 = smul.addr %s170, 4
      %s172 = scalar_lea.vmem %s0, %s171
      %p173 = pneg %p36
      %p174 = pneg %p33
      %p175 = pneg %p57
      %p176 = pneg %p54
      %p177 = pneg %p78
      %p178 = pneg %p75
      %p179 = pneg %p99
      %p180 = pneg %p96
      %p181 = pneg %p125
      %p182 = pneg %p122
      %p183 = scmp.lt.s32.totalorder %s15, 1
      %s184 = scalar_select %p183, %s15, 1
      %s185 = smul.addr %s184, 43
      %s186 = smul.addr %s185, 4
      %s187 = scalar_lea.vmem %s4, %s186
      %p188 = scmp.lt.s32.totalorder %s15, 1
      %s189 = scalar_select %p188, %s15, 1
      %s190 = smul.addr %s189, 43
      %s191 = smul.addr %s190, 4
      %s192 = scalar_lea.vmem %s0, %s191
      %p193 = scmp.lt.s32.totalorder %s15, 1
      %s194 = scalar_select %p193, %s15, 1
      %s195 = smul.addr %s194, 43
      %s196 = smul.addr %s195, 4
      %s197 = scalar_lea.vmem %s4, %s196
      %v199 = vld [vmem:[%s192] sm:$0xf]
      %v200 = vld [vmem:[%s192 + $0x4] sm:$0xf]
      %v201 = vld [vmem:[%s192 + $0x8] sm:$0xf]
      %v202 = vld [vmem:[%s192 + $0xc] sm:$0xf]
      %v203 = vld [vmem:[%s192 + $0x10] sm:$0xf]
      %v204 = vld [vmem:[%s192 + $0x14] sm:$0xf]
      %v205 = vld [vmem:[%s192 + $0x18] sm:$0xf]
      %v206 = vld [vmem:[%s192 + $0x1c] sm:$0xf]
      %v207 = vld [vmem:[%s192 + $0x20] sm:$0xf]
      %v208 = vld [vmem:[%s192 + $0x24] sm:$0xf]
      %v209 = vld [vmem:[%s192 + $0x28] sm:$0xf]
      %v210 = vld [vmem:[%s192 + $0x2c] sm:$0xf]
      %v211 = vld [vmem:[%s192 + $0x30] sm:$0xf]
      %v212 = vld [vmem:[%s192 + $0x34] sm:$0xf]
      %v213 = vld [vmem:[%s192 + $0x38] sm:$0xf]
      %v214 = vld [vmem:[%s192 + $0x3c] sm:$0xf]
      %v215 = vld [vmem:[%s192 + $0x40] sm:$0xf]
      %v216 = vld [vmem:[%s192 + $0x44] sm:$0xf]
      %v217 = vld [vmem:[%s192 + $0x48] sm:$0xf]
      %v218 = vld [vmem:[%s192 + $0x4c] sm:$0xf]
      %v219 = vld [vmem:[%s192 + $0x50] sm:$0xf]
      %v220 = vld [vmem:[%s192 + $0x54] sm:$0xf]
      %v221 = vld [vmem:[%s192 + $0x58] sm:$0xf]
      %v222 = vld [vmem:[%s192 + $0x5c] sm:$0xf]
      %v223 = vld [vmem:[%s192 + $0x60] sm:$0xf]
      %v224 = vld [vmem:[%s192 + $0x64] sm:$0xf]
      %v225 = vld [vmem:[%s192 + $0x68] sm:$0xf]
      %v226 = vld [vmem:[%s192 + $0x6c] sm:$0xf]
      %v227 = vld [vmem:[%s192 + $0x70] sm:$0xf]
      %v228 = vld [vmem:[%s192 + $0x74] sm:$0xf]
      %v229 = vld [vmem:[%s192 + $0x78] sm:$0xf]
      %v230 = vld [vmem:[%s192 + $0x7c] sm:$0xf]
      %v231 = vld [vmem:[%s192 + $0x80] sm:$0xf]
      %v232 = vld [vmem:[%s192 + $0x84] sm:$0xf]
      %v233 = vld [vmem:[%s192 + $0x88] sm:$0xf]
      %v234 = vld [vmem:[%s192 + $0x8c] sm:$0xf]
      %v235 = vld [vmem:[%s1] sm:$0x3]
      %v236 = vld [vmem:[%s192 + $0x90] sm:$0x1]
      %s237 = scalar_lea.vmem %s1, 2
      %v238 = vld [vmem:[%s237] sm:$0x3]
      %v276 = vunpack.c.l.b16 %v199
      %v277 = vunpack.c.l.b16 %v200
      %v278 = vunpack.c.l.b16 %v201
      %v279 = vunpack.c.l.b16 %v202
      %v280 = vunpack.c.l.b16 %v203
      %v281 = vunpack.c.l.b16 %v204
      %v282 = vunpack.c.l.b16 %v205
      %v283 = vunpack.c.l.b16 %v206
      %v284 = vunpack.c.l.b16 %v207
      %v285 = vunpack.c.l.b16 %v208
      %v286 = vunpack.c.l.b16 %v209
      %v287 = vunpack.c.l.b16 %v210
      %v288 = vunpack.c.l.b16 %v211
      %v289 = vunpack.c.l.b16 %v212
      %v290 = vunpack.c.l.b16 %v213
      %v291 = vunpack.c.l.b16 %v214
      %v292 = vunpack.c.l.b16 %v215
      %v293 = vunpack.c.l.b16 %v216
      %v294 = vunpack.c.l.b16 %v217
      %v295 = vunpack.c.l.b16 %v218
      %v296 = vunpack.c.l.b16 %v219
      %v297 = vunpack.c.l.b16 %v220
      %v298 = vunpack.c.l.b16 %v221
      %v299 = vunpack.c.l.b16 %v222
      %v300 = vunpack.c.l.b16 %v223
      %v301 = vunpack.c.l.b16 %v224
      %v302 = vunpack.c.l.b16 %v225
      %v303 = vunpack.c.l.b16 %v226
      %v304 = vunpack.c.l.b16 %v227
      %v305 = vunpack.c.l.b16 %v228
      %v306 = vunpack.c.l.b16 %v229
      %v307 = vunpack.c.l.b16 %v230
      %v308 = vunpack.c.l.b16 %v231
      %v309 = vunpack.c.l.b16 %v232
      %v310 = vunpack.c.l.b16 %v233
      %v311 = vunpack.c.l.b16 %v234
      %v312 = vunpack.c.l.b16 %v236
      %v313 = vpack.c.b16 %v277, %v276
      %v314 = vpack.c.b16 %v279, %v278
      %v315 = vpack.c.b16 %v281, %v280
      %v316 = vpack.c.b16 %v283, %v282
      %v317 = vpack.c.b16 %v285, %v284
      %v318 = vpack.c.b16 %v287, %v286
      %v319 = vpack.c.b16 %v289, %v288
      %v320 = vpack.c.b16 %v291, %v290
      %v321 = vpack.c.b16 %v293, %v292
      %v322 = vpack.c.b16 %v295, %v294
      %v323 = vpack.c.b16 %v297, %v296
      %v324 = vpack.c.b16 %v299, %v298
      %v325 = vpack.c.b16 %v301, %v300
      %v326 = vpack.c.b16 %v303, %v302
      %v327 = vpack.c.b16 %v305, %v304
      %v328 = vpack.c.b16 %v307, %v306
      %v329 = vpack.c.b16 %v309, %v308
      %v330 = vpack.c.b16 %v311, %v310
      %v331 = vpack.c.b16 %v312, %v312
      %vm332 = vsmask.f32 7424
      %v334 = vshrl.u32 %v313, 16
      %v336 = vshll.u32 %v313, 16
      %v338 = vrot.slane %v336, 1
      %v339 = vor.u32 %v334, %v338
      %v341 = vshll.u32 %v314, 16
      %v343 = vrot.slane %v341, 1
      %v344 = vsel %vm332, %v339, %v343
      %v345 = vshrl.u32 %v314, 16
      %v347 = vor.u32 %v345, %v343
      %v349 = vshll.u32 %v315, 16
      %v351 = vrot.slane %v349, 1
      %v352 = vsel %vm332, %v347, %v351
      %v353 = vshrl.u32 %v315, 16
      %v355 = vor.u32 %v353, %v351
      %v357 = vshll.u32 %v316, 16
      %v359 = vrot.slane %v357, 1
      %v360 = vsel %vm332, %v355, %v359
      %v361 = vshrl.u32 %v316, 16
      %v363 = vor.u32 %v361, %v359
      %v365 = vshll.u32 %v317, 16
      %v367 = vrot.slane %v365, 1
      %v368 = vsel %vm332, %v363, %v367
      %v369 = vshrl.u32 %v317, 16
      %v371 = vor.u32 %v369, %v367
      %v373 = vshll.u32 %v318, 16
      %v375 = vrot.slane %v373, 1
      %v376 = vsel %vm332, %v371, %v375
      %v377 = vshrl.u32 %v318, 16
      %v379 = vor.u32 %v377, %v375
      %v381 = vshll.u32 %v319, 16
      %v383 = vrot.slane %v381, 1
      %v384 = vsel %vm332, %v379, %v383
      %v385 = vshrl.u32 %v319, 16
      %v387 = vor.u32 %v385, %v383
      %v389 = vshll.u32 %v320, 16
      %v391 = vrot.slane %v389, 1
      %v392 = vsel %vm332, %v387, %v391
      %v393 = vshrl.u32 %v320, 16
      %v395 = vor.u32 %v393, %v391
      %v397 = vshll.u32 %v321, 16
      %v399 = vrot.slane %v397, 1
      %v400 = vsel %vm332, %v395, %v399
      %v401 = vshrl.u32 %v321, 16
      %v403 = vor.u32 %v401, %v399
      %v405 = vshll.u32 %v322, 16
      %v407 = vrot.slane %v405, 1
      %v408 = vsel %vm332, %v403, %v407
      %v409 = vshrl.u32 %v322, 16
      %v411 = vor.u32 %v409, %v407
      %v413 = vshll.u32 %v323, 16
      %v415 = vrot.slane %v413, 1
      %v416 = vsel %vm332, %v411, %v415
      %v417 = vshrl.u32 %v323, 16
      %v419 = vor.u32 %v417, %v415
      %v421 = vshll.u32 %v324, 16
      %v423 = vrot.slane %v421, 1
      %v424 = vsel %vm332, %v419, %v423
      %v425 = vshrl.u32 %v324, 16
      %v427 = vor.u32 %v425, %v423
      %v429 = vshll.u32 %v325, 16
      %v431 = vrot.slane %v429, 1
      %v432 = vsel %vm332, %v427, %v431
      %v433 = vshrl.u32 %v325, 16
      %v435 = vor.u32 %v433, %v431
      %v437 = vshll.u32 %v326, 16
      %v439 = vrot.slane %v437, 1
      %v440 = vsel %vm332, %v435, %v439
      %v441 = vshrl.u32 %v326, 16
      %v443 = vor.u32 %v441, %v439
      %v445 = vshll.u32 %v327, 16
      %v447 = vrot.slane %v445, 1
      %v448 = vsel %vm332, %v443, %v447
      %v449 = vshrl.u32 %v327, 16
      %v451 = vor.u32 %v449, %v447
      %v453 = vshll.u32 %v328, 16
      %v455 = vrot.slane %v453, 1
      %v456 = vsel %vm332, %v451, %v455
      %v457 = vshrl.u32 %v328, 16
      %v459 = vor.u32 %v457, %v455
      %v461 = vshll.u32 %v329, 16
      %v463 = vrot.slane %v461, 1
      %v464 = vsel %vm332, %v459, %v463
      %v465 = vshrl.u32 %v329, 16
      %v467 = vor.u32 %v465, %v463
      %v469 = vshll.u32 %v330, 16
      %v471 = vrot.slane %v469, 1
      %v472 = vsel %vm332, %v467, %v471
      %v473 = vshrl.u32 %v330, 16
      %v475 = vor.u32 %v473, %v471
      %v477 = vshll.u32 %v331, 16
      %v479 = vrot.slane %v477, 1
      %v480 = vsel %vm332, %v475, %v479
      %vm481 = vcmask 23552
      %v483 = vsel %vm481, %v344, 0
      %v486 = vsel %vm481, %v352, 0
      %v489 = vsel %vm481, %v360, 0
      %v492 = vsel %vm481, %v368, 0
      %v495 = vsel %vm481, %v376, 0
      %v498 = vsel %vm481, %v384, 0
      %v501 = vsel %vm481, %v392, 0
      %v504 = vsel %vm481, %v400, 0
      %v507 = vsel %vm481, %v408, 0
      %v510 = vsel %vm481, %v416, 0
      %v513 = vsel %vm481, %v424, 0
      %v516 = vsel %vm481, %v432, 0
      %v519 = vsel %vm481, %v440, 0
      %v522 = vsel %vm481, %v448, 0
      %v525 = vsel %vm481, %v456, 0
      %v528 = vsel %vm481, %v464, 0
      %v531 = vsel %vm481, %v472, 0
      %v534 = vsel %vm481, %v480, 0
      %vm536 = vcmask 1040384
      %vm537 = vcmask 1041408
      %v538 = vsel %vm536, 4294967295, 65535
      %v539 = vsel %vm537, %v538, 0
      %v541 = vand.u32 %v238, %v539
      %543 = vmatprep.subr.bf16.mxu0 0
      %544 = vmatpush1.bf16.msra.mxu0 0
      %545 = vmatprep.subr.bf16.mxu0 0
      %546 = vmatpush1.bf16.msra.mxu0 0
      %547 = vmatprep.subr.bf16.mxu0 0
      %548 = vmatpush1.bf16.msra.mxu0 0
      %549 = vmatprep.subr.bf16.mxu0 0
      %550 = vmatpush1.bf16.msra.mxu0 0
      %551 = vmatprep.subr.bf16.mxu0 0
      %552 = vmatpush1.bf16.msra.mxu0 0
      %553 = vmatprep.subr.bf16.mxu0 0
      %554 = vmatpush1.bf16.msra.mxu0 0
      %555 = vmatprep.subr.bf16.mxu0 0
      %556 = vmatpush1.bf16.msra.mxu0 0
      %557 = vmatprep.subr.bf16.mxu0 0
      %558 = vmatpush1.bf16.msra.mxu0 %v541
      %559 = vmatprep.subr.bf16.mxu0 0
      %560 = vmatpush2.bf16.msra.mxu0 0
      %561 = vmatprep.subr.bf16.mxu0 0
      %562 = vmatpush2.bf16.msra.mxu0 0
      %563 = vmatprep.subr.bf16.mxu0 0
      %564 = vmatpush2.bf16.msra.mxu0 0
      %565 = vmatprep.subr.bf16.mxu0 0
      %566 = vmatpush2.bf16.msra.mxu0 0
      %567 = vmatprep.subr.bf16.mxu0 0
      %568 = vmatpush2.bf16.msra.mxu0 0
      %569 = vmatprep.subr.bf16.mxu0 0
      %570 = vmatpush2.bf16.msra.mxu0 0
      %571 = vmatprep.subr.bf16.mxu0 0
      %572 = vmatpush2.bf16.msra.mxu0 0
      %573 = vmatprep.subr.bf16.mxu0 0
      %574 = vmatpush2.bf16.msra.mxu0 0
      %575 = vmatprep.mubr.bf16.mxu0 0
      %576 = vmatmul.mubr.bf16.gmra.mxu0 %v483
      %v577 = vpop.f32.mrf.mxu0
      %v578 = vadd.f32 0.0, %v577
      %v579 = vpop.f32.mrf.mxu0
      %v580 = vpop.f32.mrf.mxu0
      %v581 = vadd.f32 0.0, %v580
      %v582 = vpop.f32.mrf.mxu0
      %583 = vmatprep.mubr.bf16.mxu0 0
      %584 = vmatmul.mubr.bf16.gmra.mxu0 %v486
      %v585 = vpop.f32.mrf.mxu0
      %v586 = vadd.f32 0.0, %v585
      %v587 = vpop.f32.mrf.mxu0
      %v588 = vpop.f32.mrf.mxu0
      %v589 = vadd.f32 0.0, %v588
      %v590 = vpop.f32.mrf.mxu0
      %591 = vmatprep.mubr.bf16.mxu0 0
      %592 = vmatmul.mubr.bf16.gmra.mxu0 %v489
      %v593 = vpop.f32.mrf.mxu0
      %v594 = vadd.f32 0.0, %v593
      %v595 = vpop.f32.mrf.mxu0
      %v596 = vpop.f32.mrf.mxu0
      %v597 = vadd.f32 0.0, %v596
      %v598 = vpop.f32.mrf.mxu0
      %599 = vmatprep.mubr.bf16.mxu0 0
      %600 = vmatmul.mubr.bf16.gmra.mxu0 %v492
      %v601 = vpop.f32.mrf.mxu0
      %v602 = vadd.f32 0.0, %v601
      %v603 = vpop.f32.mrf.mxu0
      %v604 = vpop.f32.mrf.mxu0
      %v605 = vadd.f32 0.0, %v604
      %v606 = vpop.f32.mrf.mxu0
      %607 = vmatprep.mubr.bf16.mxu0 0
      %608 = vmatmul.mubr.bf16.gmra.mxu0 %v495
      %v609 = vpop.f32.mrf.mxu0
      %v610 = vadd.f32 0.0, %v609
      %v611 = vpop.f32.mrf.mxu0
      %v612 = vpop.f32.mrf.mxu0
      %v613 = vadd.f32 0.0, %v612
      %v614 = vpop.f32.mrf.mxu0
      %615 = vmatprep.mubr.bf16.mxu0 0
      %616 = vmatmul.mubr.bf16.gmra.mxu0 %v498
      %v617 = vpop.f32.mrf.mxu0
      %v618 = vadd.f32 0.0, %v617
      %v619 = vpop.f32.mrf.mxu0
      %v620 = vpop.f32.mrf.mxu0
      %v621 = vadd.f32 0.0, %v620
      %v622 = vpop.f32.mrf.mxu0
      %623 = vmatprep.mubr.bf16.mxu0 0
      %624 = vmatmul.mubr.bf16.gmra.mxu0 %v501
      %v625 = vpop.f32.mrf.mxu0
      %v626 = vadd.f32 0.0, %v625
      %v627 = vpop.f32.mrf.mxu0
      %v628 = vpop.f32.mrf.mxu0
      %v629 = vadd.f32 0.0, %v628
      %v630 = vpop.f32.mrf.mxu0
      %631 = vmatprep.mubr.bf16.mxu0 0
      %632 = vmatmul.mubr.bf16.gmra.mxu0 %v504
      %v633 = vpop.f32.mrf.mxu0
      %v634 = vadd.f32 0.0, %v633
      %v635 = vpop.f32.mrf.mxu0
      %v636 = vpop.f32.mrf.mxu0
      %v637 = vadd.f32 0.0, %v636
      %v638 = vpop.f32.mrf.mxu0
      %639 = vmatprep.mubr.bf16.mxu0 0
      %640 = vmatmul.mubr.bf16.gmra.mxu0 %v507
      %v641 = vpop.f32.mrf.mxu0
      %v642 = vadd.f32 0.0, %v641
      %v643 = vpop.f32.mrf.mxu0
      %v644 = vpop.f32.mrf.mxu0
      %v645 = vadd.f32 0.0, %v644
      %v646 = vpop.f32.mrf.mxu0
      %647 = vmatprep.mubr.bf16.mxu0 0
      %648 = vmatmul.mubr.bf16.gmra.mxu0 %v510
      %v649 = vpop.f32.mrf.mxu0
      %v650 = vadd.f32 0.0, %v649
      %v651 = vpop.f32.mrf.mxu0
      %v652 = vpop.f32.mrf.mxu0
      %v653 = vadd.f32 0.0, %v652
      %v654 = vpop.f32.mrf.mxu0
      %655 = vmatprep.mubr.bf16.mxu0 0
      %656 = vmatmul.mubr.bf16.gmra.mxu0 %v513
      %v657 = vpop.f32.mrf.mxu0
      %v658 = vadd.f32 0.0, %v657
      %v659 = vpop.f32.mrf.mxu0
      %v660 = vpop.f32.mrf.mxu0
      %v661 = vadd.f32 0.0, %v660
      %v662 = vpop.f32.mrf.mxu0
      %663 = vmatprep.mubr.bf16.mxu0 0
      %664 = vmatmul.mubr.bf16.gmra.mxu0 %v516
      %v665 = vpop.f32.mrf.mxu0
      %v666 = vadd.f32 0.0, %v665
      %v667 = vpop.f32.mrf.mxu0
      %v668 = vpop.f32.mrf.mxu0
      %v669 = vadd.f32 0.0, %v668
      %v670 = vpop.f32.mrf.mxu0
      %671 = vmatprep.mubr.bf16.mxu0 0
      %672 = vmatmul.mubr.bf16.gmra.mxu0 %v519
      %v673 = vpop.f32.mrf.mxu0
      %v674 = vadd.f32 0.0, %v673
      %v675 = vpop.f32.mrf.mxu0
      %v676 = vpop.f32.mrf.mxu0
      %v677 = vadd.f32 0.0, %v676
      %v678 = vpop.f32.mrf.mxu0
      %679 = vmatprep.mubr.bf16.mxu0 0
      %680 = vmatmul.mubr.bf16.gmra.mxu0 %v522
      %v681 = vpop.f32.mrf.mxu0
      %v682 = vadd.f32 0.0, %v681
      %v683 = vpop.f32.mrf.mxu0
      %v684 = vpop.f32.mrf.mxu0
      %v685 = vadd.f32 0.0, %v684
      %v686 = vpop.f32.mrf.mxu0
      %687 = vmatprep.mubr.bf16.mxu0 0
      %688 = vmatmul.mubr.bf16.gmra.mxu0 %v525
      %v689 = vpop.f32.mrf.mxu0
      %v690 = vadd.f32 0.0, %v689
      %v691 = vpop.f32.mrf.mxu0
      %v692 = vpop.f32.mrf.mxu0
      %v693 = vadd.f32 0.0, %v692
      %v694 = vpop.f32.mrf.mxu0
      %695 = vmatprep.mubr.bf16.mxu0 0
      %696 = vmatmul.mubr.bf16.gmra.mxu0 %v528
      %v697 = vpop.f32.mrf.mxu0
      %v698 = vadd.f32 0.0, %v697
      %v699 = vpop.f32.mrf.mxu0
      %v700 = vpop.f32.mrf.mxu0
      %v701 = vadd.f32 0.0, %v700
      %v702 = vpop.f32.mrf.mxu0
      %703 = vmatprep.mubr.bf16.mxu0 0
      %704 = vmatmul.mubr.bf16.gmra.mxu0 %v531
      %v705 = vpop.f32.mrf.mxu0
      %v706 = vadd.f32 0.0, %v705
      %v707 = vpop.f32.mrf.mxu0
      %v708 = vpop.f32.mrf.mxu0
      %v709 = vadd.f32 0.0, %v708
      %v710 = vpop.f32.mrf.mxu0
      %711 = vmatprep.mubr.bf16.mxu0 0
      %712 = vmatmul.mubr.bf16.gmra.mxu0 %v534
      %v713 = vpop.f32.mrf.mxu0
      %v714 = vadd.f32 0.0, %v713
      %v715 = vpop.f32.mrf.mxu0
      %v716 = vpop.f32.mrf.mxu0
      %v717 = vadd.f32 0.0, %v716
      %v718 = vpop.f32.mrf.mxu0
      %719 = vdwg.mxu0
      %v720 = vsel %vm481, %v313, 0
      %v722 = vsel %vm481, %v314, 0
      %v724 = vsel %vm481, %v315, 0
      %v726 = vsel %vm481, %v316, 0
      %v728 = vsel %vm481, %v317, 0
      %v730 = vsel %vm481, %v318, 0
      %v732 = vsel %vm481, %v319, 0
      %v734 = vsel %vm481, %v320, 0
      %v736 = vsel %vm481, %v321, 0
      %v738 = vsel %vm481, %v322, 0
      %v740 = vsel %vm481, %v323, 0
      %v742 = vsel %vm481, %v324, 0
      %v744 = vsel %vm481, %v325, 0
      %v746 = vsel %vm481, %v326, 0
      %v748 = vsel %vm481, %v327, 0
      %v750 = vsel %vm481, %v328, 0
      %v752 = vsel %vm481, %v329, 0
      %v754 = vsel %vm481, %v330, 0
      %v757 = vand.u32 %v235, %v539
      %759 = vmatprep.subr.bf16.mxu0 0
      %760 = vmatpush1.bf16.msra.mxu0 0
      %761 = vmatprep.subr.bf16.mxu0 0
      %762 = vmatpush1.bf16.msra.mxu0 0
      %763 = vmatprep.subr.bf16.mxu0 0
      %764 = vmatpush1.bf16.msra.mxu0 0
      %765 = vmatprep.subr.bf16.mxu0 0
      %766 = vmatpush1.bf16.msra.mxu0 0
      %767 = vmatprep.subr.bf16.mxu0 0
      %768 = vmatpush1.bf16.msra.mxu0 0
      %769 = vmatprep.subr.bf16.mxu0 0
      %770 = vmatpush1.bf16.msra.mxu0 0
      %771 = vmatprep.subr.bf16.mxu0 0
      %772 = vmatpush1.bf16.msra.mxu0 0
      %773 = vmatprep.subr.bf16.mxu0 0
      %774 = vmatpush1.bf16.msra.mxu0 %v757
      %775 = vmatprep.subr.bf16.mxu0 0
      %776 = vmatpush2.bf16.msra.mxu0 0
      %777 = vmatprep.subr.bf16.mxu0 0
      %778 = vmatpush2.bf16.msra.mxu0 0
      %779 = vmatprep.subr.bf16.mxu0 0
      %780 = vmatpush2.bf16.msra.mxu0 0
      %781 = vmatprep.subr.bf16.mxu0 0
      %782 = vmatpush2.bf16.msra.mxu0 0
      %783 = vmatprep.subr.bf16.mxu0 0
      %784 = vmatpush2.bf16.msra.mxu0 0
      %785 = vmatprep.subr.bf16.mxu0 0
      %786 = vmatpush2.bf16.msra.mxu0 0
      %787 = vmatprep.subr.bf16.mxu0 0
      %788 = vmatpush2.bf16.msra.mxu0 0
      %789 = vmatprep.subr.bf16.mxu0 0
      %790 = vmatpush2.bf16.msra.mxu0 0
      %791 = vmatprep.mubr.bf16.mxu0 0
      %792 = vmatmul.mubr.bf16.gmra.mxu0 %v720
      %v793 = vpop.f32.mrf.mxu0
      %v794 = vadd.f32 %v578, %v793
      %v795 = vpop.f32.mrf.mxu0
      %v796 = vpop.f32.mrf.mxu0
      %v797 = vadd.f32 %v581, %v796
      %v798 = vpop.f32.mrf.mxu0
      %799 = vmatprep.mubr.bf16.mxu0 0
      %800 = vmatmul.mubr.bf16.gmra.mxu0 %v722
      %v801 = vpop.f32.mrf.mxu0
      %v802 = vadd.f32 %v586, %v801
      %v803 = vpop.f32.mrf.mxu0
      %v804 = vpop.f32.mrf.mxu0
      %v805 = vadd.f32 %v589, %v804
      %v806 = vpop.f32.mrf.mxu0
      %807 = vmatprep.mubr.bf16.mxu0 0
      %808 = vmatmul.mubr.bf16.gmra.mxu0 %v724
      %v809 = vpop.f32.mrf.mxu0
      %v810 = vadd.f32 %v594, %v809
      %v811 = vpop.f32.mrf.mxu0
      %v812 = vpop.f32.mrf.mxu0
      %v813 = vadd.f32 %v597, %v812
      %v814 = vpop.f32.mrf.mxu0
      %815 = vmatprep.mubr.bf16.mxu0 0
      %816 = vmatmul.mubr.bf16.gmra.mxu0 %v726
      %v817 = vpop.f32.mrf.mxu0
      %v818 = vadd.f32 %v602, %v817
      %v819 = vpop.f32.mrf.mxu0
      %v820 = vpop.f32.mrf.mxu0
      %v821 = vadd.f32 %v605, %v820
      %v822 = vpop.f32.mrf.mxu0
      %823 = vmatprep.mubr.bf16.mxu0 0
      %824 = vmatmul.mubr.bf16.gmra.mxu0 %v728
      %v825 = vpop.f32.mrf.mxu0
      %v826 = vadd.f32 %v610, %v825
      %v827 = vpop.f32.mrf.mxu0
      %v828 = vpop.f32.mrf.mxu0
      %v829 = vadd.f32 %v613, %v828
      %v830 = vpop.f32.mrf.mxu0
      %831 = vmatprep.mubr.bf16.mxu0 0
      %832 = vmatmul.mubr.bf16.gmra.mxu0 %v730
      %v833 = vpop.f32.mrf.mxu0
      %v834 = vadd.f32 %v618, %v833
      %v835 = vpop.f32.mrf.mxu0
      %v836 = vpop.f32.mrf.mxu0
      %v837 = vadd.f32 %v621, %v836
      %v838 = vpop.f32.mrf.mxu0
      %839 = vmatprep.mubr.bf16.mxu0 0
      %840 = vmatmul.mubr.bf16.gmra.mxu0 %v732
      %v841 = vpop.f32.mrf.mxu0
      %v842 = vadd.f32 %v626, %v841
      %v843 = vpop.f32.mrf.mxu0
      %v844 = vpop.f32.mrf.mxu0
      %v845 = vadd.f32 %v629, %v844
      %v846 = vpop.f32.mrf.mxu0
      %847 = vmatprep.mubr.bf16.mxu0 0
      %848 = vmatmul.mubr.bf16.gmra.mxu0 %v734
      %v849 = vpop.f32.mrf.mxu0
      %v850 = vadd.f32 %v634, %v849
      %v851 = vpop.f32.mrf.mxu0
      %v852 = vpop.f32.mrf.mxu0
      %v853 = vadd.f32 %v637, %v852
      %v854 = vpop.f32.mrf.mxu0
      %855 = vmatprep.mubr.bf16.mxu0 0
      %856 = vmatmul.mubr.bf16.gmra.mxu0 %v736
      %v857 = vpop.f32.mrf.mxu0
      %v858 = vadd.f32 %v642, %v857
      %v859 = vpop.f32.mrf.mxu0
      %v860 = vpop.f32.mrf.mxu0
      %v861 = vadd.f32 %v645, %v860
      %v862 = vpop.f32.mrf.mxu0
      %863 = vmatprep.mubr.bf16.mxu0 0
      %864 = vmatmul.mubr.bf16.gmra.mxu0 %v738
      %v865 = vpop.f32.mrf.mxu0
      %v866 = vadd.f32 %v650, %v865
      %v867 = vpop.f32.mrf.mxu0
      %v868 = vpop.f32.mrf.mxu0
      %v869 = vadd.f32 %v653, %v868
      %v870 = vpop.f32.mrf.mxu0
      %871 = vmatprep.mubr.bf16.mxu0 0
      %872 = vmatmul.mubr.bf16.gmra.mxu0 %v740
      %v873 = vpop.f32.mrf.mxu0
      %v874 = vadd.f32 %v658, %v873
      %v875 = vpop.f32.mrf.mxu0
      %v876 = vpop.f32.mrf.mxu0
      %v877 = vadd.f32 %v661, %v876
      %v878 = vpop.f32.mrf.mxu0
      %879 = vmatprep.mubr.bf16.mxu0 0
      %880 = vmatmul.mubr.bf16.gmra.mxu0 %v742
      %v881 = vpop.f32.mrf.mxu0
      %v882 = vadd.f32 %v666, %v881
      %v883 = vpop.f32.mrf.mxu0
      %v884 = vpop.f32.mrf.mxu0
      %v885 = vadd.f32 %v669, %v884
      %v886 = vpop.f32.mrf.mxu0
      %887 = vmatprep.mubr.bf16.mxu0 0
      %888 = vmatmul.mubr.bf16.gmra.mxu0 %v744
      %v889 = vpop.f32.mrf.mxu0
      %v890 = vadd.f32 %v674, %v889
      %v891 = vpop.f32.mrf.mxu0
      %v892 = vpop.f32.mrf.mxu0
      %v893 = vadd.f32 %v677, %v892
      %v894 = vpop.f32.mrf.mxu0
      %895 = vmatprep.mubr.bf16.mxu0 0
      %896 = vmatmul.mubr.bf16.gmra.mxu0 %v746
      %v897 = vpop.f32.mrf.mxu0
      %v898 = vadd.f32 %v682, %v897
      %v899 = vpop.f32.mrf.mxu0
      %v900 = vpop.f32.mrf.mxu0
      %v901 = vadd.f32 %v685, %v900
      %v902 = vpop.f32.mrf.mxu0
      %903 = vmatprep.mubr.bf16.mxu0 0
      %904 = vmatmul.mubr.bf16.gmra.mxu0 %v748
      %v905 = vpop.f32.mrf.mxu0
      %v906 = vadd.f32 %v690, %v905
      %v907 = vpop.f32.mrf.mxu0
      %v908 = vpop.f32.mrf.mxu0
      %v909 = vadd.f32 %v693, %v908
      %v910 = vpop.f32.mrf.mxu0
      %911 = vmatprep.mubr.bf16.mxu0 0
      %912 = vmatmul.mubr.bf16.gmra.mxu0 %v750
      %v913 = vpop.f32.mrf.mxu0
      %v914 = vadd.f32 %v698, %v913
      %v915 = vpop.f32.mrf.mxu0
      %v916 = vpop.f32.mrf.mxu0
      %v917 = vadd.f32 %v701, %v916
      %v918 = vpop.f32.mrf.mxu0
      %919 = vmatprep.mubr.bf16.mxu0 0
      %920 = vmatmul.mubr.bf16.gmra.mxu0 %v752
      %v921 = vpop.f32.mrf.mxu0
      %v922 = vadd.f32 %v706, %v921
      %v923 = vpop.f32.mrf.mxu0
      %v924 = vpop.f32.mrf.mxu0
      %v925 = vadd.f32 %v709, %v924
      %v926 = vpop.f32.mrf.mxu0
      %927 = vmatprep.mubr.bf16.mxu0 0
      %928 = vmatmul.mubr.bf16.gmra.mxu0 %v754
      %v929 = vpop.f32.mrf.mxu0
      %v930 = vadd.f32 %v714, %v929
      %v931 = vpop.f32.mrf.mxu0
      %v932 = vpop.f32.mrf.mxu0
      %v933 = vadd.f32 %v717, %v932
      %v934 = vpop.f32.mrf.mxu0
      %935 = vdwg.mxu0
      %v936 = vld [vmem:[%s192] sm:$0xe]
      %s937 = scalar_lea.vmem %s1, 4
      %v938 = vld [vmem:[%s937] sm:$0x3]
      %v940 = vunpack.c.l.b16 %v936
      %v941 = vpack.c.b16 %v277, %v940
      %vm942 = vcmask 1046528
      %v943 = vrot.slane %v941, 1
      %v944 = vrot.slane %v314, 1
      %v945 = vsel %vm942, %v943, %v944
      %v946 = vrot.slane %v315, 1
      %v947 = vsel %vm942, %v944, %v946
      %v948 = vrot.slane %v316, 1
      %v949 = vsel %vm942, %v946, %v948
      %v950 = vrot.slane %v317, 1
      %v951 = vsel %vm942, %v948, %v950
      %v952 = vrot.slane %v318, 1
      %v953 = vsel %vm942, %v950, %v952
      %v954 = vrot.slane %v319, 1
      %v955 = vsel %vm942, %v952, %v954
      %v956 = vrot.slane %v320, 1
      %v957 = vsel %vm942, %v954, %v956
      %v958 = vrot.slane %v321, 1
      %v959 = vsel %vm942, %v956, %v958
      %v960 = vrot.slane %v322, 1
      %v961 = vsel %vm942, %v958, %v960
      %v962 = vrot.slane %v323, 1
      %v963 = vsel %vm942, %v960, %v962
      %v964 = vrot.slane %v324, 1
      %v965 = vsel %vm942, %v962, %v964
      %v966 = vrot.slane %v325, 1
      %v967 = vsel %vm942, %v964, %v966
      %v968 = vrot.slane %v326, 1
      %v969 = vsel %vm942, %v966, %v968
      %v970 = vrot.slane %v327, 1
      %v971 = vsel %vm942, %v968, %v970
      %v972 = vrot.slane %v328, 1
      %v973 = vsel %vm942, %v970, %v972
      %v974 = vrot.slane %v329, 1
      %v975 = vsel %vm942, %v972, %v974
      %v976 = vrot.slane %v330, 1
      %v977 = vsel %vm942, %v974, %v976
      %v978 = vrot.slane %v331, 1
      %v979 = vsel %vm942, %v976, %v978
      %v981 = vsel %vm481, %v945, 0
      %v984 = vsel %vm481, %v947, 0
      %v987 = vsel %vm481, %v949, 0
      %v990 = vsel %vm481, %v951, 0
      %v993 = vsel %vm481, %v953, 0
      %v996 = vsel %vm481, %v955, 0
      %v999 = vsel %vm481, %v957, 0
      %v1002 = vsel %vm481, %v959, 0
      %v1005 = vsel %vm481, %v961, 0
      %v1008 = vsel %vm481, %v963, 0
      %v1011 = vsel %vm481, %v965, 0
      %v1014 = vsel %vm481, %v967, 0
      %v1017 = vsel %vm481, %v969, 0
      %v1020 = vsel %vm481, %v971, 0
      %v1023 = vsel %vm481, %v973, 0
      %v1026 = vsel %vm481, %v975, 0
      %v1029 = vsel %vm481, %v977, 0
      %v1032 = vsel %vm481, %v979, 0
      %v1035 = vand.u32 %v938, %v539
      %1037 = vmatprep.subr.bf16.mxu0 0
      %1038 = vmatpush1.bf16.msra.mxu0 0
      %1039 = vmatprep.subr.bf16.mxu0 0
      %1040 = vmatpush1.bf16.msra.mxu0 0
      %1041 = vmatprep.subr.bf16.mxu0 0
      %1042 = vmatpush1.bf16.msra.mxu0 0
      %1043 = vmatprep.subr.bf16.mxu0 0
      %1044 = vmatpush1.bf16.msra.mxu0 0
      %1045 = vmatprep.subr.bf16.mxu0 0
      %1046 = vmatpush1.bf16.msra.mxu0 0
      %1047 = vmatprep.subr.bf16.mxu0 0
      %1048 = vmatpush1.bf16.msra.mxu0 0
      %1049 = vmatprep.subr.bf16.mxu0 0
      %1050 = vmatpush1.bf16.msra.mxu0 0
      %1051 = vmatprep.subr.bf16.mxu0 0
      %1052 = vmatpush1.bf16.msra.mxu0 %v1035
      %1053 = vmatprep.subr.bf16.mxu0 0
      %1054 = vmatpush2.bf16.msra.mxu0 0
      %1055 = vmatprep.subr.bf16.mxu0 0
      %1056 = vmatpush2.bf16.msra.mxu0 0
      %1057 = vmatprep.subr.bf16.mxu0 0
      %1058 = vmatpush2.bf16.msra.mxu0 0
      %1059 = vmatprep.subr.bf16.mxu0 0
      %1060 = vmatpush2.bf16.msra.mxu0 0
      %1061 = vmatprep.subr.bf16.mxu0 0
      %1062 = vmatpush2.bf16.msra.mxu0 0
      %1063 = vmatprep.subr.bf16.mxu0 0
      %1064 = vmatpush2.bf16.msra.mxu0 0
      %1065 = vmatprep.subr.bf16.mxu0 0
      %1066 = vmatpush2.bf16.msra.mxu0 0
      %1067 = vmatprep.subr.bf16.mxu0 0
      %1068 = vmatpush2.bf16.msra.mxu0 0
      %1069 = vmatprep.mubr.bf16.mxu0 0
      %1070 = vmatmul.mubr.bf16.gmra.mxu0 %v981
      %v1071 = vpop.f32.mrf.mxu0
      %v1072 = vadd.f32 0.0, %v1071
      %v1073 = vpop.f32.mrf.mxu0
      %v1074 = vpop.f32.mrf.mxu0
      %v1075 = vadd.f32 0.0, %v1074
      %v1076 = vpop.f32.mrf.mxu0
      %1077 = vmatprep.mubr.bf16.mxu0 0
      %1078 = vmatmul.mubr.bf16.gmra.mxu0 %v984
      %v1079 = vpop.f32.mrf.mxu0
      %v1080 = vadd.f32 0.0, %v1079
      %v1081 = vpop.f32.mrf.mxu0
      %v1082 = vpop.f32.mrf.mxu0
      %v1083 = vadd.f32 0.0, %v1082
      %v1084 = vpop.f32.mrf.mxu0
      %1085 = vmatprep.mubr.bf16.mxu0 0
      %1086 = vmatmul.mubr.bf16.gmra.mxu0 %v987
      %v1087 = vpop.f32.mrf.mxu0
      %v1088 = vadd.f32 0.0, %v1087
      %v1089 = vpop.f32.mrf.mxu0
      %v1090 = vpop.f32.mrf.mxu0
      %v1091 = vadd.f32 0.0, %v1090
      %v1092 = vpop.f32.mrf.mxu0
      %1093 = vmatprep.mubr.bf16.mxu0 0
      %1094 = vmatmul.mubr.bf16.gmra.mxu0 %v990
      %v1095 = vpop.f32.mrf.mxu0
      %v1096 = vadd.f32 0.0, %v1095
      %v1097 = vpop.f32.mrf.mxu0
      %v1098 = vpop.f32.mrf.mxu0
      %v1099 = vadd.f32 0.0, %v1098
      %v1100 = vpop.f32.mrf.mxu0
      %1101 = vmatprep.mubr.bf16.mxu0 0
      %1102 = vmatmul.mubr.bf16.gmra.mxu0 %v993
      %v1103 = vpop.f32.mrf.mxu0
      %v1104 = vadd.f32 0.0, %v1103
      %v1105 = vpop.f32.mrf.mxu0
      %v1106 = vpop.f32.mrf.mxu0
      %v1107 = vadd.f32 0.0, %v1106
      %v1108 = vpop.f32.mrf.mxu0
      %1109 = vmatprep.mubr.bf16.mxu0 0
      %1110 = vmatmul.mubr.bf16.gmra.mxu0 %v996
      %v1111 = vpop.f32.mrf.mxu0
      %v1112 = vadd.f32 0.0, %v1111
      %v1113 = vpop.f32.mrf.mxu0
      %v1114 = vpop.f32.mrf.mxu0
      %v1115 = vadd.f32 0.0, %v1114
      %v1116 = vpop.f32.mrf.mxu0
      %1117 = vmatprep.mubr.bf16.mxu0 0
      %1118 = vmatmul.mubr.bf16.gmra.mxu0 %v999
      %v1119 = vpop.f32.mrf.mxu0
      %v1120 = vadd.f32 0.0, %v1119
      %v1121 = vpop.f32.mrf.mxu0
      %v1122 = vpop.f32.mrf.mxu0
      %v1123 = vadd.f32 0.0, %v1122
      %v1124 = vpop.f32.mrf.mxu0
      %1125 = vmatprep.mubr.bf16.mxu0 0
      %1126 = vmatmul.mubr.bf16.gmra.mxu0 %v1002
      %v1127 = vpop.f32.mrf.mxu0
      %v1128 = vadd.f32 0.0, %v1127
      %v1129 = vpop.f32.mrf.mxu0
      %v1130 = vpop.f32.mrf.mxu0
      %v1131 = vadd.f32 0.0, %v1130
      %v1132 = vpop.f32.mrf.mxu0
      %1133 = vmatprep.mubr.bf16.mxu0 0
      %1134 = vmatmul.mubr.bf16.gmra.mxu0 %v1005
      %v1135 = vpop.f32.mrf.mxu0
      %v1136 = vadd.f32 0.0, %v1135
      %v1137 = vpop.f32.mrf.mxu0
      %v1138 = vpop.f32.mrf.mxu0
      %v1139 = vadd.f32 0.0, %v1138
      %v1140 = vpop.f32.mrf.mxu0
      %1141 = vmatprep.mubr.bf16.mxu0 0
      %1142 = vmatmul.mubr.bf16.gmra.mxu0 %v1008
      %v1143 = vpop.f32.mrf.mxu0
      %v1144 = vadd.f32 0.0, %v1143
      %v1145 = vpop.f32.mrf.mxu0
      %v1146 = vpop.f32.mrf.mxu0
      %v1147 = vadd.f32 0.0, %v1146
      %v1148 = vpop.f32.mrf.mxu0
      %1149 = vmatprep.mubr.bf16.mxu0 0
      %1150 = vmatmul.mubr.bf16.gmra.mxu0 %v1011
      %v1151 = vpop.f32.mrf.mxu0
      %v1152 = vadd.f32 0.0, %v1151
      %v1153 = vpop.f32.mrf.mxu0
      %v1154 = vpop.f32.mrf.mxu0
      %v1155 = vadd.f32 0.0, %v1154
      %v1156 = vpop.f32.mrf.mxu0
      %1157 = vmatprep.mubr.bf16.mxu0 0
      %1158 = vmatmul.mubr.bf16.gmra.mxu0 %v1014
      %v1159 = vpop.f32.mrf.mxu0
      %v1160 = vadd.f32 0.0, %v1159
      %v1161 = vpop.f32.mrf.mxu0
      %v1162 = vpop.f32.mrf.mxu0
      %v1163 = vadd.f32 0.0, %v1162
      %v1164 = vpop.f32.mrf.mxu0
      %1165 = vmatprep.mubr.bf16.mxu0 0
      %1166 = vmatmul.mubr.bf16.gmra.mxu0 %v1017
      %v1167 = vpop.f32.mrf.mxu0
      %v1168 = vadd.f32 0.0, %v1167
      %v1169 = vpop.f32.mrf.mxu0
      %v1170 = vpop.f32.mrf.mxu0
      %v1171 = vadd.f32 0.0, %v1170
      %v1172 = vpop.f32.mrf.mxu0
      %1173 = vmatprep.mubr.bf16.mxu0 0
      %1174 = vmatmul.mubr.bf16.gmra.mxu0 %v1020
      %v1175 = vpop.f32.mrf.mxu0
      %v1176 = vadd.f32 0.0, %v1175
      %v1177 = vpop.f32.mrf.mxu0
      %v1178 = vpop.f32.mrf.mxu0
      %v1179 = vadd.f32 0.0, %v1178
      %v1180 = vpop.f32.mrf.mxu0
      %1181 = vmatprep.mubr.bf16.mxu0 0
      %1182 = vmatmul.mubr.bf16.gmra.mxu0 %v1023
      %v1183 = vpop.f32.mrf.mxu0
      %v1184 = vadd.f32 0.0, %v1183
      %v1185 = vpop.f32.mrf.mxu0
      %v1186 = vpop.f32.mrf.mxu0
      %v1187 = vadd.f32 0.0, %v1186
      %v1188 = vpop.f32.mrf.mxu0
      %1189 = vmatprep.mubr.bf16.mxu0 0
      %1190 = vmatmul.mubr.bf16.gmra.mxu0 %v1026
      %v1191 = vpop.f32.mrf.mxu0
      %v1192 = vadd.f32 0.0, %v1191
      %v1193 = vpop.f32.mrf.mxu0
      %v1194 = vpop.f32.mrf.mxu0
      %v1195 = vadd.f32 0.0, %v1194
      %v1196 = vpop.f32.mrf.mxu0
      %1197 = vmatprep.mubr.bf16.mxu0 0
      %1198 = vmatmul.mubr.bf16.gmra.mxu0 %v1029
      %v1199 = vpop.f32.mrf.mxu0
      %v1200 = vadd.f32 0.0, %v1199
      %v1201 = vpop.f32.mrf.mxu0
      %v1202 = vpop.f32.mrf.mxu0
      %v1203 = vadd.f32 0.0, %v1202
      %v1204 = vpop.f32.mrf.mxu0
      %1205 = vmatprep.mubr.bf16.mxu0 0
      %1206 = vmatmul.mubr.bf16.gmra.mxu0 %v1032
      %v1207 = vpop.f32.mrf.mxu0
      %v1208 = vadd.f32 0.0, %v1207
      %v1209 = vpop.f32.mrf.mxu0
      %v1210 = vpop.f32.mrf.mxu0
      %v1211 = vadd.f32 0.0, %v1210
      %v1212 = vpop.f32.mrf.mxu0
      %1213 = vdwg.mxu0
      %v1214 = vadd.f32 %v794, %v1072
      %v1215 = vadd.f32 %v797, %v1075
      %v1216 = vadd.f32 %v802, %v1080
      %v1217 = vadd.f32 %v805, %v1083
      %v1218 = vadd.f32 %v810, %v1088
      %v1219 = vadd.f32 %v813, %v1091
      %v1220 = vadd.f32 %v818, %v1096
      %v1221 = vadd.f32 %v821, %v1099
      %v1222 = vadd.f32 %v826, %v1104
      %v1223 = vadd.f32 %v829, %v1107
      %v1224 = vadd.f32 %v834, %v1112
      %v1225 = vadd.f32 %v837, %v1115
      %v1226 = vadd.f32 %v842, %v1120
      %v1227 = vadd.f32 %v845, %v1123
      %v1228 = vadd.f32 %v850, %v1128
      %v1229 = vadd.f32 %v853, %v1131
      %v1230 = vadd.f32 %v858, %v1136
      %v1231 = vadd.f32 %v861, %v1139
      %v1232 = vadd.f32 %v866, %v1144
      %v1233 = vadd.f32 %v869, %v1147
      %v1234 = vadd.f32 %v874, %v1152
      %v1235 = vadd.f32 %v877, %v1155
      %v1236 = vadd.f32 %v882, %v1160
      %v1237 = vadd.f32 %v885, %v1163
      %v1238 = vadd.f32 %v890, %v1168
      %v1239 = vadd.f32 %v893, %v1171
      %v1240 = vadd.f32 %v898, %v1176
      %v1241 = vadd.f32 %v901, %v1179
      %v1242 = vadd.f32 %v906, %v1184
      %v1243 = vadd.f32 %v909, %v1187
      %v1244 = vadd.f32 %v914, %v1192
      %v1245 = vadd.f32 %v917, %v1195
      %v1246 = vadd.f32 %v922, %v1200
      %v1247 = vadd.f32 %v925, %v1203
      %v1248 = vadd.f32 %v930, %v1208
      %v1249 = vadd.f32 %v933, %v1211
      %v1250 = vld [vmem:[%s192 + $0x8] sm:$0xe]
      %v1251 = vld [vmem:[%s192 + $0xc] sm:$0xf]
      %v1252 = vld [vmem:[%s192 + $0x10] sm:$0xf]
      %v1253 = vld [vmem:[%s192 + $0x14] sm:$0xf]
      %v1254 = vld [vmem:[%s192 + $0x18] sm:$0xf]
      %v1255 = vld [vmem:[%s192 + $0x1c] sm:$0xf]
      %v1256 = vld [vmem:[%s192 + $0x20] sm:$0xf]
      %v1257 = vld [vmem:[%s192 + $0x24] sm:$0xf]
      %v1258 = vld [vmem:[%s192 + $0x28] sm:$0xf]
      %v1259 = vld [vmem:[%s192 + $0x2c] sm:$0xf]
      %v1260 = vld [vmem:[%s192 + $0x30] sm:$0xf]
      %v1261 = vld [vmem:[%s192 + $0x34] sm:$0xf]
      %v1262 = vld [vmem:[%s192 + $0x38] sm:$0xf]
      %v1263 = vld [vmem:[%s192 + $0x3c] sm:$0xf]
      %v1264 = vld [vmem:[%s192 + $0x40] sm:$0xf]
      %v1265 = vld [vmem:[%s192 + $0x44] sm:$0xf]
      %v1266 = vld [vmem:[%s192 + $0x48] sm:$0xf]
      %v1267 = vld [vmem:[%s192 + $0x4c] sm:$0xf]
      %v1268 = vld [vmem:[%s192 + $0x50] sm:$0xf]
      %v1269 = vld [vmem:[%s192 + $0x54] sm:$0xf]
      %v1270 = vld [vmem:[%s192 + $0x58] sm:$0xf]
      %v1271 = vld [vmem:[%s192 + $0x5c] sm:$0xf]
      %v1272 = vld [vmem:[%s192 + $0x60] sm:$0xf]
      %v1273 = vld [vmem:[%s192 + $0x64] sm:$0xf]
      %v1274 = vld [vmem:[%s192 + $0x68] sm:$0xf]
      %v1275 = vld [vmem:[%s192 + $0x6c] sm:$0xf]
      %v1276 = vld [vmem:[%s192 + $0x70] sm:$0xf]
      %v1277 = vld [vmem:[%s192 + $0x74] sm:$0xf]
      %v1278 = vld [vmem:[%s192 + $0x78] sm:$0xf]
      %v1279 = vld [vmem:[%s192 + $0x7c] sm:$0xf]
      %v1280 = vld [vmem:[%s192 + $0x80] sm:$0xf]
      %v1281 = vld [vmem:[%s192 + $0x84] sm:$0xf]
      %v1282 = vld [vmem:[%s192 + $0x88] sm:$0xf]
      %v1283 = vld [vmem:[%s192 + $0x8c] sm:$0xf]
      %v1284 = vld [vmem:[%s192 + $0x90] sm:$0xf]
      %v1285 = vld [vmem:[%s192 + $0x94] sm:$0xf]
      %v1286 = vld [vmem:[%s192 + $0x98] sm:$0x1]
      %s1287 = scalar_lea.vmem %s1, 6
      %v1288 = vld [vmem:[%s1287] sm:$0x3]
      %v1326 = vunpack.c.l.b16 %v1250
      %v1327 = vunpack.c.l.b16 %v1251
      %v1328 = vunpack.c.l.b16 %v1252
      %v1329 = vunpack.c.l.b16 %v1253
      %v1330 = vunpack.c.l.b16 %v1254
      %v1331 = vunpack.c.l.b16 %v1255
      %v1332 = vunpack.c.l.b16 %v1256
      %v1333 = vunpack.c.l.b16 %v1257
      %v1334 = vunpack.c.l.b16 %v1258
      %v1335 = vunpack.c.l.b16 %v1259
      %v1336 = vunpack.c.l.b16 %v1260
      %v1337 = vunpack.c.l.b16 %v1261
      %v1338 = vunpack.c.l.b16 %v1262
      %v1339 = vunpack.c.l.b16 %v1263
      %v1340 = vunpack.c.l.b16 %v1264
      %v1341 = vunpack.c.l.b16 %v1265
      %v1342 = vunpack.c.l.b16 %v1266
      %v1343 = vunpack.c.l.b16 %v1267
      %v1344 = vunpack.c.l.b16 %v1268
      %v1345 = vunpack.c.l.b16 %v1269
      %v1346 = vunpack.c.l.b16 %v1270
      %v1347 = vunpack.c.l.b16 %v1271
      %v1348 = vunpack.c.l.b16 %v1272
      %v1349 = vunpack.c.l.b16 %v1273
      %v1350 = vunpack.c.l.b16 %v1274
      %v1351 = vunpack.c.l.b16 %v1275
      %v1352 = vunpack.c.l.b16 %v1276
      %v1353 = vunpack.c.l.b16 %v1277
      %v1354 = vunpack.c.l.b16 %v1278
      %v1355 = vunpack.c.l.b16 %v1279
      %v1356 = vunpack.c.l.b16 %v1280
      %v1357 = vunpack.c.l.b16 %v1281
      %v1358 = vunpack.c.l.b16 %v1282
      %v1359 = vunpack.c.l.b16 %v1283
      %v1360 = vunpack.c.l.b16 %v1284
      %v1361 = vunpack.c.l.b16 %v1285
      %v1362 = vunpack.c.l.b16 %v1286
      %v1363 = vpack.c.b16 %v1327, %v1326
      %v1364 = vpack.c.b16 %v1329, %v1328
      %v1365 = vpack.c.b16 %v1331, %v1330
      %v1366 = vpack.c.b16 %v1333, %v1332
      %v1367 = vpack.c.b16 %v1335, %v1334
      %v1368 = vpack.c.b16 %v1337, %v1336
      %v1369 = vpack.c.b16 %v1339, %v1338
      %v1370 = vpack.c.b16 %v1341, %v1340
      %v1371 = vpack.c.b16 %v1343, %v1342
      %v1372 = vpack.c.b16 %v1345, %v1344
      %v1373 = vpack.c.b16 %v1347, %v1346
      %v1374 = vpack.c.b16 %v1349, %v1348
      %v1375 = vpack.c.b16 %v1351, %v1350
      %v1376 = vpack.c.b16 %v1353, %v1352
      %v1377 = vpack.c.b16 %v1355, %v1354
      %v1378 = vpack.c.b16 %v1357, %v1356
      %v1379 = vpack.c.b16 %v1359, %v1358
      %v1380 = vpack.c.b16 %v1361, %v1360
      %v1381 = vpack.c.b16 %v1362, %v1362
      %v1382 = vrot.slane %v1363, 1
      %v1383 = vrot.slane %v1364, 1
      %v1384 = vsel %vm942, %v1382, %v1383
      %v1385 = vrot.slane %v1365, 1
      %v1386 = vsel %vm942, %v1383, %v1385
      %v1387 = vrot.slane %v1366, 1
      %v1388 = vsel %vm942, %v1385, %v1387
      %v1389 = vrot.slane %v1367, 1
      %v1390 = vsel %vm942, %v1387, %v1389
      %v1391 = vrot.slane %v1368, 1
      %v1392 = vsel %vm942, %v1389, %v1391
      %v1393 = vrot.slane %v1369, 1
      %v1394 = vsel %vm942, %v1391, %v1393
      %v1395 = vrot.slane %v1370, 1
      %v1396 = vsel %vm942, %v1393, %v1395
      %v1397 = vrot.slane %v1371, 1
      %v1398 = vsel %vm942, %v1395, %v1397
      %v1399 = vrot.slane %v1372, 1
      %v1400 = vsel %vm942, %v1397, %v1399
      %v1401 = vrot.slane %v1373, 1
      %v1402 = vsel %vm942, %v1399, %v1401
      %v1403 = vrot.slane %v1374, 1
      %v1404 = vsel %vm942, %v1401, %v1403
      %v1405 = vrot.slane %v1375, 1
      %v1406 = vsel %vm942, %v1403, %v1405
      %v1407 = vrot.slane %v1376, 1
      %v1408 = vsel %vm942, %v1405, %v1407
      %v1409 = vrot.slane %v1377, 1
      %v1410 = vsel %vm942, %v1407, %v1409
      %v1411 = vrot.slane %v1378, 1
      %v1412 = vsel %vm942, %v1409, %v1411
      %v1413 = vrot.slane %v1379, 1
      %v1414 = vsel %vm942, %v1411, %v1413
      %v1415 = vrot.slane %v1380, 1
      %v1416 = vsel %vm942, %v1413, %v1415
      %v1417 = vrot.slane %v1381, 1
      %v1418 = vsel %vm942, %v1415, %v1417
      %v1420 = vsel %vm481, %v1384, 0
      %v1423 = vsel %vm481, %v1386, 0
      %v1426 = vsel %vm481, %v1388, 0
      %v1429 = vsel %vm481, %v1390, 0
      %v1432 = vsel %vm481, %v1392, 0
      %v1435 = vsel %vm481, %v1394, 0
      %v1438 = vsel %vm481, %v1396, 0
      %v1441 = vsel %vm481, %v1398, 0
      %v1444 = vsel %vm481, %v1400, 0
      %v1447 = vsel %vm481, %v1402, 0
      %v1450 = vsel %vm481, %v1404, 0
      %v1453 = vsel %vm481, %v1406, 0
      %v1456 = vsel %vm481, %v1408, 0
      %v1459 = vsel %vm481, %v1410, 0
      %v1462 = vsel %vm481, %v1412, 0
      %v1465 = vsel %vm481, %v1414, 0
      %v1468 = vsel %vm481, %v1416, 0
      %v1471 = vsel %vm481, %v1418, 0
      %v1474 = vand.u32 %v1288, %v539
      %1476 = vmatprep.subr.bf16.mxu0 0
      %1477 = vmatpush1.bf16.msra.mxu0 0
      %1478 = vmatprep.subr.bf16.mxu0 0
      %1479 = vmatpush1.bf16.msra.mxu0 0
      %1480 = vmatprep.subr.bf16.mxu0 0
      %1481 = vmatpush1.bf16.msra.mxu0 0
      %1482 = vmatprep.subr.bf16.mxu0 0
      %1483 = vmatpush1.bf16.msra.mxu0 0
      %1484 = vmatprep.subr.bf16.mxu0 0
      %1485 = vmatpush1.bf16.msra.mxu0 0
      %1486 = vmatprep.subr.bf16.mxu0 0
      %1487 = vmatpush1.bf16.msra.mxu0 0
      %1488 = vmatprep.subr.bf16.mxu0 0
      %1489 = vmatpush1.bf16.msra.mxu0 0
      %1490 = vmatprep.subr.bf16.mxu0 0
      %1491 = vmatpush1.bf16.msra.mxu0 %v1474
      %1492 = vmatprep.subr.bf16.mxu0 0
      %1493 = vmatpush2.bf16.msra.mxu0 0
      %1494 = vmatprep.subr.bf16.mxu0 0
      %1495 = vmatpush2.bf16.msra.mxu0 0
      %1496 = vmatprep.subr.bf16.mxu0 0
      %1497 = vmatpush2.bf16.msra.mxu0 0
      %1498 = vmatprep.subr.bf16.mxu0 0
      %1499 = vmatpush2.bf16.msra.mxu0 0
      %1500 = vmatprep.subr.bf16.mxu0 0
      %1501 = vmatpush2.bf16.msra.mxu0 0
      %1502 = vmatprep.subr.bf16.mxu0 0
      %1503 = vmatpush2.bf16.msra.mxu0 0
      %1504 = vmatprep.subr.bf16.mxu0 0
      %1505 = vmatpush2.bf16.msra.mxu0 0
      %1506 = vmatprep.subr.bf16.mxu0 0
      %1507 = vmatpush2.bf16.msra.mxu0 0
      %1508 = vmatprep.mubr.bf16.mxu0 0
      %1509 = vmatmul.mubr.bf16.gmra.mxu0 %v1420
      %v1510 = vpop.f32.mrf.mxu0
      %v1511 = vadd.f32 0.0, %v1510
      %v1512 = vpop.f32.mrf.mxu0
      %v1513 = vpop.f32.mrf.mxu0
      %v1514 = vadd.f32 0.0, %v1513
      %v1515 = vpop.f32.mrf.mxu0
      %1516 = vmatprep.mubr.bf16.mxu0 0
      %1517 = vmatmul.mubr.bf16.gmra.mxu0 %v1423
      %v1518 = vpop.f32.mrf.mxu0
      %v1519 = vadd.f32 0.0, %v1518
      %v1520 = vpop.f32.mrf.mxu0
      %v1521 = vpop.f32.mrf.mxu0
      %v1522 = vadd.f32 0.0, %v1521
      %v1523 = vpop.f32.mrf.mxu0
      %1524 = vmatprep.mubr.bf16.mxu0 0
      %1525 = vmatmul.mubr.bf16.gmra.mxu0 %v1426
      %v1526 = vpop.f32.mrf.mxu0
      %v1527 = vadd.f32 0.0, %v1526
      %v1528 = vpop.f32.mrf.mxu0
      %v1529 = vpop.f32.mrf.mxu0
      %v1530 = vadd.f32 0.0, %v1529
      %v1531 = vpop.f32.mrf.mxu0
      %1532 = vmatprep.mubr.bf16.mxu0 0
      %1533 = vmatmul.mubr.bf16.gmra.mxu0 %v1429
      %v1534 = vpop.f32.mrf.mxu0
      %v1535 = vadd.f32 0.0, %v1534
      %v1536 = vpop.f32.mrf.mxu0
      %v1537 = vpop.f32.mrf.mxu0
      %v1538 = vadd.f32 0.0, %v1537
      %v1539 = vpop.f32.mrf.mxu0
      %1540 = vmatprep.mubr.bf16.mxu0 0
      %1541 = vmatmul.mubr.bf16.gmra.mxu0 %v1432
      %v1542 = vpop.f32.mrf.mxu0
      %v1543 = vadd.f32 0.0, %v1542
      %v1544 = vpop.f32.mrf.mxu0
      %v1545 = vpop.f32.mrf.mxu0
      %v1546 = vadd.f32 0.0, %v1545
      %v1547 = vpop.f32.mrf.mxu0
      %1548 = vmatprep.mubr.bf16.mxu0 0
      %1549 = vmatmul.mubr.bf16.gmra.mxu0 %v1435
      %v1550 = vpop.f32.mrf.mxu0
      %v1551 = vadd.f32 0.0, %v1550
      %v1552 = vpop.f32.mrf.mxu0
      %v1553 = vpop.f32.mrf.mxu0
      %v1554 = vadd.f32 0.0, %v1553
      %v1555 = vpop.f32.mrf.mxu0
      %1556 = vmatprep.mubr.bf16.mxu0 0
      %1557 = vmatmul.mubr.bf16.gmra.mxu0 %v1438
      %v1558 = vpop.f32.mrf.mxu0
      %v1559 = vadd.f32 0.0, %v1558
      %v1560 = vpop.f32.mrf.mxu0
      %v1561 = vpop.f32.mrf.mxu0
      %v1562 = vadd.f32 0.0, %v1561
      %v1563 = vpop.f32.mrf.mxu0
      %1564 = vmatprep.mubr.bf16.mxu0 0
      %1565 = vmatmul.mubr.bf16.gmra.mxu0 %v1441
      %v1566 = vpop.f32.mrf.mxu0
      %v1567 = vadd.f32 0.0, %v1566
      %v1568 = vpop.f32.mrf.mxu0
      %v1569 = vpop.f32.mrf.mxu0
      %v1570 = vadd.f32 0.0, %v1569
      %v1571 = vpop.f32.mrf.mxu0
      %1572 = vmatprep.mubr.bf16.mxu0 0
      %1573 = vmatmul.mubr.bf16.gmra.mxu0 %v1444
      %v1574 = vpop.f32.mrf.mxu0
      %v1575 = vadd.f32 0.0, %v1574
      %v1576 = vpop.f32.mrf.mxu0
      %v1577 = vpop.f32.mrf.mxu0
      %v1578 = vadd.f32 0.0, %v1577
      %v1579 = vpop.f32.mrf.mxu0
      %1580 = vmatprep.mubr.bf16.mxu0 0
      %1581 = vmatmul.mubr.bf16.gmra.mxu0 %v1447
      %v1582 = vpop.f32.mrf.mxu0
      %v1583 = vadd.f32 0.0, %v1582
      %v1584 = vpop.f32.mrf.mxu0
      %v1585 = vpop.f32.mrf.mxu0
      %v1586 = vadd.f32 0.0, %v1585
      %v1587 = vpop.f32.mrf.mxu0
      %1588 = vmatprep.mubr.bf16.mxu0 0
      %1589 = vmatmul.mubr.bf16.gmra.mxu0 %v1450
      %v1590 = vpop.f32.mrf.mxu0
      %v1591 = vadd.f32 0.0, %v1590
      %v1592 = vpop.f32.mrf.mxu0
      %v1593 = vpop.f32.mrf.mxu0
      %v1594 = vadd.f32 0.0, %v1593
      %v1595 = vpop.f32.mrf.mxu0
      %1596 = vmatprep.mubr.bf16.mxu0 0
      %1597 = vmatmul.mubr.bf16.gmra.mxu0 %v1453
      %v1598 = vpop.f32.mrf.mxu0
      %v1599 = vadd.f32 0.0, %v1598
      %v1600 = vpop.f32.mrf.mxu0
      %v1601 = vpop.f32.mrf.mxu0
      %v1602 = vadd.f32 0.0, %v1601
      %v1603 = vpop.f32.mrf.mxu0
      %1604 = vmatprep.mubr.bf16.mxu0 0
      %1605 = vmatmul.mubr.bf16.gmra.mxu0 %v1456
      %v1606 = vpop.f32.mrf.mxu0
      %v1607 = vadd.f32 0.0, %v1606
      %v1608 = vpop.f32.mrf.mxu0
      %v1609 = vpop.f32.mrf.mxu0
      %v1610 = vadd.f32 0.0, %v1609
      %v1611 = vpop.f32.mrf.mxu0
      %1612 = vmatprep.mubr.bf16.mxu0 0
      %1613 = vmatmul.mubr.bf16.gmra.mxu0 %v1459
      %v1614 = vpop.f32.mrf.mxu0
      %v1615 = vadd.f32 0.0, %v1614
      %v1616 = vpop.f32.mrf.mxu0
      %v1617 = vpop.f32.mrf.mxu0
      %v1618 = vadd.f32 0.0, %v1617
      %v1619 = vpop.f32.mrf.mxu0
      %1620 = vmatprep.mubr.bf16.mxu0 0
      %1621 = vmatmul.mubr.bf16.gmra.mxu0 %v1462
      %v1622 = vpop.f32.mrf.mxu0
      %v1623 = vadd.f32 0.0, %v1622
      %v1624 = vpop.f32.mrf.mxu0
      %v1625 = vpop.f32.mrf.mxu0
      %v1626 = vadd.f32 0.0, %v1625
      %v1627 = vpop.f32.mrf.mxu0
      %1628 = vmatprep.mubr.bf16.mxu0 0
      %1629 = vmatmul.mubr.bf16.gmra.mxu0 %v1465
      %v1630 = vpop.f32.mrf.mxu0
      %v1631 = vadd.f32 0.0, %v1630
      %v1632 = vpop.f32.mrf.mxu0
      %v1633 = vpop.f32.mrf.mxu0
      %v1634 = vadd.f32 0.0, %v1633
      %v1635 = vpop.f32.mrf.mxu0
      %1636 = vmatprep.mubr.bf16.mxu0 0
      %1637 = vmatmul.mubr.bf16.gmra.mxu0 %v1468
      %v1638 = vpop.f32.mrf.mxu0
      %v1639 = vadd.f32 0.0, %v1638
      %v1640 = vpop.f32.mrf.mxu0
      %v1641 = vpop.f32.mrf.mxu0
      %v1642 = vadd.f32 0.0, %v1641
      %v1643 = vpop.f32.mrf.mxu0
      %1644 = vmatprep.mubr.bf16.mxu0 0
      %1645 = vmatmul.mubr.bf16.gmra.mxu0 %v1471
      %v1646 = vpop.f32.mrf.mxu0
      %v1647 = vadd.f32 0.0, %v1646
      %v1648 = vpop.f32.mrf.mxu0
      %v1649 = vpop.f32.mrf.mxu0
      %v1650 = vadd.f32 0.0, %v1649
      %v1651 = vpop.f32.mrf.mxu0
      %1652 = vdwg.mxu0
      %v1653 = vadd.f32 %v1214, %v1511
      %v1654 = vadd.f32 %v1215, %v1514
      %v1655 = vadd.f32 %v1216, %v1519
      %v1656 = vadd.f32 %v1217, %v1522
      %v1657 = vadd.f32 %v1218, %v1527
      %v1658 = vadd.f32 %v1219, %v1530
      %v1659 = vadd.f32 %v1220, %v1535
      %v1660 = vadd.f32 %v1221, %v1538
      %v1661 = vadd.f32 %v1222, %v1543
      %v1662 = vadd.f32 %v1223, %v1546
      %v1663 = vadd.f32 %v1224, %v1551
      %v1664 = vadd.f32 %v1225, %v1554
      %v1665 = vadd.f32 %v1226, %v1559
      %v1666 = vadd.f32 %v1227, %v1562
      %v1667 = vadd.f32 %v1228, %v1567
      %v1668 = vadd.f32 %v1229, %v1570
      %v1669 = vadd.f32 %v1230, %v1575
      %v1670 = vadd.f32 %v1231, %v1578
      %v1671 = vadd.f32 %v1232, %v1583
      %v1672 = vadd.f32 %v1233, %v1586
      %v1673 = vadd.f32 %v1234, %v1591
      %v1674 = vadd.f32 %v1235, %v1594
      %v1675 = vadd.f32 %v1236, %v1599
      %v1676 = vadd.f32 %v1237, %v1602
      %v1677 = vadd.f32 %v1238, %v1607
      %v1678 = vadd.f32 %v1239, %v1610
      %v1679 = vadd.f32 %v1240, %v1615
      %v1680 = vadd.f32 %v1241, %v1618
      %v1681 = vadd.f32 %v1242, %v1623
      %v1682 = vadd.f32 %v1243, %v1626
      %v1683 = vadd.f32 %v1244, %v1631
      %v1684 = vadd.f32 %v1245, %v1634
      %v1685 = vadd.f32 %v1246, %v1639
      %v1686 = vadd.f32 %v1247, %v1642
      %v1687 = vadd.f32 %v1248, %v1647
      %v1688 = vadd.f32 %v1249, %v1650
      %v1689 = vld [vmem:[%s192 + $0x98] sm:$0x3]
      %s1690 = scalar_lea.vmem %s1, 8
      %v1691 = vld [vmem:[%s1690] sm:$0x3]
      %v1693 = vunpack.c.l.b16 %v1689
      %v1694 = vpack.c.b16 %v1693, %v1693
      %vm1695 = vsmask.f32 6400
      %v1697 = vshrl.u32 %v1363, 16
      %v1699 = vrot.slane %v1697, 1
      %v1700 = vshll.u32 %v1363, 16
      %v1702 = vrot.slane %v1700, 2
      %v1703 = vor.u32 %v1699, %v1702
      %v1705 = vshrl.u32 %v1364, 16
      %v1707 = vrot.slane %v1705, 1
      %v1708 = vshll.u32 %v1364, 16
      %v1710 = vrot.slane %v1708, 2
      %v1711 = vor.u32 %v1707, %v1710
      %v1712 = vsel %vm1695, %v1703, %v1711
      %v1714 = vshrl.u32 %v1365, 16
      %v1716 = vrot.slane %v1714, 1
      %v1717 = vshll.u32 %v1365, 16
      %v1719 = vrot.slane %v1717, 2
      %v1720 = vor.u32 %v1716, %v1719
      %v1721 = vsel %vm1695, %v1711, %v1720
      %v1723 = vshrl.u32 %v1366, 16
      %v1725 = vrot.slane %v1723, 1
      %v1726 = vshll.u32 %v1366, 16
      %v1728 = vrot.slane %v1726, 2
      %v1729 = vor.u32 %v1725, %v1728
      %v1730 = vsel %vm1695, %v1720, %v1729
      %v1732 = vshrl.u32 %v1367, 16
      %v1734 = vrot.slane %v1732, 1
      %v1735 = vshll.u32 %v1367, 16
      %v1737 = vrot.slane %v1735, 2
      %v1738 = vor.u32 %v1734, %v1737
      %v1739 = vsel %vm1695, %v1729, %v1738
      %v1741 = vshrl.u32 %v1368, 16
      %v1743 = vrot.slane %v1741, 1
      %v1744 = vshll.u32 %v1368, 16
      %v1746 = vrot.slane %v1744, 2
      %v1747 = vor.u32 %v1743, %v1746
      %v1748 = vsel %vm1695, %v1738, %v1747
      %v1750 = vshrl.u32 %v1369, 16
      %v1752 = vrot.slane %v1750, 1
      %v1753 = vshll.u32 %v1369, 16
      %v1755 = vrot.slane %v1753, 2
      %v1756 = vor.u32 %v1752, %v1755
      %v1757 = vsel %vm1695, %v1747, %v1756
      %v1759 = vshrl.u32 %v1370, 16
      %v1761 = vrot.slane %v1759, 1
      %v1762 = vshll.u32 %v1370, 16
      %v1764 = vrot.slane %v1762, 2
      %v1765 = vor.u32 %v1761, %v1764
      %v1766 = vsel %vm1695, %v1756, %v1765
      %v1768 = vshrl.u32 %v1371, 16
      %v1770 = vrot.slane %v1768, 1
      %v1771 = vshll.u32 %v1371, 16
      %v1773 = vrot.slane %v1771, 2
      %v1774 = vor.u32 %v1770, %v1773
      %v1775 = vsel %vm1695, %v1765, %v1774
      %v1777 = vshrl.u32 %v1372, 16
      %v1779 = vrot.slane %v1777, 1
      %v1780 = vshll.u32 %v1372, 16
      %v1782 = vrot.slane %v1780, 2
      %v1783 = vor.u32 %v1779, %v1782
      %v1784 = vsel %vm1695, %v1774, %v1783
      %v1786 = vshrl.u32 %v1373, 16
      %v1788 = vrot.slane %v1786, 1
      %v1789 = vshll.u32 %v1373, 16
      %v1791 = vrot.slane %v1789, 2
      %v1792 = vor.u32 %v1788, %v1791
      %v1793 = vsel %vm1695, %v1783, %v1792
      %v1795 = vshrl.u32 %v1374, 16
      %v1797 = vrot.slane %v1795, 1
      %v1798 = vshll.u32 %v1374, 16
      %v1800 = vrot.slane %v1798, 2
      %v1801 = vor.u32 %v1797, %v1800
      %v1802 = vsel %vm1695, %v1792, %v1801
      %v1804 = vshrl.u32 %v1375, 16
      %v1806 = vrot.slane %v1804, 1
      %v1807 = vshll.u32 %v1375, 16
      %v1809 = vrot.slane %v1807, 2
      %v1810 = vor.u32 %v1806, %v1809
      %v1811 = vsel %vm1695, %v1801, %v1810
      %v1813 = vshrl.u32 %v1376, 16
      %v1815 = vrot.slane %v1813, 1
      %v1816 = vshll.u32 %v1376, 16
      %v1818 = vrot.slane %v1816, 2
      %v1819 = vor.u32 %v1815, %v1818
      %v1820 = vsel %vm1695, %v1810, %v1819
      %v1822 = vshrl.u32 %v1377, 16
      %v1824 = vrot.slane %v1822, 1
      %v1825 = vshll.u32 %v1377, 16
      %v1827 = vrot.slane %v1825, 2
      %v1828 = vor.u32 %v1824, %v1827
      %v1829 = vsel %vm1695, %v1819, %v1828
      %v1831 = vshrl.u32 %v1378, 16
      %v1833 = vrot.slane %v1831, 1
      %v1834 = vshll.u32 %v1378, 16
      %v1836 = vrot.slane %v1834, 2
      %v1837 = vor.u32 %v1833, %v1836
      %v1838 = vsel %vm1695, %v1828, %v1837
      %v1840 = vshrl.u32 %v1379, 16
      %v1842 = vrot.slane %v1840, 1
      %v1843 = vshll.u32 %v1379, 16
      %v1845 = vrot.slane %v1843, 2
      %v1846 = vor.u32 %v1842, %v1845
      %v1847 = vsel %vm1695, %v1837, %v1846
      %v1849 = vshrl.u32 %v1380, 16
      %v1851 = vrot.slane %v1849, 1
      %v1852 = vshll.u32 %v1380, 16
      %v1854 = vrot.slane %v1852, 2
      %v1855 = vor.u32 %v1851, %v1854
      %v1856 = vsel %vm1695, %v1846, %v1855
      %v1858 = vshrl.u32 %v1694, 16
      %v1860 = vrot.slane %v1858, 1
      %v1861 = vshll.u32 %v1694, 16
      %v1863 = vrot.slane %v1861, 2
      %v1864 = vor.u32 %v1860, %v1863
      %v1865 = vsel %vm1695, %v1855, %v1864
      %v1867 = vsel %vm481, %v1712, 0
      %v1870 = vsel %vm481, %v1721, 0
      %v1873 = vsel %vm481, %v1730, 0
      %v1876 = vsel %vm481, %v1739, 0
      %v1879 = vsel %vm481, %v1748, 0
      %v1882 = vsel %vm481, %v1757, 0
      %v1885 = vsel %vm481, %v1766, 0
      %v1888 = vsel %vm481, %v1775, 0
      %v1891 = vsel %vm481, %v1784, 0
      %v1894 = vsel %vm481, %v1793, 0
      %v1897 = vsel %vm481, %v1802, 0
      %v1900 = vsel %vm481, %v1811, 0
      %v1903 = vsel %vm481, %v1820, 0
      %v1906 = vsel %vm481, %v1829, 0
      %v1909 = vsel %vm481, %v1838, 0
      %v1912 = vsel %vm481, %v1847, 0
      %v1915 = vsel %vm481, %v1856, 0
      %v1918 = vsel %vm481, %v1865, 0
      %v1921 = vand.u32 %v1691, %v539
      %1923 = vmatprep.subr.bf16.mxu0 0
      %1924 = vmatpush1.bf16.msra.mxu0 0
      %1925 = vmatprep.subr.bf16.mxu0 0
      %1926 = vmatpush1.bf16.msra.mxu0 0
      %1927 = vmatprep.subr.bf16.mxu0 0
      %1928 = vmatpush1.bf16.msra.mxu0 0
      %1929 = vmatprep.subr.bf16.mxu0 0
      %1930 = vmatpush1.bf16.msra.mxu0 0
      %1931 = vmatprep.subr.bf16.mxu0 0
      %1932 = vmatpush1.bf16.msra.mxu0 0
      %1933 = vmatprep.subr.bf16.mxu0 0
      %1934 = vmatpush1.bf16.msra.mxu0 0
      %1935 = vmatprep.subr.bf16.mxu0 0
      %1936 = vmatpush1.bf16.msra.mxu0 0
      %1937 = vmatprep.subr.bf16.mxu0 0
      %1938 = vmatpush1.bf16.msra.mxu0 %v1921
      %1939 = vmatprep.subr.bf16.mxu0 0
      %1940 = vmatpush2.bf16.msra.mxu0 0
      %1941 = vmatprep.subr.bf16.mxu0 0
      %1942 = vmatpush2.bf16.msra.mxu0 0
      %1943 = vmatprep.subr.bf16.mxu0 0
      %1944 = vmatpush2.bf16.msra.mxu0 0
      %1945 = vmatprep.subr.bf16.mxu0 0
      %1946 = vmatpush2.bf16.msra.mxu0 0
      %1947 = vmatprep.subr.bf16.mxu0 0
      %1948 = vmatpush2.bf16.msra.mxu0 0
      %1949 = vmatprep.subr.bf16.mxu0 0
      %1950 = vmatpush2.bf16.msra.mxu0 0
      %1951 = vmatprep.subr.bf16.mxu0 0
      %1952 = vmatpush2.bf16.msra.mxu0 0
      %1953 = vmatprep.subr.bf16.mxu0 0
      %1954 = vmatpush2.bf16.msra.mxu0 0
      %1955 = vmatprep.mubr.bf16.mxu0 0
      %1956 = vmatmul.mubr.bf16.gmra.mxu0 %v1867
      %v1957 = vpop.f32.mrf.mxu0
      %v1958 = vadd.f32 0.0, %v1957
      %v1959 = vpop.f32.mrf.mxu0
      %v1960 = vpop.f32.mrf.mxu0
      %v1961 = vadd.f32 0.0, %v1960
      %v1962 = vpop.f32.mrf.mxu0
      %1963 = vmatprep.mubr.bf16.mxu0 0
      %1964 = vmatmul.mubr.bf16.gmra.mxu0 %v1870
      %v1965 = vpop.f32.mrf.mxu0
      %v1966 = vadd.f32 0.0, %v1965
      %v1967 = vpop.f32.mrf.mxu0
      %v1968 = vpop.f32.mrf.mxu0
      %v1969 = vadd.f32 0.0, %v1968
      %v1970 = vpop.f32.mrf.mxu0
      %1971 = vmatprep.mubr.bf16.mxu0 0
      %1972 = vmatmul.mubr.bf16.gmra.mxu0 %v1873
      %v1973 = vpop.f32.mrf.mxu0
      %v1974 = vadd.f32 0.0, %v1973
      %v1975 = vpop.f32.mrf.mxu0
      %v1976 = vpop.f32.mrf.mxu0
      %v1977 = vadd.f32 0.0, %v1976
      %v1978 = vpop.f32.mrf.mxu0
      %1979 = vmatprep.mubr.bf16.mxu0 0
      %1980 = vmatmul.mubr.bf16.gmra.mxu0 %v1876
      %v1981 = vpop.f32.mrf.mxu0
      %v1982 = vadd.f32 0.0, %v1981
      %v1983 = vpop.f32.mrf.mxu0
      %v1984 = vpop.f32.mrf.mxu0
      %v1985 = vadd.f32 0.0, %v1984
      %v1986 = vpop.f32.mrf.mxu0
      %1987 = vmatprep.mubr.bf16.mxu0 0
      %1988 = vmatmul.mubr.bf16.gmra.mxu0 %v1879
      %v1989 = vpop.f32.mrf.mxu0
      %v1990 = vadd.f32 0.0, %v1989
      %v1991 = vpop.f32.mrf.mxu0
      %v1992 = vpop.f32.mrf.mxu0
      %v1993 = vadd.f32 0.0, %v1992
      %v1994 = vpop.f32.mrf.mxu0
      %1995 = vmatprep.mubr.bf16.mxu0 0
      %1996 = vmatmul.mubr.bf16.gmra.mxu0 %v1882
      %v1997 = vpop.f32.mrf.mxu0
      %v1998 = vadd.f32 0.0, %v1997
      %v1999 = vpop.f32.mrf.mxu0
      %v2000 = vpop.f32.mrf.mxu0
      %v2001 = vadd.f32 0.0, %v2000
      %v2002 = vpop.f32.mrf.mxu0
      %2003 = vmatprep.mubr.bf16.mxu0 0
      %2004 = vmatmul.mubr.bf16.gmra.mxu0 %v1885
      %v2005 = vpop.f32.mrf.mxu0
      %v2006 = vadd.f32 0.0, %v2005
      %v2007 = vpop.f32.mrf.mxu0
      %v2008 = vpop.f32.mrf.mxu0
      %v2009 = vadd.f32 0.0, %v2008
      %v2010 = vpop.f32.mrf.mxu0
      %2011 = vmatprep.mubr.bf16.mxu0 0
      %2012 = vmatmul.mubr.bf16.gmra.mxu0 %v1888
      %v2013 = vpop.f32.mrf.mxu0
      %v2014 = vadd.f32 0.0, %v2013
      %v2015 = vpop.f32.mrf.mxu0
      %v2016 = vpop.f32.mrf.mxu0
      %v2017 = vadd.f32 0.0, %v2016
      %v2018 = vpop.f32.mrf.mxu0
      %2019 = vmatprep.mubr.bf16.mxu0 0
      %2020 = vmatmul.mubr.bf16.gmra.mxu0 %v1891
      %v2021 = vpop.f32.mrf.mxu0
      %v2022 = vadd.f32 0.0, %v2021
      %v2023 = vpop.f32.mrf.mxu0
      %v2024 = vpop.f32.mrf.mxu0
      %v2025 = vadd.f32 0.0, %v2024
      %v2026 = vpop.f32.mrf.mxu0
      %2027 = vmatprep.mubr.bf16.mxu0 0
      %2028 = vmatmul.mubr.bf16.gmra.mxu0 %v1894
      %v2029 = vpop.f32.mrf.mxu0
      %v2030 = vadd.f32 0.0, %v2029
      %v2031 = vpop.f32.mrf.mxu0
      %v2032 = vpop.f32.mrf.mxu0
      %v2033 = vadd.f32 0.0, %v2032
      %v2034 = vpop.f32.mrf.mxu0
      %2035 = vmatprep.mubr.bf16.mxu0 0
      %2036 = vmatmul.mubr.bf16.gmra.mxu0 %v1897
      %v2037 = vpop.f32.mrf.mxu0
      %v2038 = vadd.f32 0.0, %v2037
      %v2039 = vpop.f32.mrf.mxu0
      %v2040 = vpop.f32.mrf.mxu0
      %v2041 = vadd.f32 0.0, %v2040
      %v2042 = vpop.f32.mrf.mxu0
      %2043 = vmatprep.mubr.bf16.mxu0 0
      %2044 = vmatmul.mubr.bf16.gmra.mxu0 %v1900
      %v2045 = vpop.f32.mrf.mxu0
      %v2046 = vadd.f32 0.0, %v2045
      %v2047 = vpop.f32.mrf.mxu0
      %v2048 = vpop.f32.mrf.mxu0
      %v2049 = vadd.f32 0.0, %v2048
      %v2050 = vpop.f32.mrf.mxu0
      %2051 = vmatprep.mubr.bf16.mxu0 0
      %2052 = vmatmul.mubr.bf16.gmra.mxu0 %v1903
      %v2053 = vpop.f32.mrf.mxu0
      %v2054 = vadd.f32 0.0, %v2053
      %v2055 = vpop.f32.mrf.mxu0
      %v2056 = vpop.f32.mrf.mxu0
      %v2057 = vadd.f32 0.0, %v2056
      %v2058 = vpop.f32.mrf.mxu0
      %2059 = vmatprep.mubr.bf16.mxu0 0
      %2060 = vmatmul.mubr.bf16.gmra.mxu0 %v1906
      %v2061 = vpop.f32.mrf.mxu0
      %v2062 = vadd.f32 0.0, %v2061
      %v2063 = vpop.f32.mrf.mxu0
      %v2064 = vpop.f32.mrf.mxu0
      %v2065 = vadd.f32 0.0, %v2064
      %v2066 = vpop.f32.mrf.mxu0
      %2067 = vmatprep.mubr.bf16.mxu0 0
      %2068 = vmatmul.mubr.bf16.gmra.mxu0 %v1909
      %v2069 = vpop.f32.mrf.mxu0
      %v2070 = vadd.f32 0.0, %v2069
      %v2071 = vpop.f32.mrf.mxu0
      %v2072 = vpop.f32.mrf.mxu0
      %v2073 = vadd.f32 0.0, %v2072
      %v2074 = vpop.f32.mrf.mxu0
      %2075 = vmatprep.mubr.bf16.mxu0 0
      %2076 = vmatmul.mubr.bf16.gmra.mxu0 %v1912
      %v2077 = vpop.f32.mrf.mxu0
      %v2078 = vadd.f32 0.0, %v2077
      %v2079 = vpop.f32.mrf.mxu0
      %v2080 = vpop.f32.mrf.mxu0
      %v2081 = vadd.f32 0.0, %v2080
      %v2082 = vpop.f32.mrf.mxu0
      %2083 = vmatprep.mubr.bf16.mxu0 0
      %2084 = vmatmul.mubr.bf16.gmra.mxu0 %v1915
      %v2085 = vpop.f32.mrf.mxu0
      %v2086 = vadd.f32 0.0, %v2085
      %v2087 = vpop.f32.mrf.mxu0
      %v2088 = vpop.f32.mrf.mxu0
      %v2089 = vadd.f32 0.0, %v2088
      %v2090 = vpop.f32.mrf.mxu0
      %2091 = vmatprep.mubr.bf16.mxu0 0
      %2092 = vmatmul.mubr.bf16.gmra.mxu0 %v1918
      %v2093 = vpop.f32.mrf.mxu0
      %v2094 = vadd.f32 0.0, %v2093
      %v2095 = vpop.f32.mrf.mxu0
      %v2096 = vpop.f32.mrf.mxu0
      %v2097 = vadd.f32 0.0, %v2096
      %v2098 = vpop.f32.mrf.mxu0
      %2099 = vdwg.mxu0
      %v2100 = vadd.f32 %v1653, %v1958
      %v2101 = vadd.f32 %v1654, %v1961
      %v2102 = vadd.f32 %v1655, %v1966
      %v2103 = vadd.f32 %v1656, %v1969
      %v2104 = vadd.f32 %v1657, %v1974
      %v2105 = vadd.f32 %v1658, %v1977
      %v2106 = vadd.f32 %v1659, %v1982
      %v2107 = vadd.f32 %v1660, %v1985
      %v2108 = vadd.f32 %v1661, %v1990
      %v2109 = vadd.f32 %v1662, %v1993
      %v2110 = vadd.f32 %v1663, %v1998
      %v2111 = vadd.f32 %v1664, %v2001
      %v2112 = vadd.f32 %v1665, %v2006
      %v2113 = vadd.f32 %v1666, %v2009
      %v2114 = vadd.f32 %v1667, %v2014
      %v2115 = vadd.f32 %v1668, %v2017
      %v2116 = vadd.f32 %v1669, %v2022
      %v2117 = vadd.f32 %v1670, %v2025
      %v2118 = vadd.f32 %v1671, %v2030
      %v2119 = vadd.f32 %v1672, %v2033
      %v2120 = vadd.f32 %v1673, %v2038
      %v2121 = vadd.f32 %v1674, %v2041
      %v2122 = vadd.f32 %v1675, %v2046
      %v2123 = vadd.f32 %v1676, %v2049
      %v2124 = vadd.f32 %v1677, %v2054
      %v2125 = vadd.f32 %v1678, %v2057
      %v2126 = vadd.f32 %v1679, %v2062
      %v2127 = vadd.f32 %v1680, %v2065
      %v2128 = vadd.f32 %v1681, %v2070
      %v2129 = vadd.f32 %v1682, %v2073
      %v2130 = vadd.f32 %v1683, %v2078
      %v2131 = vadd.f32 %v1684, %v2081
      %v2132 = vadd.f32 %v1685, %v2086
      %v2133 = vadd.f32 %v1686, %v2089
      %v2134 = vadd.f32 %v1687, %v2094
      %v2135 = vadd.f32 %v1688, %v2097
      %v2136 = vld [vmem:[%s192 + $0x8] sm:$0xc]
      %s2137 = scalar_lea.vmem %s1, 10
      %v2138 = vld [vmem:[%s2137] sm:$0x3]
      %v2140 = vunpack.c.l.b16 %v2136
      %v2141 = vpack.c.b16 %v1327, %v2140
      %vm2142 = vcmask 1045504
      %v2143 = vrot.slane %v2141, 2
      %v2144 = vrot.slane %v1364, 2
      %v2145 = vsel %vm2142, %v2143, %v2144
      %v2146 = vrot.slane %v1365, 2
      %v2147 = vsel %vm2142, %v2144, %v2146
      %v2148 = vrot.slane %v1366, 2
      %v2149 = vsel %vm2142, %v2146, %v2148
      %v2150 = vrot.slane %v1367, 2
      %v2151 = vsel %vm2142, %v2148, %v2150
      %v2152 = vrot.slane %v1368, 2
      %v2153 = vsel %vm2142, %v2150, %v2152
      %v2154 = vrot.slane %v1369, 2
      %v2155 = vsel %vm2142, %v2152, %v2154
      %v2156 = vrot.slane %v1370, 2
      %v2157 = vsel %vm2142, %v2154, %v2156
      %v2158 = vrot.slane %v1371, 2
      %v2159 = vsel %vm2142, %v2156, %v2158
      %v2160 = vrot.slane %v1372, 2
      %v2161 = vsel %vm2142, %v2158, %v2160
      %v2162 = vrot.slane %v1373, 2
      %v2163 = vsel %vm2142, %v2160, %v2162
      %v2164 = vrot.slane %v1374, 2
      %v2165 = vsel %vm2142, %v2162, %v2164
      %v2166 = vrot.slane %v1375, 2
      %v2167 = vsel %vm2142, %v2164, %v2166
      %v2168 = vrot.slane %v1376, 2
      %v2169 = vsel %vm2142, %v2166, %v2168
      %v2170 = vrot.slane %v1377, 2
      %v2171 = vsel %vm2142, %v2168, %v2170
      %v2172 = vrot.slane %v1378, 2
      %v2173 = vsel %vm2142, %v2170, %v2172
      %v2174 = vrot.slane %v1379, 2
      %v2175 = vsel %vm2142, %v2172, %v2174
      %v2176 = vrot.slane %v1380, 2
      %v2177 = vsel %vm2142, %v2174, %v2176
      %v2178 = vrot.slane %v1694, 2
      %v2179 = vsel %vm2142, %v2176, %v2178
      %v2181 = vsel %vm481, %v2145, 0
      %v2184 = vsel %vm481, %v2147, 0
      %v2187 = vsel %vm481, %v2149, 0
      %v2190 = vsel %vm481, %v2151, 0
      %v2193 = vsel %vm481, %v2153, 0
      %v2196 = vsel %vm481, %v2155, 0
      %v2199 = vsel %vm481, %v2157, 0
      %v2202 = vsel %vm481, %v2159, 0
      %v2205 = vsel %vm481, %v2161, 0
      %v2208 = vsel %vm481, %v2163, 0
      %v2211 = vsel %vm481, %v2165, 0
      %v2214 = vsel %vm481, %v2167, 0
      %v2217 = vsel %vm481, %v2169, 0
      %v2220 = vsel %vm481, %v2171, 0
      %v2223 = vsel %vm481, %v2173, 0
      %v2226 = vsel %vm481, %v2175, 0
      %v2229 = vsel %vm481, %v2177, 0
      %v2232 = vsel %vm481, %v2179, 0
      %v2235 = vand.u32 %v2138, %v539
      %2237 = vmatprep.subr.bf16.mxu0 0
      %2238 = vmatpush1.bf16.msra.mxu0 0
      %2239 = vmatprep.subr.bf16.mxu0 0
      %2240 = vmatpush1.bf16.msra.mxu0 0
      %2241 = vmatprep.subr.bf16.mxu0 0
      %2242 = vmatpush1.bf16.msra.mxu0 0
      %2243 = vmatprep.subr.bf16.mxu0 0
      %2244 = vmatpush1.bf16.msra.mxu0 0
      %2245 = vmatprep.subr.bf16.mxu0 0
      %2246 = vmatpush1.bf16.msra.mxu0 0
      %2247 = vmatprep.subr.bf16.mxu0 0
      %2248 = vmatpush1.bf16.msra.mxu0 0
      %2249 = vmatprep.subr.bf16.mxu0 0
      %2250 = vmatpush1.bf16.msra.mxu0 0
      %2251 = vmatprep.subr.bf16.mxu0 0
      %2252 = vmatpush1.bf16.msra.mxu0 %v2235
      %2253 = vmatprep.subr.bf16.mxu0 0
      %2254 = vmatpush2.bf16.msra.mxu0 0
      %2255 = vmatprep.subr.bf16.mxu0 0
      %2256 = vmatpush2.bf16.msra.mxu0 0
      %2257 = vmatprep.subr.bf16.mxu0 0
      %2258 = vmatpush2.bf16.msra.mxu0 0
      %2259 = vmatprep.subr.bf16.mxu0 0
      %2260 = vmatpush2.bf16.msra.mxu0 0
      %2261 = vmatprep.subr.bf16.mxu0 0
      %2262 = vmatpush2.bf16.msra.mxu0 0
      %2263 = vmatprep.subr.bf16.mxu0 0
      %2264 = vmatpush2.bf16.msra.mxu0 0
      %2265 = vmatprep.subr.bf16.mxu0 0
      %2266 = vmatpush2.bf16.msra.mxu0 0
      %2267 = vmatprep.subr.bf16.mxu0 0
      %2268 = vmatpush2.bf16.msra.mxu0 0
      %2269 = vmatprep.mubr.bf16.mxu0 0
      %2270 = vmatmul.mubr.bf16.gmra.mxu0 %v2181
      %v2271 = vpop.f32.mrf.mxu0
      %v2272 = vadd.f32 0.0, %v2271
      %v2273 = vpop.f32.mrf.mxu0
      %v2274 = vpop.f32.mrf.mxu0
      %v2275 = vadd.f32 0.0, %v2274
      %v2276 = vpop.f32.mrf.mxu0
      %2277 = vmatprep.mubr.bf16.mxu0 0
      %2278 = vmatmul.mubr.bf16.gmra.mxu0 %v2184
      %v2279 = vpop.f32.mrf.mxu0
      %v2280 = vadd.f32 0.0, %v2279
      %v2281 = vpop.f32.mrf.mxu0
      %v2282 = vpop.f32.mrf.mxu0
      %v2283 = vadd.f32 0.0, %v2282
      %v2284 = vpop.f32.mrf.mxu0
      %2285 = vmatprep.mubr.bf16.mxu0 0
      %2286 = vmatmul.mubr.bf16.gmra.mxu0 %v2187
      %v2287 = vpop.f32.mrf.mxu0
      %v2288 = vadd.f32 0.0, %v2287
      %v2289 = vpop.f32.mrf.mxu0
      %v2290 = vpop.f32.mrf.mxu0
      %v2291 = vadd.f32 0.0, %v2290
      %v2292 = vpop.f32.mrf.mxu0
      %2293 = vmatprep.mubr.bf16.mxu0 0
      %2294 = vmatmul.mubr.bf16.gmra.mxu0 %v2190
      %v2295 = vpop.f32.mrf.mxu0
      %v2296 = vadd.f32 0.0, %v2295
      %v2297 = vpop.f32.mrf.mxu0
      %v2298 = vpop.f32.mrf.mxu0
      %v2299 = vadd.f32 0.0, %v2298
      %v2300 = vpop.f32.mrf.mxu0
      %2301 = vmatprep.mubr.bf16.mxu0 0
      %2302 = vmatmul.mubr.bf16.gmra.mxu0 %v2193
      %v2303 = vpop.f32.mrf.mxu0
      %v2304 = vadd.f32 0.0, %v2303
      %v2305 = vpop.f32.mrf.mxu0
      %v2306 = vpop.f32.mrf.mxu0
      %v2307 = vadd.f32 0.0, %v2306
      %v2308 = vpop.f32.mrf.mxu0
      %2309 = vmatprep.mubr.bf16.mxu0 0
      %2310 = vmatmul.mubr.bf16.gmra.mxu0 %v2196
      %v2311 = vpop.f32.mrf.mxu0
      %v2312 = vadd.f32 0.0, %v2311
      %v2313 = vpop.f32.mrf.mxu0
      %v2314 = vpop.f32.mrf.mxu0
      %v2315 = vadd.f32 0.0, %v2314
      %v2316 = vpop.f32.mrf.mxu0
      %2317 = vmatprep.mubr.bf16.mxu0 0
      %2318 = vmatmul.mubr.bf16.gmra.mxu0 %v2199
      %v2319 = vpop.f32.mrf.mxu0
      %v2320 = vadd.f32 0.0, %v2319
      %v2321 = vpop.f32.mrf.mxu0
      %v2322 = vpop.f32.mrf.mxu0
      %v2323 = vadd.f32 0.0, %v2322
      %v2324 = vpop.f32.mrf.mxu0
      %2325 = vmatprep.mubr.bf16.mxu0 0
      %2326 = vmatmul.mubr.bf16.gmra.mxu0 %v2202
      %v2327 = vpop.f32.mrf.mxu0
      %v2328 = vadd.f32 0.0, %v2327
      %v2329 = vpop.f32.mrf.mxu0
      %v2330 = vpop.f32.mrf.mxu0
      %v2331 = vadd.f32 0.0, %v2330
      %v2332 = vpop.f32.mrf.mxu0
      %2333 = vmatprep.mubr.bf16.mxu0 0
      %2334 = vmatmul.mubr.bf16.gmra.mxu0 %v2205
      %v2335 = vpop.f32.mrf.mxu0
      %v2336 = vadd.f32 0.0, %v2335
      %v2337 = vpop.f32.mrf.mxu0
      %v2338 = vpop.f32.mrf.mxu0
      %v2339 = vadd.f32 0.0, %v2338
      %v2340 = vpop.f32.mrf.mxu0
      %2341 = vmatprep.mubr.bf16.mxu0 0
      %2342 = vmatmul.mubr.bf16.gmra.mxu0 %v2208
      %v2343 = vpop.f32.mrf.mxu0
      %v2344 = vadd.f32 0.0, %v2343
      %v2345 = vpop.f32.mrf.mxu0
      %v2346 = vpop.f32.mrf.mxu0
      %v2347 = vadd.f32 0.0, %v2346
      %v2348 = vpop.f32.mrf.mxu0
      %2349 = vmatprep.mubr.bf16.mxu0 0
      %2350 = vmatmul.mubr.bf16.gmra.mxu0 %v2211
      %v2351 = vpop.f32.mrf.mxu0
      %v2352 = vadd.f32 0.0, %v2351
      %v2353 = vpop.f32.mrf.mxu0
      %v2354 = vpop.f32.mrf.mxu0
      %v2355 = vadd.f32 0.0, %v2354
      %v2356 = vpop.f32.mrf.mxu0
      %2357 = vmatprep.mubr.bf16.mxu0 0
      %2358 = vmatmul.mubr.bf16.gmra.mxu0 %v2214
      %v2359 = vpop.f32.mrf.mxu0
      %v2360 = vadd.f32 0.0, %v2359
      %v2361 = vpop.f32.mrf.mxu0
      %v2362 = vpop.f32.mrf.mxu0
      %v2363 = vadd.f32 0.0, %v2362
      %v2364 = vpop.f32.mrf.mxu0
      %2365 = vmatprep.mubr.bf16.mxu0 0
      %2366 = vmatmul.mubr.bf16.gmra.mxu0 %v2217
      %v2367 = vpop.f32.mrf.mxu0
      %v2368 = vadd.f32 0.0, %v2367
      %v2369 = vpop.f32.mrf.mxu0
      %v2370 = vpop.f32.mrf.mxu0
      %v2371 = vadd.f32 0.0, %v2370
      %v2372 = vpop.f32.mrf.mxu0
      %2373 = vmatprep.mubr.bf16.mxu0 0
      %2374 = vmatmul.mubr.bf16.gmra.mxu0 %v2220
      %v2375 = vpop.f32.mrf.mxu0
      %v2376 = vadd.f32 0.0, %v2375
      %v2377 = vpop.f32.mrf.mxu0
      %v2378 = vpop.f32.mrf.mxu0
      %v2379 = vadd.f32 0.0, %v2378
      %v2380 = vpop.f32.mrf.mxu0
      %2381 = vmatprep.mubr.bf16.mxu0 0
      %2382 = vmatmul.mubr.bf16.gmra.mxu0 %v2223
      %v2383 = vpop.f32.mrf.mxu0
      %v2384 = vadd.f32 0.0, %v2383
      %v2385 = vpop.f32.mrf.mxu0
      %v2386 = vpop.f32.mrf.mxu0
      %v2387 = vadd.f32 0.0, %v2386
      %v2388 = vpop.f32.mrf.mxu0
      %2389 = vmatprep.mubr.bf16.mxu0 0
      %2390 = vmatmul.mubr.bf16.gmra.mxu0 %v2226
      %v2391 = vpop.f32.mrf.mxu0
      %v2392 = vadd.f32 0.0, %v2391
      %v2393 = vpop.f32.mrf.mxu0
      %v2394 = vpop.f32.mrf.mxu0
      %v2395 = vadd.f32 0.0, %v2394
      %v2396 = vpop.f32.mrf.mxu0
      %2397 = vmatprep.mubr.bf16.mxu0 0
      %2398 = vmatmul.mubr.bf16.gmra.mxu0 %v2229
      %v2399 = vpop.f32.mrf.mxu0
      %v2400 = vadd.f32 0.0, %v2399
      %v2401 = vpop.f32.mrf.mxu0
      %v2402 = vpop.f32.mrf.mxu0
      %v2403 = vadd.f32 0.0, %v2402
      %v2404 = vpop.f32.mrf.mxu0
      %2405 = vmatprep.mubr.bf16.mxu0 0
      %2406 = vmatmul.mubr.bf16.gmra.mxu0 %v2232
      %v2407 = vpop.f32.mrf.mxu0
      %v2408 = vadd.f32 0.0, %v2407
      %v2409 = vpop.f32.mrf.mxu0
      %v2410 = vpop.f32.mrf.mxu0
      %v2411 = vadd.f32 0.0, %v2410
      %v2412 = vpop.f32.mrf.mxu0
      %2413 = vdwg.mxu0
      %v2414 = vadd.f32 %v2100, %v2272
      %v2415 = vadd.f32 %v2101, %v2275
      %v2416 = vadd.f32 %v2102, %v2280
      %v2417 = vadd.f32 %v2103, %v2283
      %v2418 = vadd.f32 %v2104, %v2288
      %v2419 = vadd.f32 %v2105, %v2291
      %v2420 = vadd.f32 %v2106, %v2296
      %v2421 = vadd.f32 %v2107, %v2299
      %v2422 = vadd.f32 %v2108, %v2304
      %v2423 = vadd.f32 %v2109, %v2307
      %v2424 = vadd.f32 %v2110, %v2312
      %v2425 = vadd.f32 %v2111, %v2315
      %v2426 = vadd.f32 %v2112, %v2320
      %v2427 = vadd.f32 %v2113, %v2323
      %v2428 = vadd.f32 %v2114, %v2328
      %v2429 = vadd.f32 %v2115, %v2331
      %v2430 = vadd.f32 %v2116, %v2336
      %v2431 = vadd.f32 %v2117, %v2339
      %v2432 = vadd.f32 %v2118, %v2344
      %v2433 = vadd.f32 %v2119, %v2347
      %v2434 = vadd.f32 %v2120, %v2352
      %v2435 = vadd.f32 %v2121, %v2355
      %v2436 = vadd.f32 %v2122, %v2360
      %v2437 = vadd.f32 %v2123, %v2363
      %v2438 = vadd.f32 %v2124, %v2368
      %v2439 = vadd.f32 %v2125, %v2371
      %v2440 = vadd.f32 %v2126, %v2376
      %v2441 = vadd.f32 %v2127, %v2379
      %v2442 = vadd.f32 %v2128, %v2384
      %v2443 = vadd.f32 %v2129, %v2387
      %v2444 = vadd.f32 %v2130, %v2392
      %v2445 = vadd.f32 %v2131, %v2395
      %v2446 = vadd.f32 %v2132, %v2400
      %v2447 = vadd.f32 %v2133, %v2403
      %v2448 = vadd.f32 %v2134, %v2408
      %v2449 = vadd.f32 %v2135, %v2411
      %v2450 = vld [vmem:[%s192 + $0x10] sm:$0xc]
      %v2451 = vld [vmem:[%s192 + $0x14] sm:$0xf]
      %v2452 = vld [vmem:[%s192 + $0x18] sm:$0xf]
      %v2453 = vld [vmem:[%s192 + $0x1c] sm:$0xf]
      %v2454 = vld [vmem:[%s192 + $0x20] sm:$0xf]
      %v2455 = vld [vmem:[%s192 + $0x24] sm:$0xf]
      %v2456 = vld [vmem:[%s192 + $0x28] sm:$0xf]
      %v2457 = vld [vmem:[%s192 + $0x2c] sm:$0xf]
      %v2458 = vld [vmem:[%s192 + $0x30] sm:$0xf]
      %v2459 = vld [vmem:[%s192 + $0x34] sm:$0xf]
      %v2460 = vld [vmem:[%s192 + $0x38] sm:$0xf]
      %v2461 = vld [vmem:[%s192 + $0x3c] sm:$0xf]
      %v2462 = vld [vmem:[%s192 + $0x40] sm:$0xf]
      %v2463 = vld [vmem:[%s192 + $0x44] sm:$0xf]
      %v2464 = vld [vmem:[%s192 + $0x48] sm:$0xf]
      %v2465 = vld [vmem:[%s192 + $0x4c] sm:$0xf]
      %v2466 = vld [vmem:[%s192 + $0x50] sm:$0xf]
      %v2467 = vld [vmem:[%s192 + $0x54] sm:$0xf]
      %v2468 = vld [vmem:[%s192 + $0x58] sm:$0xf]
      %v2469 = vld [vmem:[%s192 + $0x5c] sm:$0xf]
      %v2470 = vld [vmem:[%s192 + $0x60] sm:$0xf]
      %v2471 = vld [vmem:[%s192 + $0x64] sm:$0xf]
      %v2472 = vld [vmem:[%s192 + $0x68] sm:$0xf]
      %v2473 = vld [vmem:[%s192 + $0x6c] sm:$0xf]
      %v2474 = vld [vmem:[%s192 + $0x70] sm:$0xf]
      %v2475 = vld [vmem:[%s192 + $0x74] sm:$0xf]
      %v2476 = vld [vmem:[%s192 + $0x78] sm:$0xf]
      %v2477 = vld [vmem:[%s192 + $0x7c] sm:$0xf]
      %v2478 = vld [vmem:[%s192 + $0x80] sm:$0xf]
      %v2479 = vld [vmem:[%s192 + $0x84] sm:$0xf]
      %v2480 = vld [vmem:[%s192 + $0x88] sm:$0xf]
      %v2481 = vld [vmem:[%s192 + $0x8c] sm:$0xf]
      %v2482 = vld [vmem:[%s192 + $0x90] sm:$0xf]
      %v2483 = vld [vmem:[%s192 + $0x94] sm:$0xf]
      %v2484 = vld [vmem:[%s192 + $0x98] sm:$0xf]
      %v2485 = vld [vmem:[%s192 + $0x9c] sm:$0xf]
      %v2486 = vld [vmem:[%s192 + $0xa0] sm:$0x3]
      %s2487 = scalar_lea.vmem %s1, 12
      %v2488 = vld [vmem:[%s2487] sm:$0x3]
      %v2526 = vunpack.c.l.b16 %v2450
      %v2527 = vunpack.c.l.b16 %v2451
      %v2528 = vunpack.c.l.b16 %v2452
      %v2529 = vunpack.c.l.b16 %v2453
      %v2530 = vunpack.c.l.b16 %v2454
      %v2531 = vunpack.c.l.b16 %v2455
      %v2532 = vunpack.c.l.b16 %v2456
      %v2533 = vunpack.c.l.b16 %v2457
      %v2534 = vunpack.c.l.b16 %v2458
      %v2535 = vunpack.c.l.b16 %v2459
      %v2536 = vunpack.c.l.b16 %v2460
      %v2537 = vunpack.c.l.b16 %v2461
      %v2538 = vunpack.c.l.b16 %v2462
      %v2539 = vunpack.c.l.b16 %v2463
      %v2540 = vunpack.c.l.b16 %v2464
      %v2541 = vunpack.c.l.b16 %v2465
      %v2542 = vunpack.c.l.b16 %v2466
      %v2543 = vunpack.c.l.b16 %v2467
      %v2544 = vunpack.c.l.b16 %v2468
      %v2545 = vunpack.c.l.b16 %v2469
      %v2546 = vunpack.c.l.b16 %v2470
      %v2547 = vunpack.c.l.b16 %v2471
      %v2548 = vunpack.c.l.b16 %v2472
      %v2549 = vunpack.c.l.b16 %v2473
      %v2550 = vunpack.c.l.b16 %v2474
      %v2551 = vunpack.c.l.b16 %v2475
      %v2552 = vunpack.c.l.b16 %v2476
      %v2553 = vunpack.c.l.b16 %v2477
      %v2554 = vunpack.c.l.b16 %v2478
      %v2555 = vunpack.c.l.b16 %v2479
      %v2556 = vunpack.c.l.b16 %v2480
      %v2557 = vunpack.c.l.b16 %v2481
      %v2558 = vunpack.c.l.b16 %v2482
      %v2559 = vunpack.c.l.b16 %v2483
      %v2560 = vunpack.c.l.b16 %v2484
      %v2561 = vunpack.c.l.b16 %v2485
      %v2562 = vunpack.c.l.b16 %v2486
      %v2563 = vpack.c.b16 %v2527, %v2526
      %v2564 = vpack.c.b16 %v2529, %v2528
      %v2565 = vpack.c.b16 %v2531, %v2530
      %v2566 = vpack.c.b16 %v2533, %v2532
      %v2567 = vpack.c.b16 %v2535, %v2534
      %v2568 = vpack.c.b16 %v2537, %v2536
      %v2569 = vpack.c.b16 %v2539, %v2538
      %v2570 = vpack.c.b16 %v2541, %v2540
      %v2571 = vpack.c.b16 %v2543, %v2542
      %v2572 = vpack.c.b16 %v2545, %v2544
      %v2573 = vpack.c.b16 %v2547, %v2546
      %v2574 = vpack.c.b16 %v2549, %v2548
      %v2575 = vpack.c.b16 %v2551, %v2550
      %v2576 = vpack.c.b16 %v2553, %v2552
      %v2577 = vpack.c.b16 %v2555, %v2554
      %v2578 = vpack.c.b16 %v2557, %v2556
      %v2579 = vpack.c.b16 %v2559, %v2558
      %v2580 = vpack.c.b16 %v2561, %v2560
      %v2581 = vpack.c.b16 %v2562, %v2562
      %v2582 = vrot.slane %v2563, 2
      %v2583 = vrot.slane %v2564, 2
      %v2584 = vsel %vm2142, %v2582, %v2583
      %v2585 = vrot.slane %v2565, 2
      %v2586 = vsel %vm2142, %v2583, %v2585
      %v2587 = vrot.slane %v2566, 2
      %v2588 = vsel %vm2142, %v2585, %v2587
      %v2589 = vrot.slane %v2567, 2
      %v2590 = vsel %vm2142, %v2587, %v2589
      %v2591 = vrot.slane %v2568, 2
      %v2592 = vsel %vm2142, %v2589, %v2591
      %v2593 = vrot.slane %v2569, 2
      %v2594 = vsel %vm2142, %v2591, %v2593
      %v2595 = vrot.slane %v2570, 2
      %v2596 = vsel %vm2142, %v2593, %v2595
      %v2597 = vrot.slane %v2571, 2
      %v2598 = vsel %vm2142, %v2595, %v2597
      %v2599 = vrot.slane %v2572, 2
      %v2600 = vsel %vm2142, %v2597, %v2599
      %v2601 = vrot.slane %v2573, 2
      %v2602 = vsel %vm2142, %v2599, %v2601
      %v2603 = vrot.slane %v2574, 2
      %v2604 = vsel %vm2142, %v2601, %v2603
      %v2605 = vrot.slane %v2575, 2
      %v2606 = vsel %vm2142, %v2603, %v2605
      %v2607 = vrot.slane %v2576, 2
      %v2608 = vsel %vm2142, %v2605, %v2607
      %v2609 = vrot.slane %v2577, 2
      %v2610 = vsel %vm2142, %v2607, %v2609
      %v2611 = vrot.slane %v2578, 2
      %v2612 = vsel %vm2142, %v2609, %v2611
      %v2613 = vrot.slane %v2579, 2
      %v2614 = vsel %vm2142, %v2611, %v2613
      %v2615 = vrot.slane %v2580, 2
      %v2616 = vsel %vm2142, %v2613, %v2615
      %v2617 = vrot.slane %v2581, 2
      %v2618 = vsel %vm2142, %v2615, %v2617
      %v2620 = vsel %vm481, %v2584, 0
      %v2623 = vsel %vm481, %v2586, 0
      %v2626 = vsel %vm481, %v2588, 0
      %v2629 = vsel %vm481, %v2590, 0
      %v2632 = vsel %vm481, %v2592, 0
      %v2635 = vsel %vm481, %v2594, 0
      %v2638 = vsel %vm481, %v2596, 0
      %v2641 = vsel %vm481, %v2598, 0
      %v2644 = vsel %vm481, %v2600, 0
      %v2647 = vsel %vm481, %v2602, 0
      %v2650 = vsel %vm481, %v2604, 0
      %v2653 = vsel %vm481, %v2606, 0
      %v2656 = vsel %vm481, %v2608, 0
      %v2659 = vsel %vm481, %v2610, 0
      %v2662 = vsel %vm481, %v2612, 0
      %v2665 = vsel %vm481, %v2614, 0
      %v2668 = vsel %vm481, %v2616, 0
      %v2671 = vsel %vm481, %v2618, 0
      %v2674 = vand.u32 %v2488, %v539
      %2676 = vmatprep.subr.bf16.mxu0 0
      %2677 = vmatpush1.bf16.msra.mxu0 0
      %2678 = vmatprep.subr.bf16.mxu0 0
      %2679 = vmatpush1.bf16.msra.mxu0 0
      %2680 = vmatprep.subr.bf16.mxu0 0
      %2681 = vmatpush1.bf16.msra.mxu0 0
      %2682 = vmatprep.subr.bf16.mxu0 0
      %2683 = vmatpush1.bf16.msra.mxu0 0
      %2684 = vmatprep.subr.bf16.mxu0 0
      %2685 = vmatpush1.bf16.msra.mxu0 0
      %2686 = vmatprep.subr.bf16.mxu0 0
      %2687 = vmatpush1.bf16.msra.mxu0 0
      %2688 = vmatprep.subr.bf16.mxu0 0
      %2689 = vmatpush1.bf16.msra.mxu0 0
      %2690 = vmatprep.subr.bf16.mxu0 0
      %2691 = vmatpush1.bf16.msra.mxu0 %v2674
      %2692 = vmatprep.subr.bf16.mxu0 0
      %2693 = vmatpush2.bf16.msra.mxu0 0
      %2694 = vmatprep.subr.bf16.mxu0 0
      %2695 = vmatpush2.bf16.msra.mxu0 0
      %2696 = vmatprep.subr.bf16.mxu0 0
      %2697 = vmatpush2.bf16.msra.mxu0 0
      %2698 = vmatprep.subr.bf16.mxu0 0
      %2699 = vmatpush2.bf16.msra.mxu0 0
      %2700 = vmatprep.subr.bf16.mxu0 0
      %2701 = vmatpush2.bf16.msra.mxu0 0
      %2702 = vmatprep.subr.bf16.mxu0 0
      %2703 = vmatpush2.bf16.msra.mxu0 0
      %2704 = vmatprep.subr.bf16.mxu0 0
      %2705 = vmatpush2.bf16.msra.mxu0 0
      %2706 = vmatprep.subr.bf16.mxu0 0
      %2707 = vmatpush2.bf16.msra.mxu0 0
      %2708 = vmatprep.mubr.bf16.mxu0 0
      %2709 = vmatmul.mubr.bf16.gmra.mxu0 %v2620
      %v2710 = vpop.f32.mrf.mxu0
      %v2711 = vadd.f32 0.0, %v2710
      %v2712 = vpop.f32.mrf.mxu0
      %v2713 = vpop.f32.mrf.mxu0
      %v2714 = vadd.f32 0.0, %v2713
      %v2715 = vpop.f32.mrf.mxu0
      %2716 = vmatprep.mubr.bf16.mxu0 0
      %2717 = vmatmul.mubr.bf16.gmra.mxu0 %v2623
      %v2718 = vpop.f32.mrf.mxu0
      %v2719 = vadd.f32 0.0, %v2718
      %v2720 = vpop.f32.mrf.mxu0
      %v2721 = vpop.f32.mrf.mxu0
      %v2722 = vadd.f32 0.0, %v2721
      %v2723 = vpop.f32.mrf.mxu0
      %2724 = vmatprep.mubr.bf16.mxu0 0
      %2725 = vmatmul.mubr.bf16.gmra.mxu0 %v2626
      %v2726 = vpop.f32.mrf.mxu0
      %v2727 = vadd.f32 0.0, %v2726
      %v2728 = vpop.f32.mrf.mxu0
      %v2729 = vpop.f32.mrf.mxu0
      %v2730 = vadd.f32 0.0, %v2729
      %v2731 = vpop.f32.mrf.mxu0
      %2732 = vmatprep.mubr.bf16.mxu0 0
      %2733 = vmatmul.mubr.bf16.gmra.mxu0 %v2629
      %v2734 = vpop.f32.mrf.mxu0
      %v2735 = vadd.f32 0.0, %v2734
      %v2736 = vpop.f32.mrf.mxu0
      %v2737 = vpop.f32.mrf.mxu0
      %v2738 = vadd.f32 0.0, %v2737
      %v2739 = vpop.f32.mrf.mxu0
      %2740 = vmatprep.mubr.bf16.mxu0 0
      %2741 = vmatmul.mubr.bf16.gmra.mxu0 %v2632
      %v2742 = vpop.f32.mrf.mxu0
      %v2743 = vadd.f32 0.0, %v2742
      %v2744 = vpop.f32.mrf.mxu0
      %v2745 = vpop.f32.mrf.mxu0
      %v2746 = vadd.f32 0.0, %v2745
      %v2747 = vpop.f32.mrf.mxu0
      %2748 = vmatprep.mubr.bf16.mxu0 0
      %2749 = vmatmul.mubr.bf16.gmra.mxu0 %v2635
      %v2750 = vpop.f32.mrf.mxu0
      %v2751 = vadd.f32 0.0, %v2750
      %v2752 = vpop.f32.mrf.mxu0
      %v2753 = vpop.f32.mrf.mxu0
      %v2754 = vadd.f32 0.0, %v2753
      %v2755 = vpop.f32.mrf.mxu0
      %2756 = vmatprep.mubr.bf16.mxu0 0
      %2757 = vmatmul.mubr.bf16.gmra.mxu0 %v2638
      %v2758 = vpop.f32.mrf.mxu0
      %v2759 = vadd.f32 0.0, %v2758
      %v2760 = vpop.f32.mrf.mxu0
      %v2761 = vpop.f32.mrf.mxu0
      %v2762 = vadd.f32 0.0, %v2761
      %v2763 = vpop.f32.mrf.mxu0
      %2764 = vmatprep.mubr.bf16.mxu0 0
      %2765 = vmatmul.mubr.bf16.gmra.mxu0 %v2641
      %v2766 = vpop.f32.mrf.mxu0
      %v2767 = vadd.f32 0.0, %v2766
      %v2768 = vpop.f32.mrf.mxu0
      %v2769 = vpop.f32.mrf.mxu0
      %v2770 = vadd.f32 0.0, %v2769
      %v2771 = vpop.f32.mrf.mxu0
      %2772 = vmatprep.mubr.bf16.mxu0 0
      %2773 = vmatmul.mubr.bf16.gmra.mxu0 %v2644
      %v2774 = vpop.f32.mrf.mxu0
      %v2775 = vadd.f32 0.0, %v2774
      %v2776 = vpop.f32.mrf.mxu0
      %v2777 = vpop.f32.mrf.mxu0
      %v2778 = vadd.f32 0.0, %v2777
      %v2779 = vpop.f32.mrf.mxu0
      %2780 = vmatprep.mubr.bf16.mxu0 0
      %2781 = vmatmul.mubr.bf16.gmra.mxu0 %v2647
      %v2782 = vpop.f32.mrf.mxu0
      %v2783 = vadd.f32 0.0, %v2782
      %v2784 = vpop.f32.mrf.mxu0
      %v2785 = vpop.f32.mrf.mxu0
      %v2786 = vadd.f32 0.0, %v2785
      %v2787 = vpop.f32.mrf.mxu0
      %2788 = vmatprep.mubr.bf16.mxu0 0
      %2789 = vmatmul.mubr.bf16.gmra.mxu0 %v2650
      %v2790 = vpop.f32.mrf.mxu0
      %v2791 = vadd.f32 0.0, %v2790
      %v2792 = vpop.f32.mrf.mxu0
      %v2793 = vpop.f32.mrf.mxu0
      %v2794 = vadd.f32 0.0, %v2793
      %v2795 = vpop.f32.mrf.mxu0
      %2796 = vmatprep.mubr.bf16.mxu0 0
      %2797 = vmatmul.mubr.bf16.gmra.mxu0 %v2653
      %v2798 = vpop.f32.mrf.mxu0
      %v2799 = vadd.f32 0.0, %v2798
      %v2800 = vpop.f32.mrf.mxu0
      %v2801 = vpop.f32.mrf.mxu0
      %v2802 = vadd.f32 0.0, %v2801
      %v2803 = vpop.f32.mrf.mxu0
      %2804 = vmatprep.mubr.bf16.mxu0 0
      %2805 = vmatmul.mubr.bf16.gmra.mxu0 %v2656
      %v2806 = vpop.f32.mrf.mxu0
      %v2807 = vadd.f32 0.0, %v2806
      %v2808 = vpop.f32.mrf.mxu0
      %v2809 = vpop.f32.mrf.mxu0
      %v2810 = vadd.f32 0.0, %v2809
      %v2811 = vpop.f32.mrf.mxu0
      %2812 = vmatprep.mubr.bf16.mxu0 0
      %2813 = vmatmul.mubr.bf16.gmra.mxu0 %v2659
      %v2814 = vpop.f32.mrf.mxu0
      %v2815 = vadd.f32 0.0, %v2814
      %v2816 = vpop.f32.mrf.mxu0
      %v2817 = vpop.f32.mrf.mxu0
      %v2818 = vadd.f32 0.0, %v2817
      %v2819 = vpop.f32.mrf.mxu0
      %2820 = vmatprep.mubr.bf16.mxu0 0
      %2821 = vmatmul.mubr.bf16.gmra.mxu0 %v2662
      %v2822 = vpop.f32.mrf.mxu0
      %v2823 = vadd.f32 0.0, %v2822
      %v2824 = vpop.f32.mrf.mxu0
      %v2825 = vpop.f32.mrf.mxu0
      %v2826 = vadd.f32 0.0, %v2825
      %v2827 = vpop.f32.mrf.mxu0
      %2828 = vmatprep.mubr.bf16.mxu0 0
      %2829 = vmatmul.mubr.bf16.gmra.mxu0 %v2665
      %v2830 = vpop.f32.mrf.mxu0
      %v2831 = vadd.f32 0.0, %v2830
      %v2832 = vpop.f32.mrf.mxu0
      %v2833 = vpop.f32.mrf.mxu0
      %v2834 = vadd.f32 0.0, %v2833
      %v2835 = vpop.f32.mrf.mxu0
      %2836 = vmatprep.mubr.bf16.mxu0 0
      %2837 = vmatmul.mubr.bf16.gmra.mxu0 %v2668
      %v2838 = vpop.f32.mrf.mxu0
      %v2839 = vadd.f32 0.0, %v2838
      %v2840 = vpop.f32.mrf.mxu0
      %v2841 = vpop.f32.mrf.mxu0
      %v2842 = vadd.f32 0.0, %v2841
      %v2843 = vpop.f32.mrf.mxu0
      %2844 = vmatprep.mubr.bf16.mxu0 0
      %2845 = vmatmul.mubr.bf16.gmra.mxu0 %v2671
      %v2846 = vpop.f32.mrf.mxu0
      %v2847 = vadd.f32 0.0, %v2846
      %v2848 = vpop.f32.mrf.mxu0
      %v2849 = vpop.f32.mrf.mxu0
      %v2850 = vadd.f32 0.0, %v2849
      %v2851 = vpop.f32.mrf.mxu0
      %2852 = vdwg.mxu0
      %v2853 = vadd.f32 %v2414, %v2711
      %v2854 = vadd.f32 %v2415, %v2714
      %v2855 = vadd.f32 %v2416, %v2719
      %v2856 = vadd.f32 %v2417, %v2722
      %v2857 = vadd.f32 %v2418, %v2727
      %v2858 = vadd.f32 %v2419, %v2730
      %v2859 = vadd.f32 %v2420, %v2735
      %v2860 = vadd.f32 %v2421, %v2738
      %v2861 = vadd.f32 %v2422, %v2743
      %v2862 = vadd.f32 %v2423, %v2746
      %v2863 = vadd.f32 %v2424, %v2751
      %v2864 = vadd.f32 %v2425, %v2754
      %v2865 = vadd.f32 %v2426, %v2759
      %v2866 = vadd.f32 %v2427, %v2762
      %v2867 = vadd.f32 %v2428, %v2767
      %v2868 = vadd.f32 %v2429, %v2770
      %v2869 = vadd.f32 %v2430, %v2775
      %v2870 = vadd.f32 %v2431, %v2778
      %v2871 = vadd.f32 %v2432, %v2783
      %v2872 = vadd.f32 %v2433, %v2786
      %v2873 = vadd.f32 %v2434, %v2791
      %v2874 = vadd.f32 %v2435, %v2794
      %v2875 = vadd.f32 %v2436, %v2799
      %v2876 = vadd.f32 %v2437, %v2802
      %v2877 = vadd.f32 %v2438, %v2807
      %v2878 = vadd.f32 %v2439, %v2810
      %v2879 = vadd.f32 %v2440, %v2815
      %v2880 = vadd.f32 %v2441, %v2818
      %v2881 = vadd.f32 %v2442, %v2823
      %v2882 = vadd.f32 %v2443, %v2826
      %v2883 = vadd.f32 %v2444, %v2831
      %v2884 = vadd.f32 %v2445, %v2834
      %v2885 = vadd.f32 %v2446, %v2839
      %v2886 = vadd.f32 %v2447, %v2842
      %v2887 = vadd.f32 %v2448, %v2847
      %v2888 = vadd.f32 %v2449, %v2850
      %v2889 = vld [vmem:[%s192 + $0xa0] sm:$0x7]
      %s2890 = scalar_lea.vmem %s1, 14
      %v2891 = vld [vmem:[%s2890] sm:$0x3]
      %v2893 = vunpack.c.l.b16 %v2889
      %v2894 = vpack.c.b16 %v2893, %v2893
      %vm2895 = vsmask.f32 5376
      %v2897 = vshrl.u32 %v2563, 16
      %v2899 = vrot.slane %v2897, 2
      %v2900 = vshll.u32 %v2563, 16
      %v2902 = vrot.slane %v2900, 3
      %v2903 = vor.u32 %v2899, %v2902
      %v2905 = vshrl.u32 %v2564, 16
      %v2907 = vrot.slane %v2905, 2
      %v2908 = vshll.u32 %v2564, 16
      %v2910 = vrot.slane %v2908, 3
      %v2911 = vor.u32 %v2907, %v2910
      %v2912 = vsel %vm2895, %v2903, %v2911
      %v2914 = vshrl.u32 %v2565, 16
      %v2916 = vrot.slane %v2914, 2
      %v2917 = vshll.u32 %v2565, 16
      %v2919 = vrot.slane %v2917, 3
      %v2920 = vor.u32 %v2916, %v2919
      %v2921 = vsel %vm2895, %v2911, %v2920
      %v2923 = vshrl.u32 %v2566, 16
      %v2925 = vrot.slane %v2923, 2
      %v2926 = vshll.u32 %v2566, 16
      %v2928 = vrot.slane %v2926, 3
      %v2929 = vor.u32 %v2925, %v2928
      %v2930 = vsel %vm2895, %v2920, %v2929
      %v2932 = vshrl.u32 %v2567, 16
      %v2934 = vrot.slane %v2932, 2
      %v2935 = vshll.u32 %v2567, 16
      %v2937 = vrot.slane %v2935, 3
      %v2938 = vor.u32 %v2934, %v2937
      %v2939 = vsel %vm2895, %v2929, %v2938
      %v2941 = vshrl.u32 %v2568, 16
      %v2943 = vrot.slane %v2941, 2
      %v2944 = vshll.u32 %v2568, 16
      %v2946 = vrot.slane %v2944, 3
      %v2947 = vor.u32 %v2943, %v2946
      %v2948 = vsel %vm2895, %v2938, %v2947
      %v2950 = vshrl.u32 %v2569, 16
      %v2952 = vrot.slane %v2950, 2
      %v2953 = vshll.u32 %v2569, 16
      %v2955 = vrot.slane %v2953, 3
      %v2956 = vor.u32 %v2952, %v2955
      %v2957 = vsel %vm2895, %v2947, %v2956
      %v2959 = vshrl.u32 %v2570, 16
      %v2961 = vrot.slane %v2959, 2
      %v2962 = vshll.u32 %v2570, 16
      %v2964 = vrot.slane %v2962, 3
      %v2965 = vor.u32 %v2961, %v2964
      %v2966 = vsel %vm2895, %v2956, %v2965
      %v2968 = vshrl.u32 %v2571, 16
      %v2970 = vrot.slane %v2968, 2
      %v2971 = vshll.u32 %v2571, 16
      %v2973 = vrot.slane %v2971, 3
      %v2974 = vor.u32 %v2970, %v2973
      %v2975 = vsel %vm2895, %v2965, %v2974
      %v2977 = vshrl.u32 %v2572, 16
      %v2979 = vrot.slane %v2977, 2
      %v2980 = vshll.u32 %v2572, 16
      %v2982 = vrot.slane %v2980, 3
      %v2983 = vor.u32 %v2979, %v2982
      %v2984 = vsel %vm2895, %v2974, %v2983
      %v2986 = vshrl.u32 %v2573, 16
      %v2988 = vrot.slane %v2986, 2
      %v2989 = vshll.u32 %v2573, 16
      %v2991 = vrot.slane %v2989, 3
      %v2992 = vor.u32 %v2988, %v2991
      %v2993 = vsel %vm2895, %v2983, %v2992
      %v2995 = vshrl.u32 %v2574, 16
      %v2997 = vrot.slane %v2995, 2
      %v2998 = vshll.u32 %v2574, 16
      %v3000 = vrot.slane %v2998, 3
      %v3001 = vor.u32 %v2997, %v3000
      %v3002 = vsel %vm2895, %v2992, %v3001
      %v3004 = vshrl.u32 %v2575, 16
      %v3006 = vrot.slane %v3004, 2
      %v3007 = vshll.u32 %v2575, 16
      %v3009 = vrot.slane %v3007, 3
      %v3010 = vor.u32 %v3006, %v3009
      %v3011 = vsel %vm2895, %v3001, %v3010
      %v3013 = vshrl.u32 %v2576, 16
      %v3015 = vrot.slane %v3013, 2
      %v3016 = vshll.u32 %v2576, 16
      %v3018 = vrot.slane %v3016, 3
      %v3019 = vor.u32 %v3015, %v3018
      %v3020 = vsel %vm2895, %v3010, %v3019
      %v3022 = vshrl.u32 %v2577, 16
      %v3024 = vrot.slane %v3022, 2
      %v3025 = vshll.u32 %v2577, 16
      %v3027 = vrot.slane %v3025, 3
      %v3028 = vor.u32 %v3024, %v3027
      %v3029 = vsel %vm2895, %v3019, %v3028
      %v3031 = vshrl.u32 %v2578, 16
      %v3033 = vrot.slane %v3031, 2
      %v3034 = vshll.u32 %v2578, 16
      %v3036 = vrot.slane %v3034, 3
      %v3037 = vor.u32 %v3033, %v3036
      %v3038 = vsel %vm2895, %v3028, %v3037
      %v3040 = vshrl.u32 %v2579, 16
      %v3042 = vrot.slane %v3040, 2
      %v3043 = vshll.u32 %v2579, 16
      %v3045 = vrot.slane %v3043, 3
      %v3046 = vor.u32 %v3042, %v3045
      %v3047 = vsel %vm2895, %v3037, %v3046
      %v3049 = vshrl.u32 %v2580, 16
      %v3051 = vrot.slane %v3049, 2
      %v3052 = vshll.u32 %v2580, 16
      %v3054 = vrot.slane %v3052, 3
      %v3055 = vor.u32 %v3051, %v3054
      %v3056 = vsel %vm2895, %v3046, %v3055
      %v3058 = vshrl.u32 %v2894, 16
      %v3060 = vrot.slane %v3058, 2
      %v3061 = vshll.u32 %v2894, 16
      %v3063 = vrot.slane %v3061, 3
      %v3064 = vor.u32 %v3060, %v3063
      %v3065 = vsel %vm2895, %v3055, %v3064
      %v3067 = vsel %vm481, %v2912, 0
      %v3070 = vsel %vm481, %v2921, 0
      %v3073 = vsel %vm481, %v2930, 0
      %v3076 = vsel %vm481, %v2939, 0
      %v3079 = vsel %vm481, %v2948, 0
      %v3082 = vsel %vm481, %v2957, 0
      %v3085 = vsel %vm481, %v2966, 0
      %v3088 = vsel %vm481, %v2975, 0
      %v3091 = vsel %vm481, %v2984, 0
      %v3094 = vsel %vm481, %v2993, 0
      %v3097 = vsel %vm481, %v3002, 0
      %v3100 = vsel %vm481, %v3011, 0
      %v3103 = vsel %vm481, %v3020, 0
      %v3106 = vsel %vm481, %v3029, 0
      %v3109 = vsel %vm481, %v3038, 0
      %v3112 = vsel %vm481, %v3047, 0
      %v3115 = vsel %vm481, %v3056, 0
      %v3118 = vsel %vm481, %v3065, 0
      %v3121 = vand.u32 %v2891, %v539
      %3123 = vmatprep.subr.bf16.mxu0 0
      %3124 = vmatpush1.bf16.msra.mxu0 0
      %3125 = vmatprep.subr.bf16.mxu0 0
      %3126 = vmatpush1.bf16.msra.mxu0 0
      %3127 = vmatprep.subr.bf16.mxu0 0
      %3128 = vmatpush1.bf16.msra.mxu0 0
      %3129 = vmatprep.subr.bf16.mxu0 0
      %3130 = vmatpush1.bf16.msra.mxu0 0
      %3131 = vmatprep.subr.bf16.mxu0 0
      %3132 = vmatpush1.bf16.msra.mxu0 0
      %3133 = vmatprep.subr.bf16.mxu0 0
      %3134 = vmatpush1.bf16.msra.mxu0 0
      %3135 = vmatprep.subr.bf16.mxu0 0
      %3136 = vmatpush1.bf16.msra.mxu0 0
      %3137 = vmatprep.subr.bf16.mxu0 0
      %3138 = vmatpush1.bf16.msra.mxu0 %v3121
      %3139 = vmatprep.subr.bf16.mxu0 0
      %3140 = vmatpush2.bf16.msra.mxu0 0
      %3141 = vmatprep.subr.bf16.mxu0 0
      %3142 = vmatpush2.bf16.msra.mxu0 0
      %3143 = vmatprep.subr.bf16.mxu0 0
      %3144 = vmatpush2.bf16.msra.mxu0 0
      %3145 = vmatprep.subr.bf16.mxu0 0
      %3146 = vmatpush2.bf16.msra.mxu0 0
      %3147 = vmatprep.subr.bf16.mxu0 0
      %3148 = vmatpush2.bf16.msra.mxu0 0
      %3149 = vmatprep.subr.bf16.mxu0 0
      %3150 = vmatpush2.bf16.msra.mxu0 0
      %3151 = vmatprep.subr.bf16.mxu0 0
      %3152 = vmatpush2.bf16.msra.mxu0 0
      %3153 = vmatprep.subr.bf16.mxu0 0
      %3154 = vmatpush2.bf16.msra.mxu0 0
      %3155 = vmatprep.mubr.bf16.mxu0 0
      %3156 = vmatmul.mubr.bf16.gmra.mxu0 %v3067
      %v3157 = vpop.f32.mrf.mxu0
      %v3158 = vadd.f32 0.0, %v3157
      %v3159 = vpop.f32.mrf.mxu0
      %v3160 = vpop.f32.mrf.mxu0
      %v3161 = vadd.f32 0.0, %v3160
      %v3162 = vpop.f32.mrf.mxu0
      %3163 = vmatprep.mubr.bf16.mxu0 0
      %3164 = vmatmul.mubr.bf16.gmra.mxu0 %v3070
      %v3165 = vpop.f32.mrf.mxu0
      %v3166 = vadd.f32 0.0, %v3165
      %v3167 = vpop.f32.mrf.mxu0
      %v3168 = vpop.f32.mrf.mxu0
      %v3169 = vadd.f32 0.0, %v3168
      %v3170 = vpop.f32.mrf.mxu0
      %3171 = vmatprep.mubr.bf16.mxu0 0
      %3172 = vmatmul.mubr.bf16.gmra.mxu0 %v3073
      %v3173 = vpop.f32.mrf.mxu0
      %v3174 = vadd.f32 0.0, %v3173
      %v3175 = vpop.f32.mrf.mxu0
      %v3176 = vpop.f32.mrf.mxu0
      %v3177 = vadd.f32 0.0, %v3176
      %v3178 = vpop.f32.mrf.mxu0
      %3179 = vmatprep.mubr.bf16.mxu0 0
      %3180 = vmatmul.mubr.bf16.gmra.mxu0 %v3076
      %v3181 = vpop.f32.mrf.mxu0
      %v3182 = vadd.f32 0.0, %v3181
      %v3183 = vpop.f32.mrf.mxu0
      %v3184 = vpop.f32.mrf.mxu0
      %v3185 = vadd.f32 0.0, %v3184
      %v3186 = vpop.f32.mrf.mxu0
      %3187 = vmatprep.mubr.bf16.mxu0 0
      %3188 = vmatmul.mubr.bf16.gmra.mxu0 %v3079
      %v3189 = vpop.f32.mrf.mxu0
      %v3190 = vadd.f32 0.0, %v3189
      %v3191 = vpop.f32.mrf.mxu0
      %v3192 = vpop.f32.mrf.mxu0
      %v3193 = vadd.f32 0.0, %v3192
      %v3194 = vpop.f32.mrf.mxu0
      %3195 = vmatprep.mubr.bf16.mxu0 0
      %3196 = vmatmul.mubr.bf16.gmra.mxu0 %v3082
      %v3197 = vpop.f32.mrf.mxu0
      %v3198 = vadd.f32 0.0, %v3197
      %v3199 = vpop.f32.mrf.mxu0
      %v3200 = vpop.f32.mrf.mxu0
      %v3201 = vadd.f32 0.0, %v3200
      %v3202 = vpop.f32.mrf.mxu0
      %3203 = vmatprep.mubr.bf16.mxu0 0
      %3204 = vmatmul.mubr.bf16.gmra.mxu0 %v3085
      %v3205 = vpop.f32.mrf.mxu0
      %v3206 = vadd.f32 0.0, %v3205
      %v3207 = vpop.f32.mrf.mxu0
      %v3208 = vpop.f32.mrf.mxu0
      %v3209 = vadd.f32 0.0, %v3208
      %v3210 = vpop.f32.mrf.mxu0
      %3211 = vmatprep.mubr.bf16.mxu0 0
      %3212 = vmatmul.mubr.bf16.gmra.mxu0 %v3088
      %v3213 = vpop.f32.mrf.mxu0
      %v3214 = vadd.f32 0.0, %v3213
      %v3215 = vpop.f32.mrf.mxu0
      %v3216 = vpop.f32.mrf.mxu0
      %v3217 = vadd.f32 0.0, %v3216
      %v3218 = vpop.f32.mrf.mxu0
      %3219 = vmatprep.mubr.bf16.mxu0 0
      %3220 = vmatmul.mubr.bf16.gmra.mxu0 %v3091
      %v3221 = vpop.f32.mrf.mxu0
      %v3222 = vadd.f32 0.0, %v3221
      %v3223 = vpop.f32.mrf.mxu0
      %v3224 = vpop.f32.mrf.mxu0
      %v3225 = vadd.f32 0.0, %v3224
      %v3226 = vpop.f32.mrf.mxu0
      %3227 = vmatprep.mubr.bf16.mxu0 0
      %3228 = vmatmul.mubr.bf16.gmra.mxu0 %v3094
      %v3229 = vpop.f32.mrf.mxu0
      %v3230 = vadd.f32 0.0, %v3229
      %v3231 = vpop.f32.mrf.mxu0
      %v3232 = vpop.f32.mrf.mxu0
      %v3233 = vadd.f32 0.0, %v3232
      %v3234 = vpop.f32.mrf.mxu0
      %3235 = vmatprep.mubr.bf16.mxu0 0
      %3236 = vmatmul.mubr.bf16.gmra.mxu0 %v3097
      %v3237 = vpop.f32.mrf.mxu0
      %v3238 = vadd.f32 0.0, %v3237
      %v3239 = vpop.f32.mrf.mxu0
      %v3240 = vpop.f32.mrf.mxu0
      %v3241 = vadd.f32 0.0, %v3240
      %v3242 = vpop.f32.mrf.mxu0
      %3243 = vmatprep.mubr.bf16.mxu0 0
      %3244 = vmatmul.mubr.bf16.gmra.mxu0 %v3100
      %v3245 = vpop.f32.mrf.mxu0
      %v3246 = vadd.f32 0.0, %v3245
      %v3247 = vpop.f32.mrf.mxu0
      %v3248 = vpop.f32.mrf.mxu0
      %v3249 = vadd.f32 0.0, %v3248
      %v3250 = vpop.f32.mrf.mxu0
      %3251 = vmatprep.mubr.bf16.mxu0 0
      %3252 = vmatmul.mubr.bf16.gmra.mxu0 %v3103
      %v3253 = vpop.f32.mrf.mxu0
      %v3254 = vadd.f32 0.0, %v3253
      %v3255 = vpop.f32.mrf.mxu0
      %v3256 = vpop.f32.mrf.mxu0
      %v3257 = vadd.f32 0.0, %v3256
      %v3258 = vpop.f32.mrf.mxu0
      %3259 = vmatprep.mubr.bf16.mxu0 0
      %3260 = vmatmul.mubr.bf16.gmra.mxu0 %v3106
      %v3261 = vpop.f32.mrf.mxu0
      %v3262 = vadd.f32 0.0, %v3261
      %v3263 = vpop.f32.mrf.mxu0
      %v3264 = vpop.f32.mrf.mxu0
      %v3265 = vadd.f32 0.0, %v3264
      %v3266 = vpop.f32.mrf.mxu0
      %3267 = vmatprep.mubr.bf16.mxu0 0
      %3268 = vmatmul.mubr.bf16.gmra.mxu0 %v3109
      %v3269 = vpop.f32.mrf.mxu0
      %v3270 = vadd.f32 0.0, %v3269
      %v3271 = vpop.f32.mrf.mxu0
      %v3272 = vpop.f32.mrf.mxu0
      %v3273 = vadd.f32 0.0, %v3272
      %v3274 = vpop.f32.mrf.mxu0
      %3275 = vmatprep.mubr.bf16.mxu0 0
      %3276 = vmatmul.mubr.bf16.gmra.mxu0 %v3112
      %v3277 = vpop.f32.mrf.mxu0
      %v3278 = vadd.f32 0.0, %v3277
      %v3279 = vpop.f32.mrf.mxu0
      %v3280 = vpop.f32.mrf.mxu0
      %v3281 = vadd.f32 0.0, %v3280
      %v3282 = vpop.f32.mrf.mxu0
      %3283 = vmatprep.mubr.bf16.mxu0 0
      %3284 = vmatmul.mubr.bf16.gmra.mxu0 %v3115
      %v3285 = vpop.f32.mrf.mxu0
      %v3286 = vadd.f32 0.0, %v3285
      %v3287 = vpop.f32.mrf.mxu0
      %v3288 = vpop.f32.mrf.mxu0
      %v3289 = vadd.f32 0.0, %v3288
      %v3290 = vpop.f32.mrf.mxu0
      %3291 = vmatprep.mubr.bf16.mxu0 0
      %3292 = vmatmul.mubr.bf16.gmra.mxu0 %v3118
      %v3293 = vpop.f32.mrf.mxu0
      %v3294 = vadd.f32 0.0, %v3293
      %v3295 = vpop.f32.mrf.mxu0
      %v3296 = vpop.f32.mrf.mxu0
      %v3297 = vadd.f32 0.0, %v3296
      %v3298 = vpop.f32.mrf.mxu0
      %3299 = vdwg.mxu0
      %v3300 = vadd.f32 %v2853, %v3158
      %v3301 = vadd.f32 %v2854, %v3161
      %v3302 = vadd.f32 %v2855, %v3166
      %v3303 = vadd.f32 %v2856, %v3169
      %v3304 = vadd.f32 %v2857, %v3174
      %v3305 = vadd.f32 %v2858, %v3177
      %v3306 = vadd.f32 %v2859, %v3182
      %v3307 = vadd.f32 %v2860, %v3185
      %v3308 = vadd.f32 %v2861, %v3190
      %v3309 = vadd.f32 %v2862, %v3193
      %v3310 = vadd.f32 %v2863, %v3198
      %v3311 = vadd.f32 %v2864, %v3201
      %v3312 = vadd.f32 %v2865, %v3206
      %v3313 = vadd.f32 %v2866, %v3209
      %v3314 = vadd.f32 %v2867, %v3214
      %v3315 = vadd.f32 %v2868, %v3217
      %v3316 = vadd.f32 %v2869, %v3222
      %v3317 = vadd.f32 %v2870, %v3225
      %v3318 = vadd.f32 %v2871, %v3230
      %v3319 = vadd.f32 %v2872, %v3233
      %v3320 = vadd.f32 %v2873, %v3238
      %v3321 = vadd.f32 %v2874, %v3241
      %v3322 = vadd.f32 %v2875, %v3246
      %v3323 = vadd.f32 %v2876, %v3249
      %v3324 = vadd.f32 %v2877, %v3254
      %v3325 = vadd.f32 %v2878, %v3257
      %v3326 = vadd.f32 %v2879, %v3262
      %v3327 = vadd.f32 %v2880, %v3265
      %v3328 = vadd.f32 %v2881, %v3270
      %v3329 = vadd.f32 %v2882, %v3273
      %v3330 = vadd.f32 %v2883, %v3278
      %v3331 = vadd.f32 %v2884, %v3281
      %v3332 = vadd.f32 %v2885, %v3286
      %v3333 = vadd.f32 %v2886, %v3289
      %v3334 = vadd.f32 %v2887, %v3294
      %v3335 = vadd.f32 %v2888, %v3297
      %v3336 = vld [vmem:[%s192 + $0x10] sm:$0x8]
      %s3337 = scalar_lea.vmem %s1, 16
      %v3338 = vld [vmem:[%s3337] sm:$0x3]
      %v3340 = vunpack.c.l.b16 %v3336
      %v3341 = vpack.c.b16 %v2527, %v3340
      %vm3342 = vcmask 1044480
      %v3343 = vrot.slane %v3341, 3
      %v3344 = vrot.slane %v2564, 3
      %v3345 = vsel %vm3342, %v3343, %v3344
      %v3346 = vrot.slane %v2565, 3
      %v3347 = vsel %vm3342, %v3344, %v3346
      %v3348 = vrot.slane %v2566, 3
      %v3349 = vsel %vm3342, %v3346, %v3348
      %v3350 = vrot.slane %v2567, 3
      %v3351 = vsel %vm3342, %v3348, %v3350
      %v3352 = vrot.slane %v2568, 3
      %v3353 = vsel %vm3342, %v3350, %v3352
      %v3354 = vrot.slane %v2569, 3
      %v3355 = vsel %vm3342, %v3352, %v3354
      %v3356 = vrot.slane %v2570, 3
      %v3357 = vsel %vm3342, %v3354, %v3356
      %v3358 = vrot.slane %v2571, 3
      %v3359 = vsel %vm3342, %v3356, %v3358
      %v3360 = vrot.slane %v2572, 3
      %v3361 = vsel %vm3342, %v3358, %v3360
      %v3362 = vrot.slane %v2573, 3
      %v3363 = vsel %vm3342, %v3360, %v3362
      %v3364 = vrot.slane %v2574, 3
      %v3365 = vsel %vm3342, %v3362, %v3364
      %v3366 = vrot.slane %v2575, 3
      %v3367 = vsel %vm3342, %v3364, %v3366
      %v3368 = vrot.slane %v2576, 3
      %v3369 = vsel %vm3342, %v3366, %v3368
      %v3370 = vrot.slane %v2577, 3
      %v3371 = vsel %vm3342, %v3368, %v3370
      %v3372 = vrot.slane %v2578, 3
      %v3373 = vsel %vm3342, %v3370, %v3372
      %v3374 = vrot.slane %v2579, 3
      %v3375 = vsel %vm3342, %v3372, %v3374
      %v3376 = vrot.slane %v2580, 3
      %v3377 = vsel %vm3342, %v3374, %v3376
      %v3378 = vrot.slane %v2894, 3
      %v3379 = vsel %vm3342, %v3376, %v3378
      %v3381 = vsel %vm481, %v3345, 0
      %v3384 = vsel %vm481, %v3347, 0
      %v3387 = vsel %vm481, %v3349, 0
      %v3390 = vsel %vm481, %v3351, 0
      %v3393 = vsel %vm481, %v3353, 0
      %v3396 = vsel %vm481, %v3355, 0
      %v3399 = vsel %vm481, %v3357, 0
      %v3402 = vsel %vm481, %v3359, 0
      %v3405 = vsel %vm481, %v3361, 0
      %v3408 = vsel %vm481, %v3363, 0
      %v3411 = vsel %vm481, %v3365, 0
      %v3414 = vsel %vm481, %v3367, 0
      %v3417 = vsel %vm481, %v3369, 0
      %v3420 = vsel %vm481, %v3371, 0
      %v3423 = vsel %vm481, %v3373, 0
      %v3426 = vsel %vm481, %v3375, 0
      %v3429 = vsel %vm481, %v3377, 0
      %v3432 = vsel %vm481, %v3379, 0
      %v3435 = vand.u32 %v3338, %v539
      %3437 = vmatprep.subr.bf16.mxu0 0
      %3438 = vmatpush1.bf16.msra.mxu0 0
      %3439 = vmatprep.subr.bf16.mxu0 0
      %3440 = vmatpush1.bf16.msra.mxu0 0
      %3441 = vmatprep.subr.bf16.mxu0 0
      %3442 = vmatpush1.bf16.msra.mxu0 0
      %3443 = vmatprep.subr.bf16.mxu0 0
      %3444 = vmatpush1.bf16.msra.mxu0 0
      %3445 = vmatprep.subr.bf16.mxu0 0
      %3446 = vmatpush1.bf16.msra.mxu0 0
      %3447 = vmatprep.subr.bf16.mxu0 0
      %3448 = vmatpush1.bf16.msra.mxu0 0
      %3449 = vmatprep.subr.bf16.mxu0 0
      %3450 = vmatpush1.bf16.msra.mxu0 0
      %3451 = vmatprep.subr.bf16.mxu0 0
      %3452 = vmatpush1.bf16.msra.mxu0 %v3435
      %3453 = vmatprep.subr.bf16.mxu0 0
      %3454 = vmatpush2.bf16.msra.mxu0 0
      %3455 = vmatprep.subr.bf16.mxu0 0
      %3456 = vmatpush2.bf16.msra.mxu0 0
      %3457 = vmatprep.subr.bf16.mxu0 0
      %3458 = vmatpush2.bf16.msra.mxu0 0
      %3459 = vmatprep.subr.bf16.mxu0 0
      %3460 = vmatpush2.bf16.msra.mxu0 0
      %3461 = vmatprep.subr.bf16.mxu0 0
      %3462 = vmatpush2.bf16.msra.mxu0 0
      %3463 = vmatprep.subr.bf16.mxu0 0
      %3464 = vmatpush2.bf16.msra.mxu0 0
      %3465 = vmatprep.subr.bf16.mxu0 0
      %3466 = vmatpush2.bf16.msra.mxu0 0
      %3467 = vmatprep.subr.bf16.mxu0 0
      %3468 = vmatpush2.bf16.msra.mxu0 0
      %3469 = vmatprep.mubr.bf16.mxu0 0
      %3470 = vmatmul.mubr.bf16.gmra.mxu0 %v3381
      %v3471 = vpop.f32.mrf.mxu0
      %v3472 = vadd.f32 0.0, %v3471
      %v3473 = vpop.f32.mrf.mxu0
      %v3474 = vpop.f32.mrf.mxu0
      %v3475 = vadd.f32 0.0, %v3474
      %v3476 = vpop.f32.mrf.mxu0
      %3477 = vmatprep.mubr.bf16.mxu0 0
      %3478 = vmatmul.mubr.bf16.gmra.mxu0 %v3384
      %v3479 = vpop.f32.mrf.mxu0
      %v3480 = vadd.f32 0.0, %v3479
      %v3481 = vpop.f32.mrf.mxu0
      %v3482 = vpop.f32.mrf.mxu0
      %v3483 = vadd.f32 0.0, %v3482
      %v3484 = vpop.f32.mrf.mxu0
      %3485 = vmatprep.mubr.bf16.mxu0 0
      %3486 = vmatmul.mubr.bf16.gmra.mxu0 %v3387
      %v3487 = vpop.f32.mrf.mxu0
      %v3488 = vadd.f32 0.0, %v3487
      %v3489 = vpop.f32.mrf.mxu0
      %v3490 = vpop.f32.mrf.mxu0
      %v3491 = vadd.f32 0.0, %v3490
      %v3492 = vpop.f32.mrf.mxu0
      %3493 = vmatprep.mubr.bf16.mxu0 0
      %3494 = vmatmul.mubr.bf16.gmra.mxu0 %v3390
      %v3495 = vpop.f32.mrf.mxu0
      %v3496 = vadd.f32 0.0, %v3495
      %v3497 = vpop.f32.mrf.mxu0
      %v3498 = vpop.f32.mrf.mxu0
      %v3499 = vadd.f32 0.0, %v3498
      %v3500 = vpop.f32.mrf.mxu0
      %3501 = vmatprep.mubr.bf16.mxu0 0
      %3502 = vmatmul.mubr.bf16.gmra.mxu0 %v3393
      %v3503 = vpop.f32.mrf.mxu0
      %v3504 = vadd.f32 0.0, %v3503
      %v3505 = vpop.f32.mrf.mxu0
      %v3506 = vpop.f32.mrf.mxu0
      %v3507 = vadd.f32 0.0, %v3506
      %v3508 = vpop.f32.mrf.mxu0
      %3509 = vmatprep.mubr.bf16.mxu0 0
      %3510 = vmatmul.mubr.bf16.gmra.mxu0 %v3396
      %v3511 = vpop.f32.mrf.mxu0
      %v3512 = vadd.f32 0.0, %v3511
      %v3513 = vpop.f32.mrf.mxu0
      %v3514 = vpop.f32.mrf.mxu0
      %v3515 = vadd.f32 0.0, %v3514
      %v3516 = vpop.f32.mrf.mxu0
      %3517 = vmatprep.mubr.bf16.mxu0 0
      %3518 = vmatmul.mubr.bf16.gmra.mxu0 %v3399
      %v3519 = vpop.f32.mrf.mxu0
      %v3520 = vadd.f32 0.0, %v3519
      %v3521 = vpop.f32.mrf.mxu0
      %v3522 = vpop.f32.mrf.mxu0
      %v3523 = vadd.f32 0.0, %v3522
      %v3524 = vpop.f32.mrf.mxu0
      %3525 = vmatprep.mubr.bf16.mxu0 0
      %3526 = vmatmul.mubr.bf16.gmra.mxu0 %v3402
      %v3527 = vpop.f32.mrf.mxu0
      %v3528 = vadd.f32 0.0, %v3527
      %v3529 = vpop.f32.mrf.mxu0
      %v3530 = vpop.f32.mrf.mxu0
      %v3531 = vadd.f32 0.0, %v3530
      %v3532 = vpop.f32.mrf.mxu0
      %3533 = vmatprep.mubr.bf16.mxu0 0
      %3534 = vmatmul.mubr.bf16.gmra.mxu0 %v3405
      %v3535 = vpop.f32.mrf.mxu0
      %v3536 = vadd.f32 0.0, %v3535
      %v3537 = vpop.f32.mrf.mxu0
      %v3538 = vpop.f32.mrf.mxu0
      %v3539 = vadd.f32 0.0, %v3538
      %v3540 = vpop.f32.mrf.mxu0
      %3541 = vmatprep.mubr.bf16.mxu0 0
      %3542 = vmatmul.mubr.bf16.gmra.mxu0 %v3408
      %v3543 = vpop.f32.mrf.mxu0
      %v3544 = vadd.f32 0.0, %v3543
      %v3545 = vpop.f32.mrf.mxu0
      %v3546 = vpop.f32.mrf.mxu0
      %v3547 = vadd.f32 0.0, %v3546
      %v3548 = vpop.f32.mrf.mxu0
      %3549 = vmatprep.mubr.bf16.mxu0 0
      %3550 = vmatmul.mubr.bf16.gmra.mxu0 %v3411
      %v3551 = vpop.f32.mrf.mxu0
      %v3552 = vadd.f32 0.0, %v3551
      %v3553 = vpop.f32.mrf.mxu0
      %v3554 = vpop.f32.mrf.mxu0
      %v3555 = vadd.f32 0.0, %v3554
      %v3556 = vpop.f32.mrf.mxu0
      %3557 = vmatprep.mubr.bf16.mxu0 0
      %3558 = vmatmul.mubr.bf16.gmra.mxu0 %v3414
      %v3559 = vpop.f32.mrf.mxu0
      %v3560 = vadd.f32 0.0, %v3559
      %v3561 = vpop.f32.mrf.mxu0
      %v3562 = vpop.f32.mrf.mxu0
      %v3563 = vadd.f32 0.0, %v3562
      %v3564 = vpop.f32.mrf.mxu0
      %3565 = vmatprep.mubr.bf16.mxu0 0
      %3566 = vmatmul.mubr.bf16.gmra.mxu0 %v3417
      %v3567 = vpop.f32.mrf.mxu0
      %v3568 = vadd.f32 0.0, %v3567
      %v3569 = vpop.f32.mrf.mxu0
      %v3570 = vpop.f32.mrf.mxu0
      %v3571 = vadd.f32 0.0, %v3570
      %v3572 = vpop.f32.mrf.mxu0
      %3573 = vmatprep.mubr.bf16.mxu0 0
      %3574 = vmatmul.mubr.bf16.gmra.mxu0 %v3420
      %v3575 = vpop.f32.mrf.mxu0
      %v3576 = vadd.f32 0.0, %v3575
      %v3577 = vpop.f32.mrf.mxu0
      %v3578 = vpop.f32.mrf.mxu0
      %v3579 = vadd.f32 0.0, %v3578
      %v3580 = vpop.f32.mrf.mxu0
      %3581 = vmatprep.mubr.bf16.mxu0 0
      %3582 = vmatmul.mubr.bf16.gmra.mxu0 %v3423
      %v3583 = vpop.f32.mrf.mxu0
      %v3584 = vadd.f32 0.0, %v3583
      %v3585 = vpop.f32.mrf.mxu0
      %v3586 = vpop.f32.mrf.mxu0
      %v3587 = vadd.f32 0.0, %v3586
      %v3588 = vpop.f32.mrf.mxu0
      %3589 = vmatprep.mubr.bf16.mxu0 0
      %3590 = vmatmul.mubr.bf16.gmra.mxu0 %v3426
      %v3591 = vpop.f32.mrf.mxu0
      %v3592 = vadd.f32 0.0, %v3591
      %v3593 = vpop.f32.mrf.mxu0
      %v3594 = vpop.f32.mrf.mxu0
      %v3595 = vadd.f32 0.0, %v3594
      %v3596 = vpop.f32.mrf.mxu0
      %3597 = vmatprep.mubr.bf16.mxu0 0
      %3598 = vmatmul.mubr.bf16.gmra.mxu0 %v3429
      %v3599 = vpop.f32.mrf.mxu0
      %v3600 = vadd.f32 0.0, %v3599
      %v3601 = vpop.f32.mrf.mxu0
      %v3602 = vpop.f32.mrf.mxu0
      %v3603 = vadd.f32 0.0, %v3602
      %v3604 = vpop.f32.mrf.mxu0
      %3605 = vmatprep.mubr.bf16.mxu0 0
      %3606 = vmatmul.mubr.bf16.gmra.mxu0 %v3432
      %v3607 = vpop.f32.mrf.mxu0
      %v3608 = vadd.f32 0.0, %v3607
      %v3609 = vpop.f32.mrf.mxu0
      %v3610 = vpop.f32.mrf.mxu0
      %v3611 = vadd.f32 0.0, %v3610
      %v3612 = vpop.f32.mrf.mxu0
      %3613 = vdwg.mxu0
      %v3614 = vadd.f32 %v3300, %v3472
      %v3615 = vadd.f32 %v3301, %v3475
      %v3616 = vadd.f32 %v3302, %v3480
      %v3617 = vadd.f32 %v3303, %v3483
      %v3618 = vadd.f32 %v3304, %v3488
      %v3619 = vadd.f32 %v3305, %v3491
      %v3620 = vadd.f32 %v3306, %v3496
      %v3621 = vadd.f32 %v3307, %v3499
      %v3622 = vadd.f32 %v3308, %v3504
      %v3623 = vadd.f32 %v3309, %v3507
      %v3624 = vadd.f32 %v3310, %v3512
      %v3625 = vadd.f32 %v3311, %v3515
      %v3626 = vadd.f32 %v3312, %v3520
      %v3627 = vadd.f32 %v3313, %v3523
      %v3628 = vadd.f32 %v3314, %v3528
      %v3629 = vadd.f32 %v3315, %v3531
      %v3630 = vadd.f32 %v3316, %v3536
      %v3631 = vadd.f32 %v3317, %v3539
      %v3632 = vadd.f32 %v3318, %v3544
      %v3633 = vadd.f32 %v3319, %v3547
      %v3634 = vadd.f32 %v3320, %v3552
      %v3635 = vadd.f32 %v3321, %v3555
      %v3636 = vadd.f32 %v3322, %v3560
      %v3637 = vadd.f32 %v3323, %v3563
      %v3638 = vadd.f32 %v3324, %v3568
      %v3639 = vadd.f32 %v3325, %v3571
      %v3640 = vadd.f32 %v3326, %v3576
      %v3641 = vadd.f32 %v3327, %v3579
      %v3642 = vadd.f32 %v3328, %v3584
      %v3643 = vadd.f32 %v3329, %v3587
      %v3644 = vadd.f32 %v3330, %v3592
      %v3645 = vadd.f32 %v3331, %v3595
      %v3646 = vadd.f32 %v3332, %v3600
      %v3647 = vadd.f32 %v3333, %v3603
      %v3648 = vadd.f32 %v3334, %v3608
      %v3649 = vadd.f32 %v3335, %v3611
      %v3650 = vld [vmem:[%s2] sm:$0x1]
      %v3652 = vlaneseq
      %v3653 = vshrl.u32 %v3652, 7
      %v3654 = vsub.s32 0, %v3653
      %v3655 = vrot.slane %v3650, %v3654
      %v3657 = vadd.f32 %v3614, %v3655
      %v3658 = vadd.f32 %v3615, %v3655
      %v3659 = vadd.f32 %v3616, %v3655
      %v3660 = vadd.f32 %v3617, %v3655
      %v3661 = vadd.f32 %v3618, %v3655
      %v3662 = vadd.f32 %v3619, %v3655
      %v3663 = vadd.f32 %v3620, %v3655
      %v3664 = vadd.f32 %v3621, %v3655
      %v3665 = vadd.f32 %v3622, %v3655
      %v3666 = vadd.f32 %v3623, %v3655
      %v3667 = vadd.f32 %v3624, %v3655
      %v3668 = vadd.f32 %v3625, %v3655
      %v3669 = vadd.f32 %v3626, %v3655
      %v3670 = vadd.f32 %v3627, %v3655
      %v3671 = vadd.f32 %v3628, %v3655
      %v3672 = vadd.f32 %v3629, %v3655
      %v3673 = vadd.f32 %v3630, %v3655
      %v3674 = vadd.f32 %v3631, %v3655
      %v3675 = vadd.f32 %v3632, %v3655
      %v3676 = vadd.f32 %v3633, %v3655
      %v3677 = vadd.f32 %v3634, %v3655
      %v3678 = vadd.f32 %v3635, %v3655
      %v3679 = vadd.f32 %v3636, %v3655
      %v3680 = vadd.f32 %v3637, %v3655
      %v3681 = vadd.f32 %v3638, %v3655
      %v3682 = vadd.f32 %v3639, %v3655
      %v3683 = vadd.f32 %v3640, %v3655
      %v3684 = vadd.f32 %v3641, %v3655
      %v3685 = vadd.f32 %v3642, %v3655
      %v3686 = vadd.f32 %v3643, %v3655
      %v3687 = vadd.f32 %v3644, %v3655
      %v3688 = vadd.f32 %v3645, %v3655
      %v3689 = vadd.f32 %v3646, %v3655
      %v3690 = vadd.f32 %v3647, %v3655
      %v3691 = vadd.f32 %v3648, %v3655
      %v3692 = vadd.f32 %v3649, %v3655
      %v3693 = vmax.f32 %v3657, 0.0
      %v3694 = vmax.f32 %v3658, 0.0
      %v3695 = vmax.f32 %v3659, 0.0
      %v3696 = vmax.f32 %v3660, 0.0
      %v3697 = vmax.f32 %v3661, 0.0
      %v3698 = vmax.f32 %v3662, 0.0
      %v3699 = vmax.f32 %v3663, 0.0
      %v3700 = vmax.f32 %v3664, 0.0
      %v3701 = vmax.f32 %v3665, 0.0
      %v3702 = vmax.f32 %v3666, 0.0
      %v3703 = vmax.f32 %v3667, 0.0
      %v3704 = vmax.f32 %v3668, 0.0
      %v3705 = vmax.f32 %v3669, 0.0
      %v3706 = vmax.f32 %v3670, 0.0
      %v3707 = vmax.f32 %v3671, 0.0
      %v3708 = vmax.f32 %v3672, 0.0
      %v3709 = vmax.f32 %v3673, 0.0
      %v3710 = vmax.f32 %v3674, 0.0
      %v3711 = vmax.f32 %v3675, 0.0
      %v3712 = vmax.f32 %v3676, 0.0
      %v3713 = vmax.f32 %v3677, 0.0
      %v3714 = vmax.f32 %v3678, 0.0
      %v3715 = vmax.f32 %v3679, 0.0
      %v3716 = vmax.f32 %v3680, 0.0
      %v3717 = vmax.f32 %v3681, 0.0
      %v3718 = vmax.f32 %v3682, 0.0
      %v3719 = vmax.f32 %v3683, 0.0
      %v3720 = vmax.f32 %v3684, 0.0
      %v3721 = vmax.f32 %v3685, 0.0
      %v3722 = vmax.f32 %v3686, 0.0
      %v3723 = vmax.f32 %v3687, 0.0
      %v3724 = vmax.f32 %v3688, 0.0
      %v3725 = vmax.f32 %v3689, 0.0
      %v3726 = vmax.f32 %v3690, 0.0
      %v3727 = vmax.f32 %v3691, 0.0
      %v3728 = vmax.f32 %v3692, 0.0
      %v3729 = vld [vmem:[%s3] sm:$0xff]
      %v3730 = vld [vmem:[%s3 + $0x8] sm:$0xff]
      %v3731 = vld [vmem:[%s3 + $0x10] sm:$0xff]
      %v3732 = vld [vmem:[%s3 + $0x18] sm:$0xff]
      %v3733 = vld [vmem:[%s3 + $0x20] sm:$0xff]
      %v3734 = vld [vmem:[%s3 + $0x28] sm:$0xff]
      %v3735 = vld [vmem:[%s3 + $0x30] sm:$0xff]
      %v3736 = vld [vmem:[%s3 + $0x38] sm:$0xff]
      %v3737 = vld [vmem:[%s3 + $0x40] sm:$0xff]
      %v3738 = vld [vmem:[%s3 + $0x48] sm:$0xff]
      %v3739 = vld [vmem:[%s3 + $0x50] sm:$0xff]
      %v3740 = vld [vmem:[%s3 + $0x58] sm:$0xff]
      %v3741 = vld [vmem:[%s3 + $0x60] sm:$0xff]
      %v3742 = vld [vmem:[%s3 + $0x68] sm:$0xff]
      %v3743 = vld [vmem:[%s3 + $0x70] sm:$0xff]
      %v3744 = vld [vmem:[%s3 + $0x78] sm:$0xff]
      %v3745 = vld [vmem:[%s3 + $0x80] sm:$0xff]
      %v3746 = vld [vmem:[%s3 + $0x88] sm:$0xff]
      %v3747 = vld [vmem:[%s3 + $0x90] sm:$0xff]
      %v3748 = vld [vmem:[%s3 + $0x98] sm:$0xff]
      %v3749 = vld [vmem:[%s3 + $0xa0] sm:$0xff]
      %v3750 = vld [vmem:[%s3 + $0xa8] sm:$0xff]
      %v3751 = vld [vmem:[%s3 + $0xb0] sm:$0xff]
      %v3752 = vld [vmem:[%s3 + $0xb8] sm:$0xff]
      %v3753 = vld [vmem:[%s3 + $0xc0] sm:$0xff]
      %v3754 = vld [vmem:[%s3 + $0xc8] sm:$0xff]
      %v3755 = vld [vmem:[%s3 + $0xd0] sm:$0xff]
      %v3756 = vld [vmem:[%s3 + $0xd8] sm:$0xff]
      %v3757 = vld [vmem:[%s3 + $0xe0] sm:$0xff]
      %v3758 = vld [vmem:[%s3 + $0xe8] sm:$0xff]
      %v3759 = vld [vmem:[%s3 + $0xf0] sm:$0xff]
      %v3760 = vld [vmem:[%s3 + $0xf8] sm:$0xff]
      %v3761 = vld [vmem:[%s3 + $0x100] sm:$0xff]
      %v3762 = vld [vmem:[%s3 + $0x108] sm:$0xff]
      %v3763 = vld [vmem:[%s3 + $0x110] sm:$0xff]
      %v3764 = vld [vmem:[%s3 + $0x118] sm:$0xff]
      %3766 = vset.pattern.permute.xlu0 0
      %3767 = vperm.xlu0 %3766, %v3729
      %v3768 = vpop.permute.xlu0 %3767
      %3771 = vset.pattern.permute.xlu0 0
      %3772 = vperm.xlu0 %3771, %v3730
      %v3773 = vpop.permute.xlu0 %3772
      %3776 = vset.pattern.permute.xlu0 0
      %3777 = vperm.xlu0 %3776, %v3731
      %v3778 = vpop.permute.xlu0 %3777
      %3781 = vset.pattern.permute.xlu0 0
      %3782 = vperm.xlu0 %3781, %v3732
      %v3783 = vpop.permute.xlu0 %3782
      %3786 = vset.pattern.permute.xlu0 0
      %3787 = vperm.xlu0 %3786, %v3733
      %v3788 = vpop.permute.xlu0 %3787
      %3791 = vset.pattern.permute.xlu0 0
      %3792 = vperm.xlu0 %3791, %v3734
      %v3793 = vpop.permute.xlu0 %3792
      %3796 = vset.pattern.permute.xlu0 0
      %3797 = vperm.xlu0 %3796, %v3735
      %v3798 = vpop.permute.xlu0 %3797
      %3801 = vset.pattern.permute.xlu0 0
      %3802 = vperm.xlu0 %3801, %v3736
      %v3803 = vpop.permute.xlu0 %3802
      %3806 = vset.pattern.permute.xlu0 0
      %3807 = vperm.xlu0 %3806, %v3737
      %v3808 = vpop.permute.xlu0 %3807
      %3811 = vset.pattern.permute.xlu0 0
      %3812 = vperm.xlu0 %3811, %v3738
      %v3813 = vpop.permute.xlu0 %3812
      %3816 = vset.pattern.permute.xlu0 0
      %3817 = vperm.xlu0 %3816, %v3739
      %v3818 = vpop.permute.xlu0 %3817
      %3821 = vset.pattern.permute.xlu0 0
      %3822 = vperm.xlu0 %3821, %v3740
      %v3823 = vpop.permute.xlu0 %3822
      %3826 = vset.pattern.permute.xlu0 0
      %3827 = vperm.xlu0 %3826, %v3741
      %v3828 = vpop.permute.xlu0 %3827
      %3831 = vset.pattern.permute.xlu0 0
      %3832 = vperm.xlu0 %3831, %v3742
      %v3833 = vpop.permute.xlu0 %3832
      %3836 = vset.pattern.permute.xlu0 0
      %3837 = vperm.xlu0 %3836, %v3743
      %v3838 = vpop.permute.xlu0 %3837
      %3841 = vset.pattern.permute.xlu0 0
      %3842 = vperm.xlu0 %3841, %v3744
      %v3843 = vpop.permute.xlu0 %3842
      %3846 = vset.pattern.permute.xlu0 0
      %3847 = vperm.xlu0 %3846, %v3745
      %v3848 = vpop.permute.xlu0 %3847
      %3851 = vset.pattern.permute.xlu0 0
      %3852 = vperm.xlu0 %3851, %v3746
      %v3853 = vpop.permute.xlu0 %3852
      %3856 = vset.pattern.permute.xlu0 0
      %3857 = vperm.xlu0 %3856, %v3747
      %v3858 = vpop.permute.xlu0 %3857
      %3861 = vset.pattern.permute.xlu0 0
      %3862 = vperm.xlu0 %3861, %v3748
      %v3863 = vpop.permute.xlu0 %3862
      %3866 = vset.pattern.permute.xlu0 0
      %3867 = vperm.xlu0 %3866, %v3749
      %v3868 = vpop.permute.xlu0 %3867
      %3871 = vset.pattern.permute.xlu0 0
      %3872 = vperm.xlu0 %3871, %v3750
      %v3873 = vpop.permute.xlu0 %3872
      %3876 = vset.pattern.permute.xlu0 0
      %3877 = vperm.xlu0 %3876, %v3751
      %v3878 = vpop.permute.xlu0 %3877
      %3881 = vset.pattern.permute.xlu0 0
      %3882 = vperm.xlu0 %3881, %v3752
      %v3883 = vpop.permute.xlu0 %3882
      %3886 = vset.pattern.permute.xlu0 0
      %3887 = vperm.xlu0 %3886, %v3753
      %v3888 = vpop.permute.xlu0 %3887
      %3891 = vset.pattern.permute.xlu0 0
      %3892 = vperm.xlu0 %3891, %v3754
      %v3893 = vpop.permute.xlu0 %3892
      %3896 = vset.pattern.permute.xlu0 0
      %3897 = vperm.xlu0 %3896, %v3755
      %v3898 = vpop.permute.xlu0 %3897
      %3901 = vset.pattern.permute.xlu0 0
      %3902 = vperm.xlu0 %3901, %v3756
      %v3903 = vpop.permute.xlu0 %3902
      %3906 = vset.pattern.permute.xlu0 0
      %3907 = vperm.xlu0 %3906, %v3757
      %v3908 = vpop.permute.xlu0 %3907
      %3911 = vset.pattern.permute.xlu0 0
      %3912 = vperm.xlu0 %3911, %v3758
      %v3913 = vpop.permute.xlu0 %3912
      %3916 = vset.pattern.permute.xlu0 0
      %3917 = vperm.xlu0 %3916, %v3759
      %v3918 = vpop.permute.xlu0 %3917
      %3921 = vset.pattern.permute.xlu0 0
      %3922 = vperm.xlu0 %3921, %v3760
      %v3923 = vpop.permute.xlu0 %3922
      %3926 = vset.pattern.permute.xlu0 0
      %3927 = vperm.xlu0 %3926, %v3761
      %v3928 = vpop.permute.xlu0 %3927
      %3931 = vset.pattern.permute.xlu0 0
      %3932 = vperm.xlu0 %3931, %v3762
      %v3933 = vpop.permute.xlu0 %3932
      %3936 = vset.pattern.permute.xlu0 0
      %3937 = vperm.xlu0 %3936, %v3763
      %v3938 = vpop.permute.xlu0 %3937
      %3941 = vset.pattern.permute.xlu0 0
      %3942 = vperm.xlu0 %3941, %v3764
      %v3943 = vpop.permute.xlu0 %3942
      %v3945 = vmul.f32 %v3693, %v3768
      %v3946 = vmul.f32 %v3694, %v3773
      %v3947 = vmul.f32 %v3695, %v3778
      %v3948 = vmul.f32 %v3696, %v3783
      %v3949 = vmul.f32 %v3697, %v3788
      %v3950 = vmul.f32 %v3698, %v3793
      %v3951 = vmul.f32 %v3699, %v3798
      %v3952 = vmul.f32 %v3700, %v3803
      %v3953 = vmul.f32 %v3701, %v3808
      %v3954 = vmul.f32 %v3702, %v3813
      %v3955 = vmul.f32 %v3703, %v3818
      %v3956 = vmul.f32 %v3704, %v3823
      %v3957 = vmul.f32 %v3705, %v3828
      %v3958 = vmul.f32 %v3706, %v3833
      %v3959 = vmul.f32 %v3707, %v3838
      %v3960 = vmul.f32 %v3708, %v3843
      %v3961 = vmul.f32 %v3709, %v3848
      %v3962 = vmul.f32 %v3710, %v3853
      %v3963 = vmul.f32 %v3711, %v3858
      %v3964 = vmul.f32 %v3712, %v3863
      %v3965 = vmul.f32 %v3713, %v3868
      %v3966 = vmul.f32 %v3714, %v3873
      %v3967 = vmul.f32 %v3715, %v3878
      %v3968 = vmul.f32 %v3716, %v3883
      %v3969 = vmul.f32 %v3717, %v3888
      %v3970 = vmul.f32 %v3718, %v3893
      %v3971 = vmul.f32 %v3719, %v3898
      %v3972 = vmul.f32 %v3720, %v3903
      %v3973 = vmul.f32 %v3721, %v3908
      %v3974 = vmul.f32 %v3722, %v3913
      %v3975 = vmul.f32 %v3723, %v3918
      %v3976 = vmul.f32 %v3724, %v3923
      %v3977 = vmul.f32 %v3725, %v3928
      %v3978 = vmul.f32 %v3726, %v3933
      %v3979 = vmul.f32 %v3727, %v3938
      %v3980 = vmul.f32 %v3728, %v3943
      %vm3981 = vcmask 519168
      %3982 = vst.msk [vmem:[%s197] sm:$0xf] %vm3981, 0
      %3983 = vst.msk [vmem:[%s197 + $0x4] sm:$0xf] %vm3981, 0
      %vm3984 = vcmask 517120
      %vm3985 = vsmask.f32 1280
      %vm3986 = vmand %vm3984, %vm3985
      %v3987 = vld [vmem:[%s197 + $0x8] sm:$0x3]
      %v3988 = vsel %vm3986, 0, %v3987
      %3989 = vst [vmem:[%s197 + $0x8] sm:$0x3] %v3988
      %v3990 = vpack.c.bf16 %v3946, %v3945
      %v3991 = vpack.c.bf16 %v3948, %v3947
      %v3992 = vpack.c.bf16 %v3950, %v3949
      %v3993 = vpack.c.bf16 %v3952, %v3951
      %v3994 = vpack.c.bf16 %v3954, %v3953
      %v3995 = vpack.c.bf16 %v3956, %v3955
      %v3996 = vpack.c.bf16 %v3958, %v3957
      %v3997 = vpack.c.bf16 %v3960, %v3959
      %v3998 = vpack.c.bf16 %v3962, %v3961
      %v3999 = vpack.c.bf16 %v3964, %v3963
      %v4000 = vpack.c.bf16 %v3966, %v3965
      %v4001 = vpack.c.bf16 %v3968, %v3967
      %v4002 = vpack.c.bf16 %v3970, %v3969
      %v4003 = vpack.c.bf16 %v3972, %v3971
      %v4004 = vpack.c.bf16 %v3974, %v3973
      %v4005 = vpack.c.bf16 %v3976, %v3975
      %v4006 = vpack.c.bf16 %v3978, %v3977
      %v4007 = vpack.c.bf16 %v3980, %v3979
      %v4026 = vunpack.c.l.b16 %v3990
      %v4027 = vunpack.c.h.b16 %v3990
      %v4028 = vunpack.c.l.b16 %v3991
      %v4029 = vunpack.c.h.b16 %v3991
      %v4030 = vunpack.c.l.b16 %v3992
      %v4031 = vunpack.c.h.b16 %v3992
      %v4032 = vunpack.c.l.b16 %v3993
      %v4033 = vunpack.c.h.b16 %v3993
      %v4034 = vunpack.c.l.b16 %v3994
      %v4035 = vunpack.c.h.b16 %v3994
      %v4036 = vunpack.c.l.b16 %v3995
      %v4037 = vunpack.c.h.b16 %v3995
      %v4038 = vunpack.c.l.b16 %v3996
      %v4039 = vunpack.c.h.b16 %v3996
      %v4040 = vunpack.c.l.b16 %v3997
      %v4041 = vunpack.c.h.b16 %v3997
      %v4042 = vunpack.c.l.b16 %v3998
      %v4043 = vunpack.c.h.b16 %v3998
      %v4044 = vunpack.c.l.b16 %v3999
      %v4045 = vunpack.c.h.b16 %v3999
      %v4046 = vunpack.c.l.b16 %v4000
      %v4047 = vunpack.c.h.b16 %v4000
      %v4048 = vunpack.c.l.b16 %v4001
      %v4049 = vunpack.c.h.b16 %v4001
      %v4050 = vunpack.c.l.b16 %v4002
      %v4051 = vunpack.c.h.b16 %v4002
      %v4052 = vunpack.c.l.b16 %v4003
      %v4053 = vunpack.c.h.b16 %v4003
      %v4054 = vunpack.c.l.b16 %v4004
      %v4055 = vunpack.c.h.b16 %v4004
      %v4056 = vunpack.c.l.b16 %v4005
      %v4057 = vunpack.c.h.b16 %v4005
      %v4058 = vunpack.c.l.b16 %v4006
      %v4059 = vunpack.c.h.b16 %v4006
      %v4060 = vunpack.c.l.b16 %v4007
      %v4061 = vunpack.c.h.b16 %v4007
      %v4062 = vpack.c.b16 %v4026, %v4026
      %v4063 = vpack.c.b16 %v4027, %v4027
      %v4064 = vpack.c.b16 %v4028, %v4028
      %v4065 = vpack.c.b16 %v4029, %v4029
      %v4066 = vpack.c.b16 %v4030, %v4030
      %v4067 = vpack.c.b16 %v4031, %v4031
      %v4068 = vpack.c.b16 %v4032, %v4032
      %v4069 = vpack.c.b16 %v4033, %v4033
      %v4070 = vpack.c.b16 %v4034, %v4034
      %v4071 = vpack.c.b16 %v4035, %v4035
      %v4072 = vpack.c.b16 %v4036, %v4036
      %v4073 = vpack.c.b16 %v4037, %v4037
      %v4074 = vpack.c.b16 %v4038, %v4038
      %v4075 = vpack.c.b16 %v4039, %v4039
      %v4076 = vpack.c.b16 %v4040, %v4040
      %v4077 = vpack.c.b16 %v4041, %v4041
      %v4078 = vpack.c.b16 %v4042, %v4042
      %v4079 = vpack.c.b16 %v4043, %v4043
      %v4080 = vpack.c.b16 %v4044, %v4044
      %v4081 = vpack.c.b16 %v4045, %v4045
      %v4082 = vpack.c.b16 %v4046, %v4046
      %v4083 = vpack.c.b16 %v4047, %v4047
      %v4084 = vpack.c.b16 %v4048, %v4048
      %v4085 = vpack.c.b16 %v4049, %v4049
      %v4086 = vpack.c.b16 %v4050, %v4050
      %v4087 = vpack.c.b16 %v4051, %v4051
      %v4088 = vpack.c.b16 %v4052, %v4052
      %v4089 = vpack.c.b16 %v4053, %v4053
      %v4090 = vpack.c.b16 %v4054, %v4054
      %v4091 = vpack.c.b16 %v4055, %v4055
      %v4092 = vpack.c.b16 %v4056, %v4056
      %v4093 = vpack.c.b16 %v4057, %v4057
      %v4094 = vpack.c.b16 %v4058, %v4058
      %v4095 = vpack.c.b16 %v4059, %v4059
      %v4096 = vpack.c.b16 %v4060, %v4060
      %v4097 = vpack.c.b16 %v4061, %v4061
      %vm4098 = vsmask.f32 5392
      %vm4099 = vmor %vm3985, %vm4098
      %v4101 = vshrl.u32 %v4062, 16
      %v4103 = vrot.slane %v4101, 6
      %v4104 = vshll.u32 %v4062, 16
      %v4106 = vrot.slane %v4104, 7
      %v4107 = vor.u32 %v4103, %v4106
      %v4108 = vrot.slane %v4107, 4
      %v4110 = vshrl.u32 %v4063, 16
      %v4112 = vrot.slane %v4110, 6
      %v4113 = vshll.u32 %v4063, 16
      %v4115 = vrot.slane %v4113, 7
      %v4116 = vor.u32 %v4112, %v4115
      %v4117 = vsel %vm4099, %v4108, %v4116
      %v4118 = vrot.slane %v4116, 4
      %v4120 = vshrl.u32 %v4064, 16
      %v4122 = vrot.slane %v4120, 6
      %v4123 = vshll.u32 %v4064, 16
      %v4125 = vrot.slane %v4123, 7
      %v4126 = vor.u32 %v4122, %v4125
      %v4127 = vsel %vm4099, %v4118, %v4126
      %v4128 = vrot.slane %v4126, 4
      %v4130 = vshrl.u32 %v4065, 16
      %v4132 = vrot.slane %v4130, 6
      %v4133 = vshll.u32 %v4065, 16
      %v4135 = vrot.slane %v4133, 7
      %v4136 = vor.u32 %v4132, %v4135
      %v4137 = vsel %vm4099, %v4128, %v4136
      %v4138 = vrot.slane %v4136, 4
      %v4140 = vshrl.u32 %v4066, 16
      %v4142 = vrot.slane %v4140, 6
      %v4143 = vshll.u32 %v4066, 16
      %v4145 = vrot.slane %v4143, 7
      %v4146 = vor.u32 %v4142, %v4145
      %v4147 = vsel %vm4099, %v4138, %v4146
      %v4148 = vrot.slane %v4146, 4
      %v4150 = vshrl.u32 %v4067, 16
      %v4152 = vrot.slane %v4150, 6
      %v4153 = vshll.u32 %v4067, 16
      %v4155 = vrot.slane %v4153, 7
      %v4156 = vor.u32 %v4152, %v4155
      %v4157 = vsel %vm4099, %v4148, %v4156
      %v4158 = vrot.slane %v4156, 4
      %v4160 = vshrl.u32 %v4068, 16
      %v4162 = vrot.slane %v4160, 6
      %v4163 = vshll.u32 %v4068, 16
      %v4165 = vrot.slane %v4163, 7
      %v4166 = vor.u32 %v4162, %v4165
      %v4167 = vsel %vm4099, %v4158, %v4166
      %v4168 = vrot.slane %v4166, 4
      %v4170 = vshrl.u32 %v4069, 16
      %v4172 = vrot.slane %v4170, 6
      %v4173 = vshll.u32 %v4069, 16
      %v4175 = vrot.slane %v4173, 7
      %v4176 = vor.u32 %v4172, %v4175
      %v4177 = vsel %vm4099, %v4168, %v4176
      %v4178 = vrot.slane %v4176, 4
      %v4180 = vshrl.u32 %v4070, 16
      %v4182 = vrot.slane %v4180, 6
      %v4183 = vshll.u32 %v4070, 16
      %v4185 = vrot.slane %v4183, 7
      %v4186 = vor.u32 %v4182, %v4185
      %v4187 = vsel %vm4099, %v4178, %v4186
      %v4188 = vrot.slane %v4186, 4
      %v4190 = vshrl.u32 %v4071, 16
      %v4192 = vrot.slane %v4190, 6
      %v4193 = vshll.u32 %v4071, 16
      %v4195 = vrot.slane %v4193, 7
      %v4196 = vor.u32 %v4192, %v4195
      %v4197 = vsel %vm4099, %v4188, %v4196
      %v4198 = vrot.slane %v4196, 4
      %v4200 = vshrl.u32 %v4072, 16
      %v4202 = vrot.slane %v4200, 6
      %v4203 = vshll.u32 %v4072, 16
      %v4205 = vrot.slane %v4203, 7
      %v4206 = vor.u32 %v4202, %v4205
      %v4207 = vsel %vm4099, %v4198, %v4206
      %v4208 = vrot.slane %v4206, 4
      %v4210 = vshrl.u32 %v4073, 16
      %v4212 = vrot.slane %v4210, 6
      %v4213 = vshll.u32 %v4073, 16
      %v4215 = vrot.slane %v4213, 7
      %v4216 = vor.u32 %v4212, %v4215
      %v4217 = vsel %vm4099, %v4208, %v4216
      %v4218 = vrot.slane %v4216, 4
      %v4220 = vshrl.u32 %v4074, 16
      %v4222 = vrot.slane %v4220, 6
      %v4223 = vshll.u32 %v4074, 16
      %v4225 = vrot.slane %v4223, 7
      %v4226 = vor.u32 %v4222, %v4225
      %v4227 = vsel %vm4099, %v4218, %v4226
      %v4228 = vrot.slane %v4226, 4
      %v4230 = vshrl.u32 %v4075, 16
      %v4232 = vrot.slane %v4230, 6
      %v4233 = vshll.u32 %v4075, 16
      %v4235 = vrot.slane %v4233, 7
      %v4236 = vor.u32 %v4232, %v4235
      %v4237 = vsel %vm4099, %v4228, %v4236
      %v4238 = vrot.slane %v4236, 4
      %v4240 = vshrl.u32 %v4076, 16
      %v4242 = vrot.slane %v4240, 6
      %v4243 = vshll.u32 %v4076, 16
      %v4245 = vrot.slane %v4243, 7
      %v4246 = vor.u32 %v4242, %v4245
      %v4247 = vsel %vm4099, %v4238, %v4246
      %v4248 = vrot.slane %v4246, 4
      %v4250 = vshrl.u32 %v4077, 16
      %v4252 = vrot.slane %v4250, 6
      %v4253 = vshll.u32 %v4077, 16
      %v4255 = vrot.slane %v4253, 7
      %v4256 = vor.u32 %v4252, %v4255
      %v4257 = vsel %vm4099, %v4248, %v4256
      %v4258 = vrot.slane %v4256, 4
      %v4260 = vshrl.u32 %v4078, 16
      %v4262 = vrot.slane %v4260, 6
      %v4263 = vshll.u32 %v4078, 16
      %v4265 = vrot.slane %v4263, 7
      %v4266 = vor.u32 %v4262, %v4265
      %v4267 = vsel %vm4099, %v4258, %v4266
      %v4268 = vrot.slane %v4266, 4
      %v4270 = vshrl.u32 %v4079, 16
      %v4272 = vrot.slane %v4270, 6
      %v4273 = vshll.u32 %v4079, 16
      %v4275 = vrot.slane %v4273, 7
      %v4276 = vor.u32 %v4272, %v4275
      %v4277 = vsel %vm4099, %v4268, %v4276
      %v4278 = vrot.slane %v4276, 4
      %v4280 = vshrl.u32 %v4080, 16
      %v4282 = vrot.slane %v4280, 6
      %v4283 = vshll.u32 %v4080, 16
      %v4285 = vrot.slane %v4283, 7
      %v4286 = vor.u32 %v4282, %v4285
      %v4287 = vsel %vm4099, %v4278, %v4286
      %v4288 = vrot.slane %v4286, 4
      %v4290 = vshrl.u32 %v4081, 16
      %v4292 = vrot.slane %v4290, 6
      %v4293 = vshll.u32 %v4081, 16
      %v4295 = vrot.slane %v4293, 7
      %v4296 = vor.u32 %v4292, %v4295
      %v4297 = vsel %vm4099, %v4288, %v4296
      %v4298 = vrot.slane %v4296, 4
      %v4300 = vshrl.u32 %v4082, 16
      %v4302 = vrot.slane %v4300, 6
      %v4303 = vshll.u32 %v4082, 16
      %v4305 = vrot.slane %v4303, 7
      %v4306 = vor.u32 %v4302, %v4305
      %v4307 = vsel %vm4099, %v4298, %v4306
      %v4308 = vrot.slane %v4306, 4
      %v4310 = vshrl.u32 %v4083, 16
      %v4312 = vrot.slane %v4310, 6
      %v4313 = vshll.u32 %v4083, 16
      %v4315 = vrot.slane %v4313, 7
      %v4316 = vor.u32 %v4312, %v4315
      %v4317 = vsel %vm4099, %v4308, %v4316
      %v4318 = vrot.slane %v4316, 4
      %v4320 = vshrl.u32 %v4084, 16
      %v4322 = vrot.slane %v4320, 6
      %v4323 = vshll.u32 %v4084, 16
      %v4325 = vrot.slane %v4323, 7
      %v4326 = vor.u32 %v4322, %v4325
      %v4327 = vsel %vm4099, %v4318, %v4326
      %v4328 = vrot.slane %v4326, 4
      %v4330 = vshrl.u32 %v4085, 16
      %v4332 = vrot.slane %v4330, 6
      %v4333 = vshll.u32 %v4085, 16
      %v4335 = vrot.slane %v4333, 7
      %v4336 = vor.u32 %v4332, %v4335
      %v4337 = vsel %vm4099, %v4328, %v4336
      %v4338 = vrot.slane %v4336, 4
      %v4340 = vshrl.u32 %v4086, 16
      %v4342 = vrot.slane %v4340, 6
      %v4343 = vshll.u32 %v4086, 16
      %v4345 = vrot.slane %v4343, 7
      %v4346 = vor.u32 %v4342, %v4345
      %v4347 = vsel %vm4099, %v4338, %v4346
      %v4348 = vrot.slane %v4346, 4
      %v4350 = vshrl.u32 %v4087, 16
      %v4352 = vrot.slane %v4350, 6
      %v4353 = vshll.u32 %v4087, 16
      %v4355 = vrot.slane %v4353, 7
      %v4356 = vor.u32 %v4352, %v4355
      %v4357 = vsel %vm4099, %v4348, %v4356
      %v4358 = vrot.slane %v4356, 4
      %v4360 = vshrl.u32 %v4088, 16
      %v4362 = vrot.slane %v4360, 6
      %v4363 = vshll.u32 %v4088, 16
      %v4365 = vrot.slane %v4363, 7
      %v4366 = vor.u32 %v4362, %v4365
      %v4367 = vsel %vm4099, %v4358, %v4366
      %v4368 = vrot.slane %v4366, 4
      %v4370 = vshrl.u32 %v4089, 16
      %v4372 = vrot.slane %v4370, 6
      %v4373 = vshll.u32 %v4089, 16
      %v4375 = vrot.slane %v4373, 7
      %v4376 = vor.u32 %v4372, %v4375
      %v4377 = vsel %vm4099, %v4368, %v4376
      %v4378 = vrot.slane %v4376, 4
      %v4380 = vshrl.u32 %v4090, 16
      %v4382 = vrot.slane %v4380, 6
      %v4383 = vshll.u32 %v4090, 16
      %v4385 = vrot.slane %v4383, 7
      %v4386 = vor.u32 %v4382, %v4385
      %v4387 = vsel %vm4099, %v4378, %v4386
      %v4388 = vrot.slane %v4386, 4
      %v4390 = vshrl.u32 %v4091, 16
      %v4392 = vrot.slane %v4390, 6
      %v4393 = vshll.u32 %v4091, 16
      %v4395 = vrot.slane %v4393, 7
      %v4396 = vor.u32 %v4392, %v4395
      %v4397 = vsel %vm4099, %v4388, %v4396
      %v4398 = vrot.slane %v4396, 4
      %v4400 = vshrl.u32 %v4092, 16
      %v4402 = vrot.slane %v4400, 6
      %v4403 = vshll.u32 %v4092, 16
      %v4405 = vrot.slane %v4403, 7
      %v4406 = vor.u32 %v4402, %v4405
      %v4407 = vsel %vm4099, %v4398, %v4406
      %v4408 = vrot.slane %v4406, 4
      %v4410 = vshrl.u32 %v4093, 16
      %v4412 = vrot.slane %v4410, 6
      %v4413 = vshll.u32 %v4093, 16
      %v4415 = vrot.slane %v4413, 7
      %v4416 = vor.u32 %v4412, %v4415
      %v4417 = vsel %vm4099, %v4408, %v4416
      %v4418 = vrot.slane %v4416, 4
      %v4420 = vshrl.u32 %v4094, 16
      %v4422 = vrot.slane %v4420, 6
      %v4423 = vshll.u32 %v4094, 16
      %v4425 = vrot.slane %v4423, 7
      %v4426 = vor.u32 %v4422, %v4425
      %v4427 = vsel %vm4099, %v4418, %v4426
      %v4428 = vrot.slane %v4426, 4
      %v4430 = vshrl.u32 %v4095, 16
      %v4432 = vrot.slane %v4430, 6
      %v4433 = vshll.u32 %v4095, 16
      %v4435 = vrot.slane %v4433, 7
      %v4436 = vor.u32 %v4432, %v4435
      %v4437 = vsel %vm4099, %v4428, %v4436
      %v4438 = vrot.slane %v4436, 4
      %v4440 = vshrl.u32 %v4096, 16
      %v4442 = vrot.slane %v4440, 6
      %v4443 = vshll.u32 %v4096, 16
      %v4445 = vrot.slane %v4443, 7
      %v4446 = vor.u32 %v4442, %v4445
      %v4447 = vsel %vm4099, %v4438, %v4446
      %v4448 = vrot.slane %v4446, 4
      %v4450 = vshrl.u32 %v4097, 16
      %v4452 = vrot.slane %v4450, 6
      %v4453 = vshll.u32 %v4097, 16
      %v4455 = vrot.slane %v4453, 7
      %v4456 = vor.u32 %v4452, %v4455
      %v4457 = vsel %vm4099, %v4448, %v4456
      %v4458 = vrot.slane %v4456, 4
      %vm4496 = vcmask 519169
      %vm4497 = vsmask.f32 7942
      %vm4498 = vmand %vm4496, %vm4497
      %v4499 = vld [vmem:[%s197 + $0x8] sm:$0xe]
      %v4500 = vsel %vm4498, %v4107, %v4499
      %4501 = vst [vmem:[%s197 + $0x8] sm:$0xe] %v4500
      %4502 = vst.msk [vmem:[%s197 + $0xc] sm:$0xf] %vm3981, %v4117
      %4503 = vst.msk [vmem:[%s197 + $0x10] sm:$0xf] %vm3981, %v4127
      %4504 = vst.msk [vmem:[%s197 + $0x14] sm:$0xf] %vm3981, %v4137
      %4505 = vst.msk [vmem:[%s197 + $0x18] sm:$0xf] %vm3981, %v4147
      %4506 = vst.msk [vmem:[%s197 + $0x1c] sm:$0xf] %vm3981, %v4157
      %4507 = vst.msk [vmem:[%s197 + $0x20] sm:$0xf] %vm3981, %v4167
      %4508 = vst.msk [vmem:[%s197 + $0x24] sm:$0xf] %vm3981, %v4177
      %4509 = vst.msk [vmem:[%s197 + $0x28] sm:$0xf] %vm3981, %v4187
      %4510 = vst.msk [vmem:[%s197 + $0x2c] sm:$0xf] %vm3981, %v4197
      %4511 = vst.msk [vmem:[%s197 + $0x30] sm:$0xf] %vm3981, %v4207
      %4512 = vst.msk [vmem:[%s197 + $0x34] sm:$0xf] %vm3981, %v4217
      %4513 = vst.msk [vmem:[%s197 + $0x38] sm:$0xf] %vm3981, %v4227
      %4514 = vst.msk [vmem:[%s197 + $0x3c] sm:$0xf] %vm3981, %v4237
      %4515 = vst.msk [vmem:[%s197 + $0x40] sm:$0xf] %vm3981, %v4247
      %4516 = vst.msk [vmem:[%s197 + $0x44] sm:$0xf] %vm3981, %v4257
      %4517 = vst.msk [vmem:[%s197 + $0x48] sm:$0xf] %vm3981, %v4267
      %4518 = vst.msk [vmem:[%s197 + $0x4c] sm:$0xf] %vm3981, %v4277
      %4519 = vst.msk [vmem:[%s197 + $0x50] sm:$0xf] %vm3981, %v4287
      %4520 = vst.msk [vmem:[%s197 + $0x54] sm:$0xf] %vm3981, %v4297
      %4521 = vst.msk [vmem:[%s197 + $0x58] sm:$0xf] %vm3981, %v4307
      %4522 = vst.msk [vmem:[%s197 + $0x5c] sm:$0xf] %vm3981, %v4317
      %4523 = vst.msk [vmem:[%s197 + $0x60] sm:$0xf] %vm3981, %v4327
      %4524 = vst.msk [vmem:[%s197 + $0x64] sm:$0xf] %vm3981, %v4337
      %4525 = vst.msk [vmem:[%s197 + $0x68] sm:$0xf] %vm3981, %v4347
      %4526 = vst.msk [vmem:[%s197 + $0x6c] sm:$0xf] %vm3981, %v4357
      %4527 = vst.msk [vmem:[%s197 + $0x70] sm:$0xf] %vm3981, %v4367
      %4528 = vst.msk [vmem:[%s197 + $0x74] sm:$0xf] %vm3981, %v4377
      %4529 = vst.msk [vmem:[%s197 + $0x78] sm:$0xf] %vm3981, %v4387
      %4530 = vst.msk [vmem:[%s197 + $0x7c] sm:$0xf] %vm3981, %v4397
      %4531 = vst.msk [vmem:[%s197 + $0x80] sm:$0xf] %vm3981, %v4407
      %4532 = vst.msk [vmem:[%s197 + $0x84] sm:$0xf] %vm3981, %v4417
      %4533 = vst.msk [vmem:[%s197 + $0x88] sm:$0xf] %vm3981, %v4427
      %4534 = vst.msk [vmem:[%s197 + $0x8c] sm:$0xf] %vm3981, %v4437
      %4535 = vst.msk [vmem:[%s197 + $0x90] sm:$0xf] %vm3981, %v4447
      %4536 = vst.msk [vmem:[%s197 + $0x94] sm:$0xf] %vm3981, %v4457
      %v4537 = vld [vmem:[%s197 + $0x98] sm:$0x3]
      %v4538 = vsel %vm3986, %v4458, %v4537
      %4539 = vst [vmem:[%s197 + $0x98] sm:$0x3] %v4538
      %v4540 = vld [vmem:[%s197 + $0x98] sm:$0xe]
      %v4541 = vsel %vm4498, 0, %v4540
      %4542 = vst [vmem:[%s197 + $0x98] sm:$0xe] %v4541
      %4543 = vst.msk [vmem:[%s197 + $0x9c] sm:$0xf] %vm3981, 0
      %4544 = vst.msk [vmem:[%s197 + $0xa0] sm:$0xf] %vm3981, 0
      %4545 = vst.msk [vmem:[%s197 + $0xa4] sm:$0xf] %vm3981, 0
      %vm4546 = vcmask 518144
      %4547 = vst.msk [vmem:[%s197 + $0xa8] sm:$0x7] %vm4546, 0
      %p4548 = scmp.lt.s32.totalorder %s15, 1
      %s4549 = scalar_select %p4548, %s15, 1
      %s4550 = smul.addr %s4549, 43
      %s4551 = smul.addr %s4550, 4
      %s4552 = scalar_lea.vmem %s4, %s4551
      // Predicated region
      $region37: #{tpu_custom_call.1} parent=35 // pred_check
        %p4553 = pneg %p122
      $region38: #{tpu_custom_call.1} parent=35 // pred_check_branch
        %4555 = sbr.rel (%p4553) target = $region40
      $region39: #{tpu_custom_call.1} parent=35 // pred_region
        _
      $region40: #{tpu_custom_call.1} parent=35 // pred_fallthru
        _
    $region36: #{tpu_custom_call.1} parent=5 // pred_fallthru
      _
    %p4556 = scmp.le.s32.totalorder 2, %s10
    // Predicated region
    $region41: #{tpu_custom_call.1} parent=5 // pred_check
      %p4557 = pneg %p4556
    $region42: #{tpu_custom_call.1} parent=5 // pred_check_branch
      %4559 = sbr.rel (%p4557) target = $region44
    $region43: #{tpu_custom_call.1} parent=5 // pred_region
      %s4560 = ssub.s32 %s10, 2
      // Predicated region
      $region45: #{tpu_custom_call.1} parent=43 // pred_check
        %p4561 = pneg %p128
      $region46: #{tpu_custom_call.1} parent=43 // pred_check_branch
        %4563 = sbr.rel (%p4561) target = $region48
      $region47: #{tpu_custom_call.1} parent=43 // pred_region
        %p4564 = scmp.lt.s32.totalorder %s16, 1
        %s4565 = scalar_select %p4564, %s16, 1
        %s4566 = smul.addr %s4565, 43
        %s4567 = smul.addr %s4566, 4
        %s4568 = scalar_lea.vmem %s4, %s4567
      $region48: #{tpu_custom_call.1} parent=43 // pred_fallthru
        _
    $region44: #{tpu_custom_call.1} parent=5 // pred_fallthru
      _
  $region6: #{tpu_custom_call.1} parent=0 // loop_footer
    %s14 = sadd.s32 1, %s10
  $region7: #{tpu_custom_call.1} parent=0 // loop_footer_branch
    %9 = sbr.rel target = $region3
  $region8: #{tpu_custom_call.1} parent=0 // loop_exit
    _

</llo_original>
